<compile_context>
chip_gen: v5e
topology: v5e:2x2
jax: 0.10.0
libtpu: 0.0.40
codegen_flags: <defaults>
</compile_context>

<pallas_src>
import numpy as np
import jax
import jax.numpy as jnp
from jax.experimental import pallas as pl
from jax.experimental.pallas import tpu as pltpu


# ----------------------------------------------------------------------------
# static helper matrices / per-column constants (glue, compile-time)
# ----------------------------------------------------------------------------
def _interp1d_align_corners(out_size, in_size):
    """1-D bilinear resize matrix, F.interpolate(..., align_corners=True)."""
    if out_size == 1:
        src = np.zeros((1,), np.float64)
    else:
        src = np.arange(out_size, dtype=np.float64) * (in_size - 1) / (out_size - 1)
    i0 = np.clip(np.floor(src).astype(np.int64), 0, in_size - 1)
    i1 = np.minimum(i0 + 1, in_size - 1)
    frac = (src - i0).astype(np.float32)
    A = np.zeros((out_size, in_size), np.float32)
    A[np.arange(out_size), i0] += 1.0 - frac
    A[np.arange(out_size), i1] += frac
    return A


def _column_constants(N, H, W):
    """(12, N*H*W) per-column constants: base grid, image offset, 3x3 masks."""
    HW = H * W
    P = N * HW
    q = np.arange(P)
    pix = q % HW
    ii = pix // W
    jj = pix % W
    gx = np.linspace(-1.0, 1.0, W, dtype=np.float64)[jj]   # x varies with j
    gy = np.linspace(-1.0, 1.0, H, dtype=np.float64)[ii]   # y varies with i
    img_off = (q // HW) * HW
    m_i = [ii >= 1, np.ones(P, bool), ii <= H - 2]          # kh = 0, 1, 2
    m_j = [jj >= 1, np.ones(P, bool), jj <= W - 2]          # kw = 0, 1, 2
    masks9 = [(m_i[kh] & m_j[kw]).astype(np.float32)
              for kh in range(3) for kw in range(3)]
    return np.ascontiguousarray(
        np.stack([gx.astype(np.float32), gy.astype(np.float32),
                  img_off.astype(np.float32)] + masks9))    # (12, P)


# ----------------------------------------------------------------------------
# kernel
# ----------------------------------------------------------------------------
def _make_kernel(N, Ca, Cn, H, W, H2, W2):
    HW = H * W
    P = N * HW
    EPS = 1e-5
    f32 = jnp.float32

    def roll_lanes(x, shift):
        s = shift % P
        if s == 0:
            return x
        return pltpu.roll(x, s, axis=1)

    def mix(Wm, feats):
        # tiny channel mix: (Cout, Cin) weights applied to (Cin, P) features.
        acc = Wm[:, 0:1] * feats[0:1, :]
        for ci in range(1, feats.shape[0]):
            acc = acc + Wm[:, ci:ci + 1] * feats[ci:ci + 1, :]
        return acc

    def kernel(low_ref, high_ref, bt_ref, cc_ref, wc_ref, wa_ref, wb_ref,
               gb_ref, out_ref):
        cc = cc_ref[...]                                   # (12, P)
        gx_base = cc[0:1, :]
        gy_base = cc[1:2, :]
        img_off = cc[2:3, :]

        # ---- self.change: 1x1 conv on low_stage --------------------------
        low_chg = mix(wc_ref[...], low_ref[...])           # (Cn, P)

        # ---- bilinear upsample (align_corners=True) of high_stage --------
        up_all = jnp.dot(high_ref[...], bt_ref[...],
                         preferred_element_type=f32)       # (N*Cn, HW)
        high_up = jnp.concatenate(
            [up_all[n * Cn:(n + 1) * Cn, :] for n in range(N)], axis=1)  # (Cn, P)

        # ---- delta_gen[branch]: 1x1 conv on concat(low_chg, high_up) -----
        wa = wa_ref[0]                                     # (Cn, 2*Cn)
        t = mix(wa[:, :Cn], low_chg) + mix(wa[:, Cn:], high_up)          # (Cn, P)

        # ---- BatchNorm2d (training-mode batch stats, biased var) + ReLU --
        gb = gb_ref[0]                                     # (Cn, 3)
        gamma = gb[:, 0:1]
        beta = gb[:, 1:2]
        sel = gb[0:1, 2:3]                                 # 1.0 -> branch 0
        inv_cnt = 1.0 / float(P)
        mean = t.sum(axis=1, keepdims=True) * inv_cnt
        var = (t * t).sum(axis=1, keepdims=True) * inv_cnt - mean * mean
        scale = jax.lax.rsqrt(var + EPS) * gamma
        r = jnp.maximum((t - mean) * scale + beta, 0.0)    # (Cn, P)

        # ---- 3x3 conv (padding=1, no bias): lane rolls + boundary masks --
        wb = wb_ref[0]                                     # (2, 9*Cn)
        delta = jnp.zeros((2, P), f32)
        for kh in range(3):
            for kw in range(3):
                k = kh * 3 + kw
                d = (kh - 1) * W + (kw - 1)
                shifted = roll_lanes(r, -d)                # shifted[p] = r[p + d]
                Wk = wb[:, k * Cn:(k + 1) * Cn]            # (2, Cn)
                delta = delta + mix(Wk, shifted) * cc[3 + k:4 + k, :]

        # ---- grid_sample (bilinear, zeros pad, align_corners=False) ------
        # torch normalization of the offsets: x += delta[:,0]/H, y += delta[:,1]/W
        gx = gx_base + delta[0:1, :] * (1.0 / float(H))
        gy = gy_base + delta[1:2, :] * (1.0 / float(W))
        ix = ((gx + 1.0) * float(W) - 1.0) * 0.5
        iy = ((gy + 1.0) * float(H) - 1.0) * 0.5
        x0 = jnp.floor(ix)
        y0 = jnp.floor(iy)
        wx1 = ix - x0
        wx0 = 1.0 - wx1
        wy1 = iy - y0
        wy0 = 1.0 - wy1

        vx0 = (x0 >= 0.0) & (x0 <= float(W - 1))
        vx1 = (x0 >= -1.0) & (x0 <= float(W - 2))          # x1 = x0 + 1 in range
        vy0 = (y0 >= 0.0) & (y0 <= float(H - 1))
        vy1 = (y0 >= -1.0) & (y0 <= float(H - 2))
        w00 = jnp.where(vy0 & vx0, wy0 * wx0, 0.0)         # (1, P), zeros padding
        w01 = jnp.where(vy0 & vx1, wy0 * wx1, 0.0)
        w10 = jnp.where(vy1 & vx0, wy1 * wx0, 0.0)
        w11 = jnp.where(vy1 & vx1, wy1 * wx1, 0.0)

        # structural one-hot of corner (y0, x0), wrapped into [0, P)
        idx00 = img_off + y0 * float(W) + x0
        idx00 = jnp.where(idx00 < 0.0, idx00 + float(P), idx00)
        idx00i = idx00.astype(jnp.int32)                   # (1, P)
        p_iota = jax.lax.broadcasted_iota(jnp.int32, (P, P), 0)
        s00 = (p_iota == idx00i).astype(f32)               # (P, P)

        # branch 0 samples the upsampled high stage, branch 1 the changed low
        src = high_up * sel + low_chg * (1.0 - sel)        # (Cn, P)

        # 4 bilinear corners via ONE matmul: rolling the source by
        # -{0, 1, W, W+1} then gathering with s00 picks (y0,x0),(y0,x1),
        # (y1,x0),(y1,x1).  (Equivalent to rolling the one-hot along p.)
        lhs = jnp.concatenate(
            [src,
             roll_lanes(src, -1),
             roll_lanes(src, -W),
             roll_lanes(src, -(W + 1))], axis=0)           # (4*Cn, P)
        g = jnp.dot(lhs, s00, preferred_element_type=f32)  # (4*Cn, P)
        sampled = (g[0 * Cn:1 * Cn, :] * w00 + g[1 * Cn:2 * Cn, :] * w01 +
                   g[2 * Cn:3 * Cn, :] * w10 + g[3 * Cn:4 * Cn, :] * w11)

        out_ref[0] = sampled                               # lane-dense (Cn, P) slab

    return kernel


# ----------------------------------------------------------------------------
# wrapper
# ----------------------------------------------------------------------------
def domain_align_alignseg(low_stage, high_stage, params):
    N, Ca, H, W = low_stage.shape
    N2, Cn, H2, W2 = high_stage.shape
    assert N == N2
    HW = H * W
    P = N * HW

    (wc, w1a, w1b, g1, b1, w2a, w2b, g2, b2) = params

    # static constants
    A_h = _interp1d_align_corners(H, H2)
    A_w = _interp1d_align_corners(W, W2)
    Bt = np.ascontiguousarray(np.kron(A_h, A_w).T.astype(np.float32))   # (H2*W2, HW)
    colconst = _column_constants(N, H, W)                               # (12, P)

    # per-branch parameter packing (branch 0 = delta_gen1, branch 1 = delta_gen2)
    wa_st = jnp.stack([w1a, w2a]).astype(jnp.float32)                   # (2, Cn, 2Cn)
    wb_st = jnp.stack([
        jnp.transpose(w1b, (0, 2, 3, 1)).reshape(2, 9 * Cn),
        jnp.transpose(w2b, (0, 2, 3, 1)).reshape(2, 9 * Cn),
    ]).astype(jnp.float32)                                              # (2, 2, 9Cn)
    sel1 = jnp.ones((Cn, 1), jnp.float32)
    sel0 = jnp.zeros((Cn, 1), jnp.float32)
    gb_st = jnp.stack([
        jnp.concatenate([g1.astype(jnp.float32), b1.astype(jnp.float32), sel1], axis=1),
        jnp.concatenate([g2.astype(jnp.float32), b2.astype(jnp.float32), sel0], axis=1),
    ])                                                                  # (2, Cn, 3)

    # activations: channels on sublanes, (batch * pixels) on lanes
    low_cp = jnp.transpose(low_stage, (1, 0, 2, 3)).reshape(Ca, P).astype(jnp.float32)
    high_fl = high_stage.reshape(N * Cn, H2 * W2).astype(jnp.float32)

    kernel = _make_kernel(N, Ca, Cn, H, W, H2, W2)
    out2 = pl.pallas_call(
        kernel,
        out_shape=jax.ShapeDtypeStruct((2, Cn, P), jnp.float32),
        grid=(2,),
        in_specs=[
            pl.BlockSpec((Ca, P), lambda b: (0, 0)),
            pl.BlockSpec((N * Cn, H2 * W2), lambda b: (0, 0)),
            pl.BlockSpec((H2 * W2, HW), lambda b: (0, 0)),
            pl.BlockSpec((12, P), lambda b: (0, 0)),
            pl.BlockSpec((Cn, Ca), lambda b: (0, 0)),
            pl.BlockSpec((1, Cn, 2 * Cn), lambda b: (b, 0, 0)),
            pl.BlockSpec((1, 2, 9 * Cn), lambda b: (b, 0, 0)),
            pl.BlockSpec((1, Cn, 3), lambda b: (b, 0, 0)),
        ],
        out_specs=pl.BlockSpec((1, Cn, P), lambda b: (b, 0, 0)),
        compiler_params=pltpu.CompilerParams(
            dimension_semantics=("parallel",),
            vmem_limit_bytes=32 * 1024 * 1024,
        ),
    )(
        low_cp, high_fl, jnp.asarray(Bt), jnp.asarray(colconst),
        wc.astype(jnp.float32), wa_st, wb_st, gb_st,
    )

    res = out2[0] + out2[1]                                # high += low
    return res.reshape(Cn, N, HW).transpose(1, 0, 2).reshape(N, Cn, H, W)


# ----------------------------------------------------------------------------
if __name__ == "__main__":
    key = jax.random.PRNGKey(0)
    ks = jax.random.split(key, 16)
    N, align_class, num_class = 2, 2, 2
    H, W, H2, W2 = 16, 16, 8, 8

    low_stage = jax.random.normal(ks[0], (N, align_class, H, W), jnp.float32)
    high_stage = jax.random.normal(ks[1], (N, num_class, H2, W2), jnp.float32)

    # Parameters (shapes from the module's __init__), deterministic init.
    # NOTE: the original __init__ zeroes delta_gen*[3] and self.last; here the
    # 3x3 conv weights get small deterministic values so the warping path is
    # actually exercised.  self.last is never used in forward() -> omitted.
    wc  = jax.random.normal(ks[2], (num_class, align_class), jnp.float32) * 0.5
    w1a = jax.random.normal(ks[3], (num_class, 2 * num_class), jnp.float32) * 0.4
    w1b = jax.random.normal(ks[4], (2, num_class, 3, 3), jnp.float32) * 0.15
    g1  = 1.0 + 0.1 * jax.random.normal(ks[5], (num_class, 1), jnp.float32)
    b1  = 0.05 * jax.random.normal(ks[6], (num_class, 1), jnp.float32)
    w2a = jax.random.normal(ks[7], (num_class, 2 * num_class), jnp.float32) * 0.4
    w2b = jax.random.normal(ks[8], (2, num_class, 3, 3), jnp.float32) * 0.15
    g2  = 1.0 + 0.1 * jax.random.normal(ks[9], (num_class, 1), jnp.float32)
    b2  = 0.05 * jax.random.normal(ks[10], (num_class, 1), jnp.float32)

    params = (wc, w1a, w1b, g1, b1, w2a, w2b, g2, b2)
    out = domain_align_alignseg(low_stage, high_stage, params)
    out = jax.block_until_ready(out)

    assert out.shape == (N, num_class, H, W)
    assert bool(jnp.all(jnp.isfinite(out)))
    print("KERNEL_OK")
</pallas_src>

<mosaic_0001>
module attributes {stable_mosaic.version = 11 : i64} {
  func.func @kernel(%arg0: i32, %arg1: memref<2x512xf32, #tpu.memory_space<vmem>>, %arg2: memref<4x64xf32, #tpu.memory_space<vmem>>, %arg3: memref<64x256xf32, #tpu.memory_space<vmem>>, %arg4: memref<12x512xf32, #tpu.memory_space<vmem>>, %arg5: memref<2x2xf32, #tpu.memory_space<vmem>>, %arg6: memref<1x2x4xf32, #tpu.memory_space<vmem>>, %arg7: memref<1x2x18xf32, #tpu.memory_space<vmem>>, %arg8: memref<1x2x3xf32, #tpu.memory_space<vmem>>, %arg9: memref<1x2x512xf32, #tpu.memory_space<vmem>>) attributes {dimension_semantics = [#tpu.dimension_semantics<parallel>], iteration_bounds = array<i64: 2>, scalar_prefetch = 0 : i64, scratch_operands = 0 : i64, tpu.core_type = #tpu.core_type<tc>, window_params = [{pipeline_mode = #tpu.pipeline_mode<synchronous>, transform_indices = @transform_0, window_bounds = array<i64: 2, 512>}, {pipeline_mode = #tpu.pipeline_mode<synchronous>, transform_indices = @transform_1, window_bounds = array<i64: 4, 64>}, {pipeline_mode = #tpu.pipeline_mode<synchronous>, transform_indices = @transform_2, window_bounds = array<i64: 64, 256>}, {pipeline_mode = #tpu.pipeline_mode<synchronous>, transform_indices = @transform_3, window_bounds = array<i64: 12, 512>}, {pipeline_mode = #tpu.pipeline_mode<synchronous>, transform_indices = @transform_4, window_bounds = array<i64: 2, 2>}, {transform_indices = @transform_5, window_bounds = array<i64: 1, 2, 4>}, {transform_indices = @transform_6, window_bounds = array<i64: 1, 2, 18>}, {transform_indices = @transform_7, window_bounds = array<i64: 1, 2, 3>}, {transform_indices = @transform_8, window_bounds = array<i64: 1, 2, 512>}]} {
    %c0 = arith.constant 0 : index
    %c0_0 = arith.constant 0 : index
    %0 = vector.load %arg4[%c0, %c0_0] : memref<12x512xf32, #tpu.memory_space<vmem>>, vector<12x512xf32>
    %1 = vector.extract_strided_slice %0 {offsets = [0, 0], sizes = [1, 512], strides = [1, 1]} : vector<12x512xf32> to vector<1x512xf32>
    %2 = vector.extract_strided_slice %0 {offsets = [1, 0], sizes = [1, 512], strides = [1, 1]} : vector<12x512xf32> to vector<1x512xf32>
    %3 = vector.extract_strided_slice %0 {offsets = [2, 0], sizes = [1, 512], strides = [1, 1]} : vector<12x512xf32> to vector<1x512xf32>
    %c0_1 = arith.constant 0 : index
    %c0_2 = arith.constant 0 : index
    %4 = vector.load %arg5[%c0_1, %c0_2] : memref<2x2xf32, #tpu.memory_space<vmem>>, vector<2x2xf32>
    %c0_3 = arith.constant 0 : index
    %c0_4 = arith.constant 0 : index
    %5 = vector.load %arg1[%c0_3, %c0_4] : memref<2x512xf32, #tpu.memory_space<vmem>>, vector<2x512xf32>
    %6 = vector.extract_strided_slice %4 {offsets = [0, 0], sizes = [2, 1], strides = [1, 1]} : vector<2x2xf32> to vector<2x1xf32>
    %7 = vector.extract_strided_slice %5 {offsets = [0, 0], sizes = [1, 512], strides = [1, 1]} : vector<2x512xf32> to vector<1x512xf32>
    %8 = vector.broadcast %6 : vector<2x1xf32> to vector<2x512xf32>
    %9 = vector.broadcast %7 : vector<1x512xf32> to vector<2x512xf32>
    %10 = arith.mulf %8, %9 : vector<2x512xf32>
    %11 = vector.extract_strided_slice %4 {offsets = [0, 1], sizes = [2, 1], strides = [1, 1]} : vector<2x2xf32> to vector<2x1xf32>
    %12 = vector.extract_strided_slice %5 {offsets = [1, 0], sizes = [1, 512], strides = [1, 1]} : vector<2x512xf32> to vector<1x512xf32>
    %13 = vector.broadcast %11 : vector<2x1xf32> to vector<2x512xf32>
    %14 = vector.broadcast %12 : vector<1x512xf32> to vector<2x512xf32>
    %15 = arith.mulf %13, %14 : vector<2x512xf32>
    %16 = arith.addf %10, %15 : vector<2x512xf32>
    %c0_5 = arith.constant 0 : index
    %c0_6 = arith.constant 0 : index
    %17 = vector.load %arg2[%c0_5, %c0_6] : memref<4x64xf32, #tpu.memory_space<vmem>>, vector<4x64xf32>
    %c0_7 = arith.constant 0 : index
    %c0_8 = arith.constant 0 : index
    %18 = vector.load %arg3[%c0_7, %c0_8] : memref<64x256xf32, #tpu.memory_space<vmem>>, vector<64x256xf32>
    %cst = arith.constant dense<0.000000e+00> : vector<4x256xf32>
    %19 = tpu.matmul %17, %18, %cst {dimension_numbers = #tpu.dot_dimension_numbers<[1], [0], [0], [1], [0, 0, 1, 1], [], []>} : vector<4x64xf32>, vector<64x256xf32>, vector<4x256xf32> -> vector<4x256xf32>
    %20 = vector.extract_strided_slice %19 {offsets = [0, 0], sizes = [2, 256], strides = [1, 1]} : vector<4x256xf32> to vector<2x256xf32>
    %21 = vector.extract_strided_slice %19 {offsets = [2, 0], sizes = [2, 256], strides = [1, 1]} : vector<4x256xf32> to vector<2x256xf32>
    %22 = tpu.concatenate %20, %21 in 1 : vector<2x256xf32>, vector<2x256xf32> -> vector<2x512xf32>
    %c0_9 = arith.constant 0 : index
    %c0_10 = arith.constant 0 : index
    %c0_11 = arith.constant 0 : index
    %23 = vector.load %arg6[%c0_9, %c0_10, %c0_11] : memref<1x2x4xf32, #tpu.memory_space<vmem>>, vector<1x2x4xf32>
    %24 = vector.shape_cast %23 : vector<1x2x4xf32> to vector<2x4xf32>
    %25 = vector.extract_strided_slice %24 {offsets = [0, 0], sizes = [2, 2], strides = [1, 1]} : vector<2x4xf32> to vector<2x2xf32>
    %26 = vector.extract_strided_slice %25 {offsets = [0, 0], sizes = [2, 1], strides = [1, 1]} : vector<2x2xf32> to vector<2x1xf32>
    %27 = vector.extract_strided_slice %16 {offsets = [0, 0], sizes = [1, 512], strides = [1, 1]} : vector<2x512xf32> to vector<1x512xf32>
    %28 = vector.broadcast %26 : vector<2x1xf32> to vector<2x512xf32>
    %29 = vector.broadcast %27 : vector<1x512xf32> to vector<2x512xf32>
    %30 = arith.mulf %28, %29 : vector<2x512xf32>
    %31 = vector.extract_strided_slice %25 {offsets = [0, 1], sizes = [2, 1], strides = [1, 1]} : vector<2x2xf32> to vector<2x1xf32>
    %32 = vector.extract_strided_slice %16 {offsets = [1, 0], sizes = [1, 512], strides = [1, 1]} : vector<2x512xf32> to vector<1x512xf32>
    %33 = vector.broadcast %31 : vector<2x1xf32> to vector<2x512xf32>
    %34 = vector.broadcast %32 : vector<1x512xf32> to vector<2x512xf32>
    %35 = arith.mulf %33, %34 : vector<2x512xf32>
    %36 = arith.addf %30, %35 : vector<2x512xf32>
    %37 = vector.extract_strided_slice %24 {offsets = [0, 2], sizes = [2, 2], strides = [1, 1]} : vector<2x4xf32> to vector<2x2xf32>
    %38 = vector.extract_strided_slice %37 {offsets = [0, 0], sizes = [2, 1], strides = [1, 1]} : vector<2x2xf32> to vector<2x1xf32>
    %39 = vector.extract_strided_slice %22 {offsets = [0, 0], sizes = [1, 512], strides = [1, 1]} : vector<2x512xf32> to vector<1x512xf32>
    %40 = vector.broadcast %38 : vector<2x1xf32> to vector<2x512xf32>
    %41 = vector.broadcast %39 : vector<1x512xf32> to vector<2x512xf32>
    %42 = arith.mulf %40, %41 : vector<2x512xf32>
    %43 = vector.extract_strided_slice %37 {offsets = [0, 1], sizes = [2, 1], strides = [1, 1]} : vector<2x2xf32> to vector<2x1xf32>
    %44 = vector.extract_strided_slice %22 {offsets = [1, 0], sizes = [1, 512], strides = [1, 1]} : vector<2x512xf32> to vector<1x512xf32>
    %45 = vector.broadcast %43 : vector<2x1xf32> to vector<2x512xf32>
    %46 = vector.broadcast %44 : vector<1x512xf32> to vector<2x512xf32>
    %47 = arith.mulf %45, %46 : vector<2x512xf32>
    %48 = arith.addf %42, %47 : vector<2x512xf32>
    %49 = arith.addf %36, %48 : vector<2x512xf32>
    %c0_12 = arith.constant 0 : index
    %c0_13 = arith.constant 0 : index
    %c0_14 = arith.constant 0 : index
    %50 = vector.load %arg8[%c0_12, %c0_13, %c0_14] : memref<1x2x3xf32, #tpu.memory_space<vmem>>, vector<1x2x3xf32>
    %51 = vector.shape_cast %50 : vector<1x2x3xf32> to vector<2x3xf32>
    %52 = vector.extract_strided_slice %51 {offsets = [0, 0], sizes = [2, 1], strides = [1, 1]} : vector<2x3xf32> to vector<2x1xf32>
    %53 = vector.extract_strided_slice %51 {offsets = [0, 1], sizes = [2, 1], strides = [1, 1]} : vector<2x3xf32> to vector<2x1xf32>
    %54 = vector.extract_strided_slice %51 {offsets = [0, 2], sizes = [1, 1], strides = [1, 1]} : vector<2x3xf32> to vector<1x1xf32>
    %cst_15 = arith.constant dense<0.000000e+00> : vector<2xf32>
    %55 = vector.multi_reduction <add>, %49, %cst_15 [1] : vector<2x512xf32> to vector<2xf32>
    %56 = vector.shape_cast %55 : vector<2xf32> to vector<2x1xf32>
    %cst_16 = arith.constant 0.001953125 : f32
    %57 = vector.broadcast %cst_16 : f32 to vector<2x1xf32>
    %58 = arith.mulf %56, %57 : vector<2x1xf32>
    %59 = arith.mulf %49, %49 : vector<2x512xf32>
    %cst_17 = arith.constant dense<0.000000e+00> : vector<2xf32>
    %60 = vector.multi_reduction <add>, %59, %cst_17 [1] : vector<2x512xf32> to vector<2xf32>
    %61 = vector.shape_cast %60 : vector<2xf32> to vector<2x1xf32>
    %cst_18 = arith.constant 0.001953125 : f32
    %62 = vector.broadcast %cst_18 : f32 to vector<2x1xf32>
    %63 = arith.mulf %61, %62 : vector<2x1xf32>
    %64 = arith.mulf %58, %58 : vector<2x1xf32>
    %65 = arith.subf %63, %64 : vector<2x1xf32>
    %cst_19 = arith.constant 9.99999974E-6 : f32
    %66 = vector.broadcast %cst_19 : f32 to vector<2x1xf32>
    %67 = arith.addf %65, %66 : vector<2x1xf32>
    %68 = math.rsqrt %67 : vector<2x1xf32>
    %69 = arith.mulf %68, %52 : vector<2x1xf32>
    %70 = vector.broadcast %58 : vector<2x1xf32> to vector<2x512xf32>
    %71 = arith.subf %49, %70 : vector<2x512xf32>
    %72 = vector.broadcast %69 : vector<2x1xf32> to vector<2x512xf32>
    %73 = arith.mulf %71, %72 : vector<2x512xf32>
    %74 = vector.broadcast %53 : vector<2x1xf32> to vector<2x512xf32>
    %75 = arith.addf %73, %74 : vector<2x512xf32>
    %cst_20 = arith.constant 0.000000e+00 : f32
    %76 = vector.broadcast %cst_20 : f32 to vector<2x512xf32>
    %77 = arith.maximumf %75, %76 : vector<2x512xf32>
    %c0_21 = arith.constant 0 : index
    %c0_22 = arith.constant 0 : index
    %c0_23 = arith.constant 0 : index
    %78 = vector.load %arg7[%c0_21, %c0_22, %c0_23] : memref<1x2x18xf32, #tpu.memory_space<vmem>>, vector<1x2x18xf32>
    %79 = vector.shape_cast %78 : vector<1x2x18xf32> to vector<2x18xf32>
    %cst_24 = arith.constant 0.000000e+00 : f32
    %80 = vector.broadcast %cst_24 : f32 to vector<2x512xf32>
    %c17_i32 = arith.constant 17 : i32
    %81 = tpu.dynamic_rotate %77 by %c17_i32 dim 1 : vector<2x512xf32>, i32 -> vector<2x512xf32>
    %82 = vector.extract_strided_slice %79 {offsets = [0, 0], sizes = [2, 2], strides = [1, 1]} : vector<2x18xf32> to vector<2x2xf32>
    %83 = vector.extract_strided_slice %82 {offsets = [0, 0], sizes = [2, 1], strides = [1, 1]} : vector<2x2xf32> to vector<2x1xf32>
    %84 = vector.extract_strided_slice %81 {offsets = [0, 0], sizes = [1, 512], strides = [1, 1]} : vector<2x512xf32> to vector<1x512xf32>
    %85 = vector.broadcast %83 : vector<2x1xf32> to vector<2x512xf32>
    %86 = vector.broadcast %84 : vector<1x512xf32> to vector<2x512xf32>
    %87 = arith.mulf %85, %86 : vector<2x512xf32>
    %88 = vector.extract_strided_slice %82 {offsets = [0, 1], sizes = [2, 1], strides = [1, 1]} : vector<2x2xf32> to vector<2x1xf32>
    %89 = vector.extract_strided_slice %81 {offsets = [1, 0], sizes = [1, 512], strides = [1, 1]} : vector<2x512xf32> to vector<1x512xf32>
    %90 = vector.broadcast %88 : vector<2x1xf32> to vector<2x512xf32>
    %91 = vector.broadcast %89 : vector<1x512xf32> to vector<2x512xf32>
    %92 = arith.mulf %90, %91 : vector<2x512xf32>
    %93 = arith.addf %87, %92 : vector<2x512xf32>
    %94 = vector.extract_strided_slice %0 {offsets = [3, 0], sizes = [1, 512], strides = [1, 1]} : vector<12x512xf32> to vector<1x512xf32>
    %95 = vector.broadcast %94 : vector<1x512xf32> to vector<2x512xf32>
    %96 = arith.mulf %93, %95 : vector<2x512xf32>
    %97 = arith.addf %80, %96 : vector<2x512xf32>
    %c16_i32 = arith.constant 16 : i32
    %98 = tpu.dynamic_rotate %77 by %c16_i32 dim 1 : vector<2x512xf32>, i32 -> vector<2x512xf32>
    %99 = vector.extract_strided_slice %79 {offsets = [0, 2], sizes = [2, 2], strides = [1, 1]} : vector<2x18xf32> to vector<2x2xf32>
    %100 = vector.extract_strided_slice %99 {offsets = [0, 0], sizes = [2, 1], strides = [1, 1]} : vector<2x2xf32> to vector<2x1xf32>
    %101 = vector.extract_strided_slice %98 {offsets = [0, 0], sizes = [1, 512], strides = [1, 1]} : vector<2x512xf32> to vector<1x512xf32>
    %102 = vector.broadcast %100 : vector<2x1xf32> to vector<2x512xf32>
    %103 = vector.broadcast %101 : vector<1x512xf32> to vector<2x512xf32>
    %104 = arith.mulf %102, %103 : vector<2x512xf32>
    %105 = vector.extract_strided_slice %99 {offsets = [0, 1], sizes = [2, 1], strides = [1, 1]} : vector<2x2xf32> to vector<2x1xf32>
    %106 = vector.extract_strided_slice %98 {offsets = [1, 0], sizes = [1, 512], strides = [1, 1]} : vector<2x512xf32> to vector<1x512xf32>
    %107 = vector.broadcast %105 : vector<2x1xf32> to vector<2x512xf32>
    %108 = vector.broadcast %106 : vector<1x512xf32> to vector<2x512xf32>
    %109 = arith.mulf %107, %108 : vector<2x512xf32>
    %110 = arith.addf %104, %109 : vector<2x512xf32>
    %111 = vector.extract_strided_slice %0 {offsets = [4, 0], sizes = [1, 512], strides = [1, 1]} : vector<12x512xf32> to vector<1x512xf32>
    %112 = vector.broadcast %111 : vector<1x512xf32> to vector<2x512xf32>
    %113 = arith.mulf %110, %112 : vector<2x512xf32>
    %114 = arith.addf %97, %113 : vector<2x512xf32>
    %c15_i32 = arith.constant 15 : i32
    %115 = tpu.dynamic_rotate %77 by %c15_i32 dim 1 : vector<2x512xf32>, i32 -> vector<2x512xf32>
    %116 = vector.extract_strided_slice %79 {offsets = [0, 4], sizes = [2, 2], strides = [1, 1]} : vector<2x18xf32> to vector<2x2xf32>
    %117 = vector.extract_strided_slice %116 {offsets = [0, 0], sizes = [2, 1], strides = [1, 1]} : vector<2x2xf32> to vector<2x1xf32>
    %118 = vector.extract_strided_slice %115 {offsets = [0, 0], sizes = [1, 512], strides = [1, 1]} : vector<2x512xf32> to vector<1x512xf32>
    %119 = vector.broadcast %117 : vector<2x1xf32> to vector<2x512xf32>
    %120 = vector.broadcast %118 : vector<1x512xf32> to vector<2x512xf32>
    %121 = arith.mulf %119, %120 : vector<2x512xf32>
    %122 = vector.extract_strided_slice %116 {offsets = [0, 1], sizes = [2, 1], strides = [1, 1]} : vector<2x2xf32> to vector<2x1xf32>
    %123 = vector.extract_strided_slice %115 {offsets = [1, 0], sizes = [1, 512], strides = [1, 1]} : vector<2x512xf32> to vector<1x512xf32>
    %124 = vector.broadcast %122 : vector<2x1xf32> to vector<2x512xf32>
    %125 = vector.broadcast %123 : vector<1x512xf32> to vector<2x512xf32>
    %126 = arith.mulf %124, %125 : vector<2x512xf32>
    %127 = arith.addf %121, %126 : vector<2x512xf32>
    %128 = vector.extract_strided_slice %0 {offsets = [5, 0], sizes = [1, 512], strides = [1, 1]} : vector<12x512xf32> to vector<1x512xf32>
    %129 = vector.broadcast %128 : vector<1x512xf32> to vector<2x512xf32>
    %130 = arith.mulf %127, %129 : vector<2x512xf32>
    %131 = arith.addf %114, %130 : vector<2x512xf32>
    %c1_i32 = arith.constant 1 : i32
    %132 = tpu.dynamic_rotate %77 by %c1_i32 dim 1 : vector<2x512xf32>, i32 -> vector<2x512xf32>
    %133 = vector.extract_strided_slice %79 {offsets = [0, 6], sizes = [2, 2], strides = [1, 1]} : vector<2x18xf32> to vector<2x2xf32>
    %134 = vector.extract_strided_slice %133 {offsets = [0, 0], sizes = [2, 1], strides = [1, 1]} : vector<2x2xf32> to vector<2x1xf32>
    %135 = vector.extract_strided_slice %132 {offsets = [0, 0], sizes = [1, 512], strides = [1, 1]} : vector<2x512xf32> to vector<1x512xf32>
    %136 = vector.broadcast %134 : vector<2x1xf32> to vector<2x512xf32>
    %137 = vector.broadcast %135 : vector<1x512xf32> to vector<2x512xf32>
    %138 = arith.mulf %136, %137 : vector<2x512xf32>
    %139 = vector.extract_strided_slice %133 {offsets = [0, 1], sizes = [2, 1], strides = [1, 1]} : vector<2x2xf32> to vector<2x1xf32>
    %140 = vector.extract_strided_slice %132 {offsets = [1, 0], sizes = [1, 512], strides = [1, 1]} : vector<2x512xf32> to vector<1x512xf32>
    %141 = vector.broadcast %139 : vector<2x1xf32> to vector<2x512xf32>
    %142 = vector.broadcast %140 : vector<1x512xf32> to vector<2x512xf32>
    %143 = arith.mulf %141, %142 : vector<2x512xf32>
    %144 = arith.addf %138, %143 : vector<2x512xf32>
    %145 = vector.extract_strided_slice %0 {offsets = [6, 0], sizes = [1, 512], strides = [1, 1]} : vector<12x512xf32> to vector<1x512xf32>
    %146 = vector.broadcast %145 : vector<1x512xf32> to vector<2x512xf32>
    %147 = arith.mulf %144, %146 : vector<2x512xf32>
    %148 = arith.addf %131, %147 : vector<2x512xf32>
    %149 = vector.extract_strided_slice %79 {offsets = [0, 8], sizes = [2, 2], strides = [1, 1]} : vector<2x18xf32> to vector<2x2xf32>
    %150 = vector.extract_strided_slice %149 {offsets = [0, 0], sizes = [2, 1], strides = [1, 1]} : vector<2x2xf32> to vector<2x1xf32>
    %151 = vector.extract_strided_slice %77 {offsets = [0, 0], sizes = [1, 512], strides = [1, 1]} : vector<2x512xf32> to vector<1x512xf32>
    %152 = vector.broadcast %150 : vector<2x1xf32> to vector<2x512xf32>
    %153 = vector.broadcast %151 : vector<1x512xf32> to vector<2x512xf32>
    %154 = arith.mulf %152, %153 : vector<2x512xf32>
    %155 = vector.extract_strided_slice %149 {offsets = [0, 1], sizes = [2, 1], strides = [1, 1]} : vector<2x2xf32> to vector<2x1xf32>
    %156 = vector.extract_strided_slice %77 {offsets = [1, 0], sizes = [1, 512], strides = [1, 1]} : vector<2x512xf32> to vector<1x512xf32>
    %157 = vector.broadcast %155 : vector<2x1xf32> to vector<2x512xf32>
    %158 = vector.broadcast %156 : vector<1x512xf32> to vector<2x512xf32>
    %159 = arith.mulf %157, %158 : vector<2x512xf32>
    %160 = arith.addf %154, %159 : vector<2x512xf32>
    %161 = vector.extract_strided_slice %0 {offsets = [7, 0], sizes = [1, 512], strides = [1, 1]} : vector<12x512xf32> to vector<1x512xf32>
    %162 = vector.broadcast %161 : vector<1x512xf32> to vector<2x512xf32>
    %163 = arith.mulf %160, %162 : vector<2x512xf32>
    %164 = arith.addf %148, %163 : vector<2x512xf32>
    %c511_i32 = arith.constant 511 : i32
    %165 = tpu.dynamic_rotate %77 by %c511_i32 dim 1 : vector<2x512xf32>, i32 -> vector<2x512xf32>
    %166 = vector.extract_strided_slice %79 {offsets = [0, 10], sizes = [2, 2], strides = [1, 1]} : vector<2x18xf32> to vector<2x2xf32>
    %167 = vector.extract_strided_slice %166 {offsets = [0, 0], sizes = [2, 1], strides = [1, 1]} : vector<2x2xf32> to vector<2x1xf32>
    %168 = vector.extract_strided_slice %165 {offsets = [0, 0], sizes = [1, 512], strides = [1, 1]} : vector<2x512xf32> to vector<1x512xf32>
    %169 = vector.broadcast %167 : vector<2x1xf32> to vector<2x512xf32>
    %170 = vector.broadcast %168 : vector<1x512xf32> to vector<2x512xf32>
    %171 = arith.mulf %169, %170 : vector<2x512xf32>
    %172 = vector.extract_strided_slice %166 {offsets = [0, 1], sizes = [2, 1], strides = [1, 1]} : vector<2x2xf32> to vector<2x1xf32>
    %173 = vector.extract_strided_slice %165 {offsets = [1, 0], sizes = [1, 512], strides = [1, 1]} : vector<2x512xf32> to vector<1x512xf32>
    %174 = vector.broadcast %172 : vector<2x1xf32> to vector<2x512xf32>
    %175 = vector.broadcast %173 : vector<1x512xf32> to vector<2x512xf32>
    %176 = arith.mulf %174, %175 : vector<2x512xf32>
    %177 = arith.addf %171, %176 : vector<2x512xf32>
    %178 = vector.extract_strided_slice %0 {offsets = [8, 0], sizes = [1, 512], strides = [1, 1]} : vector<12x512xf32> to vector<1x512xf32>
    %179 = vector.broadcast %178 : vector<1x512xf32> to vector<2x512xf32>
    %180 = arith.mulf %177, %179 : vector<2x512xf32>
    %181 = arith.addf %164, %180 : vector<2x512xf32>
    %c497_i32 = arith.constant 497 : i32
    %182 = tpu.dynamic_rotate %77 by %c497_i32 dim 1 : vector<2x512xf32>, i32 -> vector<2x512xf32>
    %183 = vector.extract_strided_slice %79 {offsets = [0, 12], sizes = [2, 2], strides = [1, 1]} : vector<2x18xf32> to vector<2x2xf32>
    %184 = vector.extract_strided_slice %183 {offsets = [0, 0], sizes = [2, 1], strides = [1, 1]} : vector<2x2xf32> to vector<2x1xf32>
    %185 = vector.extract_strided_slice %182 {offsets = [0, 0], sizes = [1, 512], strides = [1, 1]} : vector<2x512xf32> to vector<1x512xf32>
    %186 = vector.broadcast %184 : vector<2x1xf32> to vector<2x512xf32>
    %187 = vector.broadcast %185 : vector<1x512xf32> to vector<2x512xf32>
    %188 = arith.mulf %186, %187 : vector<2x512xf32>
    %189 = vector.extract_strided_slice %183 {offsets = [0, 1], sizes = [2, 1], strides = [1, 1]} : vector<2x2xf32> to vector<2x1xf32>
    %190 = vector.extract_strided_slice %182 {offsets = [1, 0], sizes = [1, 512], strides = [1, 1]} : vector<2x512xf32> to vector<1x512xf32>
    %191 = vector.broadcast %189 : vector<2x1xf32> to vector<2x512xf32>
    %192 = vector.broadcast %190 : vector<1x512xf32> to vector<2x512xf32>
    %193 = arith.mulf %191, %192 : vector<2x512xf32>
    %194 = arith.addf %188, %193 : vector<2x512xf32>
    %195 = vector.extract_strided_slice %0 {offsets = [9, 0], sizes = [1, 512], strides = [1, 1]} : vector<12x512xf32> to vector<1x512xf32>
    %196 = vector.broadcast %195 : vector<1x512xf32> to vector<2x512xf32>
    %197 = arith.mulf %194, %196 : vector<2x512xf32>
    %198 = arith.addf %181, %197 : vector<2x512xf32>
    %c496_i32 = arith.constant 496 : i32
    %199 = tpu.dynamic_rotate %77 by %c496_i32 dim 1 : vector<2x512xf32>, i32 -> vector<2x512xf32>
    %200 = vector.extract_strided_slice %79 {offsets = [0, 14], sizes = [2, 2], strides = [1, 1]} : vector<2x18xf32> to vector<2x2xf32>
    %201 = vector.extract_strided_slice %200 {offsets = [0, 0], sizes = [2, 1], strides = [1, 1]} : vector<2x2xf32> to vector<2x1xf32>
    %202 = vector.extract_strided_slice %199 {offsets = [0, 0], sizes = [1, 512], strides = [1, 1]} : vector<2x512xf32> to vector<1x512xf32>
    %203 = vector.broadcast %201 : vector<2x1xf32> to vector<2x512xf32>
    %204 = vector.broadcast %202 : vector<1x512xf32> to vector<2x512xf32>
    %205 = arith.mulf %203, %204 : vector<2x512xf32>
    %206 = vector.extract_strided_slice %200 {offsets = [0, 1], sizes = [2, 1], strides = [1, 1]} : vector<2x2xf32> to vector<2x1xf32>
    %207 = vector.extract_strided_slice %199 {offsets = [1, 0], sizes = [1, 512], strides = [1, 1]} : vector<2x512xf32> to vector<1x512xf32>
    %208 = vector.broadcast %206 : vector<2x1xf32> to vector<2x512xf32>
    %209 = vector.broadcast %207 : vector<1x512xf32> to vector<2x512xf32>
    %210 = arith.mulf %208, %209 : vector<2x512xf32>
    %211 = arith.addf %205, %210 : vector<2x512xf32>
    %212 = vector.extract_strided_slice %0 {offsets = [10, 0], sizes = [1, 512], strides = [1, 1]} : vector<12x512xf32> to vector<1x512xf32>
    %213 = vector.broadcast %212 : vector<1x512xf32> to vector<2x512xf32>
    %214 = arith.mulf %211, %213 : vector<2x512xf32>
    %215 = arith.addf %198, %214 : vector<2x512xf32>
    %c495_i32 = arith.constant 495 : i32
    %216 = tpu.dynamic_rotate %77 by %c495_i32 dim 1 : vector<2x512xf32>, i32 -> vector<2x512xf32>
    %217 = vector.extract_strided_slice %79 {offsets = [0, 16], sizes = [2, 2], strides = [1, 1]} : vector<2x18xf32> to vector<2x2xf32>
    %218 = vector.extract_strided_slice %217 {offsets = [0, 0], sizes = [2, 1], strides = [1, 1]} : vector<2x2xf32> to vector<2x1xf32>
    %219 = vector.extract_strided_slice %216 {offsets = [0, 0], sizes = [1, 512], strides = [1, 1]} : vector<2x512xf32> to vector<1x512xf32>
    %220 = vector.broadcast %218 : vector<2x1xf32> to vector<2x512xf32>
    %221 = vector.broadcast %219 : vector<1x512xf32> to vector<2x512xf32>
    %222 = arith.mulf %220, %221 : vector<2x512xf32>
    %223 = vector.extract_strided_slice %217 {offsets = [0, 1], sizes = [2, 1], strides = [1, 1]} : vector<2x2xf32> to vector<2x1xf32>
    %224 = vector.extract_strided_slice %216 {offsets = [1, 0], sizes = [1, 512], strides = [1, 1]} : vector<2x512xf32> to vector<1x512xf32>
    %225 = vector.broadcast %223 : vector<2x1xf32> to vector<2x512xf32>
    %226 = vector.broadcast %224 : vector<1x512xf32> to vector<2x512xf32>
    %227 = arith.mulf %225, %226 : vector<2x512xf32>
    %228 = arith.addf %222, %227 : vector<2x512xf32>
    %229 = vector.extract_strided_slice %0 {offsets = [11, 0], sizes = [1, 512], strides = [1, 1]} : vector<12x512xf32> to vector<1x512xf32>
    %230 = vector.broadcast %229 : vector<1x512xf32> to vector<2x512xf32>
    %231 = arith.mulf %228, %230 : vector<2x512xf32>
    %232 = arith.addf %215, %231 : vector<2x512xf32>
    %233 = vector.extract_strided_slice %232 {offsets = [0, 0], sizes = [1, 512], strides = [1, 1]} : vector<2x512xf32> to vector<1x512xf32>
    %cst_25 = arith.constant 6.250000e-02 : f32
    %234 = vector.broadcast %cst_25 : f32 to vector<1x512xf32>
    %235 = arith.mulf %233, %234 : vector<1x512xf32>
    %236 = arith.addf %1, %235 : vector<1x512xf32>
    %237 = vector.extract_strided_slice %232 {offsets = [1, 0], sizes = [1, 512], strides = [1, 1]} : vector<2x512xf32> to vector<1x512xf32>
    %cst_26 = arith.constant 6.250000e-02 : f32
    %238 = vector.broadcast %cst_26 : f32 to vector<1x512xf32>
    %239 = arith.mulf %237, %238 : vector<1x512xf32>
    %240 = arith.addf %2, %239 : vector<1x512xf32>
    %cst_27 = arith.constant 1.000000e+00 : f32
    %241 = vector.broadcast %cst_27 : f32 to vector<1x512xf32>
    %242 = arith.addf %236, %241 : vector<1x512xf32>
    %cst_28 = arith.constant 1.600000e+01 : f32
    %243 = vector.broadcast %cst_28 : f32 to vector<1x512xf32>
    %244 = arith.mulf %242, %243 : vector<1x512xf32>
    %cst_29 = arith.constant 1.000000e+00 : f32
    %245 = vector.broadcast %cst_29 : f32 to vector<1x512xf32>
    %246 = arith.subf %244, %245 : vector<1x512xf32>
    %cst_30 = arith.constant 5.000000e-01 : f32
    %247 = vector.broadcast %cst_30 : f32 to vector<1x512xf32>
    %248 = arith.mulf %246, %247 : vector<1x512xf32>
    %cst_31 = arith.constant 1.000000e+00 : f32
    %249 = vector.broadcast %cst_31 : f32 to vector<1x512xf32>
    %250 = arith.addf %240, %249 : vector<1x512xf32>
    %cst_32 = arith.constant 1.600000e+01 : f32
    %251 = vector.broadcast %cst_32 : f32 to vector<1x512xf32>
    %252 = arith.mulf %250, %251 : vector<1x512xf32>
    %cst_33 = arith.constant 1.000000e+00 : f32
    %253 = vector.broadcast %cst_33 : f32 to vector<1x512xf32>
    %254 = arith.subf %252, %253 : vector<1x512xf32>
    %cst_34 = arith.constant 5.000000e-01 : f32
    %255 = vector.broadcast %cst_34 : f32 to vector<1x512xf32>
    %256 = arith.mulf %254, %255 : vector<1x512xf32>
    %257 = math.floor %248 : vector<1x512xf32>
    %258 = math.floor %256 : vector<1x512xf32>
    %259 = arith.subf %248, %257 : vector<1x512xf32>
    %cst_35 = arith.constant 1.000000e+00 : f32
    %260 = vector.broadcast %cst_35 : f32 to vector<1x512xf32>
    %261 = arith.subf %260, %259 : vector<1x512xf32>
    %262 = arith.subf %256, %258 : vector<1x512xf32>
    %cst_36 = arith.constant 1.000000e+00 : f32
    %263 = vector.broadcast %cst_36 : f32 to vector<1x512xf32>
    %264 = arith.subf %263, %262 : vector<1x512xf32>
    %cst_37 = arith.constant 0.000000e+00 : f32
    %265 = vector.broadcast %cst_37 : f32 to vector<1x512xf32>
    %266 = arith.cmpf oge, %257, %265 : vector<1x512xf32>
    %cst_38 = arith.constant 1.500000e+01 : f32
    %267 = vector.broadcast %cst_38 : f32 to vector<1x512xf32>
    %268 = arith.cmpf ole, %257, %267 : vector<1x512xf32>
    %269 = arith.andi %266, %268 : vector<1x512xi1>
    %cst_39 = arith.constant -1.000000e+00 : f32
    %270 = vector.broadcast %cst_39 : f32 to vector<1x512xf32>
    %271 = arith.cmpf oge, %257, %270 : vector<1x512xf32>
    %cst_40 = arith.constant 1.400000e+01 : f32
    %272 = vector.broadcast %cst_40 : f32 to vector<1x512xf32>
    %273 = arith.cmpf ole, %257, %272 : vector<1x512xf32>
    %274 = arith.andi %271, %273 : vector<1x512xi1>
    %cst_41 = arith.constant 0.000000e+00 : f32
    %275 = vector.broadcast %cst_41 : f32 to vector<1x512xf32>
    %276 = arith.cmpf oge, %258, %275 : vector<1x512xf32>
    %cst_42 = arith.constant 1.500000e+01 : f32
    %277 = vector.broadcast %cst_42 : f32 to vector<1x512xf32>
    %278 = arith.cmpf ole, %258, %277 : vector<1x512xf32>
    %279 = arith.andi %276, %278 : vector<1x512xi1>
    %cst_43 = arith.constant -1.000000e+00 : f32
    %280 = vector.broadcast %cst_43 : f32 to vector<1x512xf32>
    %281 = arith.cmpf oge, %258, %280 : vector<1x512xf32>
    %cst_44 = arith.constant 1.400000e+01 : f32
    %282 = vector.broadcast %cst_44 : f32 to vector<1x512xf32>
    %283 = arith.cmpf ole, %258, %282 : vector<1x512xf32>
    %284 = arith.andi %281, %283 : vector<1x512xi1>
    %285 = arith.andi %279, %269 : vector<1x512xi1>
    %286 = arith.mulf %264, %261 : vector<1x512xf32>
    %cst_45 = arith.constant 0.000000e+00 : f32
    %287 = vector.broadcast %cst_45 : f32 to vector<1x512xf32>
    %288 = arith.select %285, %286, %287 : vector<1x512xi1>, vector<1x512xf32>
    %289 = arith.andi %279, %274 : vector<1x512xi1>
    %290 = arith.mulf %264, %259 : vector<1x512xf32>
    %cst_46 = arith.constant 0.000000e+00 : f32
    %291 = vector.broadcast %cst_46 : f32 to vector<1x512xf32>
    %292 = arith.select %289, %290, %291 : vector<1x512xi1>, vector<1x512xf32>
    %293 = arith.andi %284, %269 : vector<1x512xi1>
    %294 = arith.mulf %262, %261 : vector<1x512xf32>
    %cst_47 = arith.constant 0.000000e+00 : f32
    %295 = vector.broadcast %cst_47 : f32 to vector<1x512xf32>
    %296 = arith.select %293, %294, %295 : vector<1x512xi1>, vector<1x512xf32>
    %297 = arith.andi %284, %274 : vector<1x512xi1>
    %298 = arith.mulf %262, %259 : vector<1x512xf32>
    %cst_48 = arith.constant 0.000000e+00 : f32
    %299 = vector.broadcast %cst_48 : f32 to vector<1x512xf32>
    %300 = arith.select %297, %298, %299 : vector<1x512xi1>, vector<1x512xf32>
    %cst_49 = arith.constant 1.600000e+01 : f32
    %301 = vector.broadcast %cst_49 : f32 to vector<1x512xf32>
    %302 = arith.mulf %258, %301 : vector<1x512xf32>
    %303 = arith.addf %3, %302 : vector<1x512xf32>
    %304 = arith.addf %303, %257 : vector<1x512xf32>
    %cst_50 = arith.constant 0.000000e+00 : f32
    %305 = vector.broadcast %cst_50 : f32 to vector<1x512xf32>
    %306 = arith.cmpf olt, %304, %305 : vector<1x512xf32>
    %cst_51 = arith.constant 5.120000e+02 : f32
    %307 = vector.broadcast %cst_51 : f32 to vector<1x512xf32>
    %308 = arith.addf %304, %307 : vector<1x512xf32>
    %309 = arith.select %306, %308, %304 : vector<1x512xi1>, vector<1x512xf32>
    %310 = arith.fptosi %309 : vector<1x512xf32> to vector<1x512xi32>
    %311 = tpu.iota {dimensions = array<i32: 0>} : vector<512x512xi32>
    %312 = vector.broadcast %310 : vector<1x512xi32> to vector<512x512xi32>
    %313 = arith.cmpi eq, %311, %312 : vector<512x512xi32>
    %314 = arith.extui %313 : vector<512x512xi1> to vector<512x512xi32>
    %315 = arith.sitofp %314 : vector<512x512xi32> to vector<512x512xf32>
    %316 = vector.broadcast %54 : vector<1x1xf32> to vector<2x512xf32>
    %317 = arith.mulf %22, %316 : vector<2x512xf32>
    %cst_52 = arith.constant 1.000000e+00 : f32
    %318 = vector.broadcast %cst_52 : f32 to vector<1x1xf32>
    %319 = arith.subf %318, %54 : vector<1x1xf32>
    %320 = vector.broadcast %319 : vector<1x1xf32> to vector<2x512xf32>
    %321 = arith.mulf %16, %320 : vector<2x512xf32>
    %322 = arith.addf %317, %321 : vector<2x512xf32>
    %c511_i32_53 = arith.constant 511 : i32
    %323 = tpu.dynamic_rotate %322 by %c511_i32_53 dim 1 : vector<2x512xf32>, i32 -> vector<2x512xf32>
    %c496_i32_54 = arith.constant 496 : i32
    %324 = tpu.dynamic_rotate %322 by %c496_i32_54 dim 1 : vector<2x512xf32>, i32 -> vector<2x512xf32>
    %c495_i32_55 = arith.constant 495 : i32
    %325 = tpu.dynamic_rotate %322 by %c495_i32_55 dim 1 : vector<2x512xf32>, i32 -> vector<2x512xf32>
    %326 = tpu.concatenate %322, %323, %324, %325 in 0 : vector<2x512xf32>, vector<2x512xf32>, vector<2x512xf32>, vector<2x512xf32> -> vector<8x512xf32>
    %cst_56 = arith.constant dense<0.000000e+00> : vector<8x512xf32>
    %327 = tpu.matmul %326, %315, %cst_56 {dimension_numbers = #tpu.dot_dimension_numbers<[1], [0], [0], [1], [0, 0, 1, 1], [], []>} : vector<8x512xf32>, vector<512x512xf32>, vector<8x512xf32> -> vector<8x512xf32>
    %328 = vector.extract_strided_slice %327 {offsets = [0, 0], sizes = [2, 512], strides = [1, 1]} : vector<8x512xf32> to vector<2x512xf32>
    %329 = vector.broadcast %288 : vector<1x512xf32> to vector<2x512xf32>
    %330 = arith.mulf %328, %329 : vector<2x512xf32>
    %331 = vector.extract_strided_slice %327 {offsets = [2, 0], sizes = [2, 512], strides = [1, 1]} : vector<8x512xf32> to vector<2x512xf32>
    %332 = vector.broadcast %292 : vector<1x512xf32> to vector<2x512xf32>
    %333 = arith.mulf %331, %332 : vector<2x512xf32>
    %334 = arith.addf %330, %333 : vector<2x512xf32>
    %335 = vector.extract_strided_slice %327 {offsets = [4, 0], sizes = [2, 512], strides = [1, 1]} : vector<8x512xf32> to vector<2x512xf32>
    %336 = vector.broadcast %296 : vector<1x512xf32> to vector<2x512xf32>
    %337 = arith.mulf %335, %336 : vector<2x512xf32>
    %338 = arith.addf %334, %337 : vector<2x512xf32>
    %339 = vector.extract_strided_slice %327 {offsets = [6, 0], sizes = [2, 512], strides = [1, 1]} : vector<8x512xf32> to vector<2x512xf32>
    %340 = vector.broadcast %300 : vector<1x512xf32> to vector<2x512xf32>
    %341 = arith.mulf %339, %340 : vector<2x512xf32>
    %342 = arith.addf %338, %341 : vector<2x512xf32>
    %c0_57 = arith.constant 0 : index
    %c0_58 = arith.constant 0 : index
    %c0_59 = arith.constant 0 : index
    %343 = vector.load %arg9[%c0_57, %c0_58, %c0_59] : memref<1x2x512xf32, #tpu.memory_space<vmem>>, vector<1x2x512xf32>
    %344 = vector.shape_cast %343 : vector<1x2x512xf32> to vector<2x512xf32>
    %345 = vector.shape_cast %342 : vector<2x512xf32> to vector<1x2x512xf32>
    tpu.vector_store %arg9[%c0_57, %c0_58, %c0_59], %345 {strides = array<i32>} : memref<1x2x512xf32, #tpu.memory_space<vmem>>, vector<1x2x512xf32>,
    return
  }
  func.func @transform_0(%arg0: i32) -> (i32, i32) {
    %c0_i32 = arith.constant 0 : i32
    %c0_i32_0 = arith.constant 0 : i32
    %c0_i32_1 = arith.constant 0 : i32
    return %c0_i32, %c0_i32_0 : i32, i32
  }
  func.func @transform_1(%arg0: i32) -> (i32, i32) {
    %c0_i32 = arith.constant 0 : i32
    %c0_i32_0 = arith.constant 0 : i32
    %c0_i32_1 = arith.constant 0 : i32
    return %c0_i32, %c0_i32_0 : i32, i32
  }
  func.func @transform_2(%arg0: i32) -> (i32, i32) {
    %c0_i32 = arith.constant 0 : i32
    %c0_i32_0 = arith.constant 0 : i32
    %c0_i32_1 = arith.constant 0 : i32
    return %c0_i32, %c0_i32_0 : i32, i32
  }
  func.func @transform_3(%arg0: i32) -> (i32, i32) {
    %c0_i32 = arith.constant 0 : i32
    %c0_i32_0 = arith.constant 0 : i32
    %c0_i32_1 = arith.constant 0 : i32
    return %c0_i32, %c0_i32_0 : i32, i32
  }
  func.func @transform_4(%arg0: i32) -> (i32, i32) {
    %c0_i32 = arith.constant 0 : i32
    %c0_i32_0 = arith.constant 0 : i32
    %c0_i32_1 = arith.constant 0 : i32
    return %c0_i32, %c0_i32_0 : i32, i32
  }
  func.func @transform_5(%arg0: i32) -> (i32, i32, i32) {
    %c0_i32 = arith.constant 0 : i32
    %c0_i32_0 = arith.constant 0 : i32
    %c0_i32_1 = arith.constant 0 : i32
    return %arg0, %c0_i32, %c0_i32_0 : i32, i32, i32
  }
  func.func @transform_6(%arg0: i32) -> (i32, i32, i32) {
    %c0_i32 = arith.constant 0 : i32
    %c0_i32_0 = arith.constant 0 : i32
    %c0_i32_1 = arith.constant 0 : i32
    return %arg0, %c0_i32, %c0_i32_0 : i32, i32, i32
  }
  func.func @transform_7(%arg0: i32) -> (i32, i32, i32) {
    %c0_i32 = arith.constant 0 : i32
    %c0_i32_0 = arith.constant 0 : i32
    %c0_i32_1 = arith.constant 0 : i32
    return %arg0, %c0_i32, %c0_i32_0 : i32, i32, i32
  }
  func.func @transform_8(%arg0: i32) -> (i32, i32, i32) {
    %c0_i32 = arith.constant 0 : i32
    %c0_i32_0 = arith.constant 0 : i32
    %c0_i32_1 = arith.constant 0 : i32
    return %arg0, %c0_i32, %c0_i32_0 : i32, i32, i32
  }
}

</mosaic_0001>

<llo_original>
// kernel: tpu_custom_call.1
$region0: #{tpu_custom_call.1}
  #allocation0 [shape = 'u32[]', space=smem, size = 0x4, offset = 0x4, fixed_abs, tag = 'smem constant byte address 0x4 - core index']
  #allocation1 [shape = 'u32[72,128]{1,0:T(1,128)}', space=vmem, size = 0x9000, scoped, tag = 'internal scratch']
  %s0 = inlined_call_operand.hbm [shape: f32[2,512], index: 0, kind: input, shape index: {}]
  %s1 = inlined_call_operand.hbm [shape: f32[4,64], index: 1, kind: input, shape index: {}]
  %s2 = inlined_call_operand.hbm [shape: f32[64,256], index: 2, kind: input, shape index: {}]
  %s3 = inlined_call_operand.hbm [shape: f32[12,512], index: 3, kind: input, shape index: {}]
  %s4 = inlined_call_operand.hbm [shape: f32[2,2], index: 4, kind: input, shape index: {}]
  %s5 = inlined_call_operand.vmem [shape: f32[2,2,4], index: 5, kind: input, shape index: {}]
  %s6 = inlined_call_operand.hbm [shape: f32[2,2,18], index: 6, kind: input, shape index: {}]
  %s7 = inlined_call_operand.hbm [shape: f32[2,2,3], index: 7, kind: input, shape index: {}]
  %s8 = inlined_call_operand.hbm [shape: f32[2,2,512], index: 8, kind: output, shape index: {}]
  %s9 = sld [smem:[#allocation0]]
  $region93: #{tpu_custom_call.1} parent=0
    _
  %s11 = ssub.s32 1, %s9
  %s12 = scalar_select 0, %s11, %s9
  $region1: #{tpu_custom_call.1} parent=0
    #allocation2 [shape = 'u8[4096]{0}', space=vmem, size = 0x1000, scoped, tag = 'input window, operand 0, single buffered']
    #allocation3 [shape = 's32[2]{0}', space=sflag, size = 0x8, scoped, tag = 'scoped memory for tpu_custom_call.1']
    #allocation4 [shape = 's32[2]{0}', space=sflag, size = 0x8, scoped, tag = 'scoped memory for tpu_custom_call.1']
    #allocation5 [shape = 'u8[2048]{0}', space=vmem, size = 0x800, scoped, tag = 'input window, operand 1, single buffered']
    #allocation6 [shape = 's32[1]{0}', space=sflag, size = 0x4, scoped, tag = 'scoped memory for tpu_custom_call.1']
    #allocation7 [shape = 'u8[65536]{0}', space=vmem, size = 0x10000, scoped, tag = 'input window, operand 2, single buffered']
    #allocation8 [shape = 'u8[32768]{0}', space=vmem, size = 0x8000, scoped, tag = 'input window, operand 3, single buffered']
    #allocation9 [shape = 's32[1]{0}', space=sflag, size = 0x4, scoped, tag = 'scoped memory for tpu_custom_call.1']
    #allocation10 [shape = 'u8[1024]{0}', space=vmem, size = 0x400, scoped, tag = 'input window, operand 4, single buffered']
    #allocation11 [shape = 'u8[2048]{0}', space=vmem, size = 0x800, scoped, tag = 'input window, operand 6']
    #allocation12 [shape = 's32[2]{0}', space=sflag, size = 0x8, scoped, tag = 'scoped memory for tpu_custom_call.1']
    #allocation13 [shape = 'u8[2048]{0}', space=vmem, size = 0x800, scoped, tag = 'input window, operand 7']
    #allocation14 [shape = 'u8[8192]{0}', space=vmem, size = 0x2000, scoped, tag = 'output window, operand 0']
    %13 = vsyncpa [#allocation3], 0
    %14 = vsyncpa [#allocation6], 0
    %15 = vsyncpa [#allocation9], 0
    %16 = vsyncpa [#allocation12], 0
    %s17 = scalar_lea.sflag [#allocation12], 1
    %18 = vsyncpa %s17, 0
    %19 = vsyncpa [#allocation4], 0
    %s20 = scalar_lea.sflag [#allocation4], 1
    %21 = vsyncpa %s20, 0
    loop: start=0, step=1, limit=4
    $region2: #{tpu_custom_call.1} parent=1 // loop_pre_header
      _
    $region3: #{tpu_custom_call.1} parent=1 // loop_header
      %s23 = sphi 0, %s27
      %p24 = scmp.ge.s32.totalorder %s23, 4
      %s31 = sphi 0, %s31
      %s33 = sphi 0, %s31
      %s34 = sphi 0, %s33
      %s48 = sphi 0, %s34
      %s52 = sphi 0, %s52
      %s54 = sphi 0, %s52
      %s55 = sphi 0, %s54
      %s69 = sphi 0, %s55
      %s73 = sphi 0, %s73
      %s75 = sphi 0, %s73
      %s76 = sphi 0, %s75
      %s90 = sphi 0, %s76
      %s94 = sphi 0, %s94
      %s96 = sphi 0, %s94
      %s97 = sphi 0, %s96
      %s111 = sphi 0, %s97
      %s115 = sphi 0, %s115
      %s117 = sphi 0, %s115
      %s118 = sphi 0, %s117
      %s132 = sphi 0, %s118
      %s138 = sphi 0, %s140
      %s141 = sphi 0, %s138
      %s142 = sphi 0, %s141
      %s158 = sphi 0, %s142
      %s164 = sphi 0, %s166
      %s167 = sphi 0, %s164
      %s168 = sphi 0, %s167
      %s184 = sphi 0, %s168
      %s190 = sphi 0, %s192
      %s193 = sphi 0, %s190
      %s194 = sphi 0, %s193
      %s210 = sphi 0, %s194
      %s216 = sphi 0, %s218
      %s219 = sphi 0, %s216
      %s220 = sphi 0, %s219
      %s236 = sphi 0, %s220
    $region4: #{tpu_custom_call.1} parent=1 // loop_header_branch
      %26 = sbr.rel (%p24) target = $region8
    $region5: #{tpu_custom_call.1} parent=1 // loop_body
      %s28 = ssub.s32 %s23, 1
      %s29 = ssub.s32 %s23, 2
      %s30 = sadd.s32 %s23, 1
      %s32 = sadd.s32 %s31, 1
      %p35 = scmp.eq.s32.totalorder %s23, 1
      %p36 = scmp.ne.s32.totalorder %s31, %s33
      %p37 = scmp.eq.s32.totalorder %s23, 0
      %p38 = por %p36, %p37
      %p39 = scmp.ne.s32.totalorder %s31, %s33
      %p40 = scmp.eq.s32.totalorder %s28, 1
      %p41 = por %p39, %p40
      %p42 = scmp.ne.s32.totalorder %s33, %s34
      %p43 = scmp.eq.s32.totalorder %s28, 0
      %p44 = por %p42, %p43
      %p45 = scmp.ne.s32.totalorder %s33, %s34
      %p46 = scmp.eq.s32.totalorder %s29, 1
      %p47 = por %p45, %p46
      %p49 = scmp.ne.s32.totalorder %s34, %s48
      %p50 = scmp.eq.s32.totalorder %s29, 0
      %p51 = por %p49, %p50
      %s53 = sadd.s32 %s52, 1
      %p56 = scmp.eq.s32.totalorder %s23, 1
      %p57 = scmp.ne.s32.totalorder %s52, %s54
      %p58 = scmp.eq.s32.totalorder %s23, 0
      %p59 = por %p57, %p58
      %p60 = scmp.ne.s32.totalorder %s52, %s54
      %p61 = scmp.eq.s32.totalorder %s28, 1
      %p62 = por %p60, %p61
      %p63 = scmp.ne.s32.totalorder %s54, %s55
      %p64 = scmp.eq.s32.totalorder %s28, 0
      %p65 = por %p63, %p64
      %p66 = scmp.ne.s32.totalorder %s54, %s55
      %p67 = scmp.eq.s32.totalorder %s29, 1
      %p68 = por %p66, %p67
      %p70 = scmp.ne.s32.totalorder %s55, %s69
      %p71 = scmp.eq.s32.totalorder %s29, 0
      %p72 = por %p70, %p71
      %s74 = sadd.s32 %s73, 1
      %p77 = scmp.eq.s32.totalorder %s23, 1
      %p78 = scmp.ne.s32.totalorder %s73, %s75
      %p79 = scmp.eq.s32.totalorder %s23, 0
      %p80 = por %p78, %p79
      %p81 = scmp.ne.s32.totalorder %s73, %s75
      %p82 = scmp.eq.s32.totalorder %s28, 1
      %p83 = por %p81, %p82
      %p84 = scmp.ne.s32.totalorder %s75, %s76
      %p85 = scmp.eq.s32.totalorder %s28, 0
      %p86 = por %p84, %p85
      %p87 = scmp.ne.s32.totalorder %s75, %s76
      %p88 = scmp.eq.s32.totalorder %s29, 1
      %p89 = por %p87, %p88
      %p91 = scmp.ne.s32.totalorder %s76, %s90
      %p92 = scmp.eq.s32.totalorder %s29, 0
      %p93 = por %p91, %p92
      %s95 = sadd.s32 %s94, 1
      %p98 = scmp.eq.s32.totalorder %s23, 1
      %p99 = scmp.ne.s32.totalorder %s94, %s96
      %p100 = scmp.eq.s32.totalorder %s23, 0
      %p101 = por %p99, %p100
      %p102 = scmp.ne.s32.totalorder %s94, %s96
      %p103 = scmp.eq.s32.totalorder %s28, 1
      %p104 = por %p102, %p103
      %p105 = scmp.ne.s32.totalorder %s96, %s97
      %p106 = scmp.eq.s32.totalorder %s28, 0
      %p107 = por %p105, %p106
      %p108 = scmp.ne.s32.totalorder %s96, %s97
      %p109 = scmp.eq.s32.totalorder %s29, 1
      %p110 = por %p108, %p109
      %p112 = scmp.ne.s32.totalorder %s97, %s111
      %p113 = scmp.eq.s32.totalorder %s29, 0
      %p114 = por %p112, %p113
      %s116 = sadd.s32 %s115, 1
      %p119 = scmp.eq.s32.totalorder %s23, 1
      %p120 = scmp.ne.s32.totalorder %s115, %s117
      %p121 = scmp.eq.s32.totalorder %s23, 0
      %p122 = por %p120, %p121
      %p123 = scmp.ne.s32.totalorder %s115, %s117
      %p124 = scmp.eq.s32.totalorder %s28, 1
      %p125 = por %p123, %p124
      %p126 = scmp.ne.s32.totalorder %s117, %s118
      %p127 = scmp.eq.s32.totalorder %s28, 0
      %p128 = por %p126, %p127
      %p129 = scmp.ne.s32.totalorder %s117, %s118
      %p130 = scmp.eq.s32.totalorder %s29, 1
      %p131 = por %p129, %p130
      %p133 = scmp.ne.s32.totalorder %s118, %s132
      %p134 = scmp.eq.s32.totalorder %s29, 0
      %p135 = por %p133, %p134
      %s136 = ssub.s32 %s23, %s30
      %p137 = scmp.eq.s32.totalorder %s136, 0
      %s139 = sadd.s32 %s138, 1
      %s140 = scalar_select %p137, %s138, %s139
      %p143 = pneg %p137
      %p144 = scmp.eq.s32.totalorder %s23, 1
      %p145 = por %p143, %p144
      %p146 = scmp.ne.s32.totalorder %s138, %s141
      %p147 = scmp.eq.s32.totalorder %s23, 0
      %p148 = por %p146, %p147
      %p149 = scmp.ne.s32.totalorder %s138, %s141
      %p150 = scmp.eq.s32.totalorder %s28, 1
      %p151 = por %p149, %p150
      %p152 = scmp.ne.s32.totalorder %s141, %s142
      %p153 = scmp.eq.s32.totalorder %s28, 0
      %p154 = por %p152, %p153
      %p155 = scmp.ne.s32.totalorder %s141, %s142
      %p156 = scmp.eq.s32.totalorder %s29, 1
      %p157 = por %p155, %p156
      %p159 = scmp.ne.s32.totalorder %s142, %s158
      %p160 = scmp.eq.s32.totalorder %s29, 0
      %p161 = por %p159, %p160
      %s162 = ssub.s32 %s23, %s30
      %p163 = scmp.eq.s32.totalorder %s162, 0
      %s165 = sadd.s32 %s164, 1
      %s166 = scalar_select %p163, %s164, %s165
      %p169 = pneg %p163
      %p170 = scmp.eq.s32.totalorder %s23, 1
      %p171 = por %p169, %p170
      %p172 = scmp.ne.s32.totalorder %s164, %s167
      %p173 = scmp.eq.s32.totalorder %s23, 0
      %p174 = por %p172, %p173
      %p175 = scmp.ne.s32.totalorder %s164, %s167
      %p176 = scmp.eq.s32.totalorder %s28, 1
      %p177 = por %p175, %p176
      %p178 = scmp.ne.s32.totalorder %s167, %s168
      %p179 = scmp.eq.s32.totalorder %s28, 0
      %p180 = por %p178, %p179
      %p181 = scmp.ne.s32.totalorder %s167, %s168
      %p182 = scmp.eq.s32.totalorder %s29, 1
      %p183 = por %p181, %p182
      %p185 = scmp.ne.s32.totalorder %s168, %s184
      %p186 = scmp.eq.s32.totalorder %s29, 0
      %p187 = por %p185, %p186
      %s188 = ssub.s32 %s23, %s30
      %p189 = scmp.eq.s32.totalorder %s188, 0
      %s191 = sadd.s32 %s190, 1
      %s192 = scalar_select %p189, %s190, %s191
      %p195 = pneg %p189
      %p196 = scmp.eq.s32.totalorder %s23, 1
      %p197 = por %p195, %p196
      %p198 = scmp.ne.s32.totalorder %s190, %s193
      %p199 = scmp.eq.s32.totalorder %s23, 0
      %p200 = por %p198, %p199
      %p201 = scmp.ne.s32.totalorder %s190, %s193
      %p202 = scmp.eq.s32.totalorder %s28, 1
      %p203 = por %p201, %p202
      %p204 = scmp.ne.s32.totalorder %s193, %s194
      %p205 = scmp.eq.s32.totalorder %s28, 0
      %p206 = por %p204, %p205
      %p207 = scmp.ne.s32.totalorder %s193, %s194
      %p208 = scmp.eq.s32.totalorder %s29, 1
      %p209 = por %p207, %p208
      %p211 = scmp.ne.s32.totalorder %s194, %s210
      %p212 = scmp.eq.s32.totalorder %s29, 0
      %p213 = por %p211, %p212
      %s214 = ssub.s32 %s23, %s30
      %p215 = scmp.eq.s32.totalorder %s214, 0
      %s217 = sadd.s32 %s216, 1
      %s218 = scalar_select %p215, %s216, %s217
      %p221 = pneg %p215
      %p222 = scmp.eq.s32.totalorder %s23, 1
      %p223 = por %p221, %p222
      %p224 = scmp.ne.s32.totalorder %s216, %s219
      %p225 = scmp.eq.s32.totalorder %s23, 0
      %p226 = por %p224, %p225
      %p227 = scmp.ne.s32.totalorder %s216, %s219
      %p228 = scmp.eq.s32.totalorder %s28, 1
      %p229 = por %p227, %p228
      %p230 = scmp.ne.s32.totalorder %s219, %s220
      %p231 = scmp.eq.s32.totalorder %s28, 0
      %p232 = por %p230, %p231
      %p233 = scmp.ne.s32.totalorder %s219, %s220
      %p234 = scmp.eq.s32.totalorder %s29, 1
      %p235 = por %p233, %p234
      %p237 = scmp.ne.s32.totalorder %s220, %s236
      %p238 = scmp.eq.s32.totalorder %s29, 0
      %p239 = por %p237, %p238
      %p240 = scmp.le.s32.totalorder 1, %s23
      %p241 = scmp.lt.s32.totalorder %s23, 3
      %p242 = pnand %p240, %p241
      %p243 = pneg %p242
      // Predicated region
      $region9: #{tpu_custom_call.1} parent=5 // pred_check
        _
      $region10: #{tpu_custom_call.1} parent=5 // pred_check_branch
        %245 = sbr.rel (%p242) target = $region12
      $region11: #{tpu_custom_call.1} parent=5 // pred_region
        %s246 = ssub.s32 %s23, 1
        // Predicated region
        $region13: #{tpu_custom_call.1} parent=11 // pred_check
          %p247 = pneg %p44
        $region14: #{tpu_custom_call.1} parent=11 // pred_check_branch
          %249 = sbr.rel (%p247) target = $region16
        $region15: #{tpu_custom_call.1} parent=11 // pred_region
          %251 = vsyncadd [#allocation3], 0
          %s253 = sshll.u32 %s0, 4
          %s254 = int_to_ptr.hbm [resolvable:$true] %s253
          %s255 = sshll.u32 [#allocation2], 4
          %s256 = int_to_ptr.vmem [resolvable:$true] %s255
          %258 = dma.hbm_to_vmem [thread:$0]  %s254, 128, %s256, [#allocation3]
        $region16: #{tpu_custom_call.1} parent=11 // pred_fallthru
          _
        // Predicated region
        $region17: #{tpu_custom_call.1} parent=11 // pred_check
          %p259 = pneg %p65
        $region18: #{tpu_custom_call.1} parent=11 // pred_check_branch
          %261 = sbr.rel (%p259) target = $region20
        $region19: #{tpu_custom_call.1} parent=11 // pred_region
          %263 = vsyncadd [#allocation6], 0
          %s265 = sshll.u32 %s1, 4
          %s266 = int_to_ptr.hbm [resolvable:$true] %s265
          %s267 = sshll.u32 [#allocation5], 4
          %s268 = int_to_ptr.vmem [resolvable:$true] %s267
          %270 = dma.hbm_to_vmem [thread:$0]  %s266, 64, %s268, [#allocation6]
        $region20: #{tpu_custom_call.1} parent=11 // pred_fallthru
          _
        // Predicated region
        $region21: #{tpu_custom_call.1} parent=11 // pred_check
          %p271 = pneg %p86
        $region22: #{tpu_custom_call.1} parent=11 // pred_check_branch
          %273 = sbr.rel (%p271) target = $region24
        $region23: #{tpu_custom_call.1} parent=11 // pred_region
          %275 = vsyncadd [#allocation6], 0
          %s276 = sshll.u32 %s2, 4
          %s277 = int_to_ptr.hbm [resolvable:$true] %s276
          %s278 = sshll.u32 [#allocation7], 4
          %s279 = int_to_ptr.vmem [resolvable:$true] %s278
          %284 = dma.hbm_to_vmem [thread:$0]  %s277, 2048, %s279, [#allocation6], 256, 256, 16
        $region24: #{tpu_custom_call.1} parent=11 // pred_fallthru
          _
        // Predicated region
        $region25: #{tpu_custom_call.1} parent=11 // pred_check
          %p285 = pneg %p107
        $region26: #{tpu_custom_call.1} parent=11 // pred_check_branch
          %287 = sbr.rel (%p285) target = $region28
        $region27: #{tpu_custom_call.1} parent=11 // pred_region
          %289 = vsyncadd [#allocation9], 0
          %s290 = sshll.u32 %s3, 4
          %s291 = int_to_ptr.hbm [resolvable:$true] %s290
          %s292 = sshll.u32 [#allocation8], 4
          %s293 = int_to_ptr.vmem [resolvable:$true] %s292
          %298 = dma.hbm_to_vmem [thread:$0]  %s291, 1024, %s293, [#allocation9], 512, 512, 32
        $region28: #{tpu_custom_call.1} parent=11 // pred_fallthru
          _
        // Predicated region
        $region29: #{tpu_custom_call.1} parent=11 // pred_check
          %p299 = pneg %p128
        $region30: #{tpu_custom_call.1} parent=11 // pred_check_branch
          %301 = sbr.rel (%p299) target = $region32
        $region31: #{tpu_custom_call.1} parent=11 // pred_region
          %303 = vsyncadd [#allocation9], 0
          %s305 = sshll.u32 %s4, 4
          %s306 = int_to_ptr.hbm [resolvable:$true] %s305
          %s307 = sshll.u32 [#allocation10], 4
          %s308 = int_to_ptr.vmem [resolvable:$true] %s307
          %310 = dma.hbm_to_vmem [thread:$0]  %s306, 32, %s308, [#allocation9]
        $region32: #{tpu_custom_call.1} parent=11 // pred_fallthru
          _
      $region12: #{tpu_custom_call.1} parent=5 // pred_fallthru
        _
      %p311 = scmp.lt.s32.totalorder %s23, 2
      // Predicated region
      $region33: #{tpu_custom_call.1} parent=5 // pred_check
        %p312 = pneg %p311
      $region34: #{tpu_custom_call.1} parent=5 // pred_check_branch
        %314 = sbr.rel (%p312) target = $region36
      $region35: #{tpu_custom_call.1} parent=5 // pred_region
        // Predicated region
        $region37: #{tpu_custom_call.1} parent=35 // pred_check
          %p315 = pneg %p148
        $region38: #{tpu_custom_call.1} parent=35 // pred_check_branch
          %317 = sbr.rel (%p315) target = $region40
        $region39: #{tpu_custom_call.1} parent=35 // pred_region
          %p318 = scmp.lt.s32.totalorder %s23, 1
          %s319 = scalar_select %p318, %s23, 1
          %s320 = smul.addr %s319, 2
          %s321 = scalar_lea.vmem %s5, %s320
        $region40: #{tpu_custom_call.1} parent=35 // pred_fallthru
          _
        // Predicated region
        $region41: #{tpu_custom_call.1} parent=35 // pred_check
          %p322 = pneg %p174
        $region42: #{tpu_custom_call.1} parent=35 // pred_check_branch
          %324 = sbr.rel (%p322) target = $region44
        $region43: #{tpu_custom_call.1} parent=35 // pred_region
          %s325 = sand.u32 %s23, 1
          %s326 = scalar_lea.sflag [#allocation12], %s325
          %s327 = sand.u32 %s164, 1
          %s328 = smul.addr %s327, 2
          %s329 = scalar_lea.vmem [#allocation11], %s328
          %331 = vsyncadd %s326, 0
          %s332 = smul.addr %s23, 2
          %s333 = scalar_lea.hbm %s6, %s332
          %s335 = sshll.u32 %s333, 4
          %s336 = int_to_ptr.hbm [resolvable:$true] %s335
          %s337 = sshll.u32 %s329, 4
          %s338 = int_to_ptr.vmem [resolvable:$true] %s337
          %340 = dma.hbm_to_vmem [thread:$0]  %s336, 32, %s338, %s326
        $region44: #{tpu_custom_call.1} parent=35 // pred_fallthru
          _
        // Predicated region
        $region45: #{tpu_custom_call.1} parent=35 // pred_check
          %p341 = pneg %p200
        $region46: #{tpu_custom_call.1} parent=35 // pred_check_branch
          %343 = sbr.rel (%p341) target = $region48
        $region47: #{tpu_custom_call.1} parent=35 // pred_region
          %s344 = sand.u32 %s23, 1
          %s345 = scalar_lea.sflag [#allocation12], %s344
          %s346 = sand.u32 %s190, 1
          %s347 = smul.addr %s346, 2
          %s348 = scalar_lea.vmem [#allocation13], %s347
          %350 = vsyncadd %s345, 0
          %s351 = smul.addr %s23, 2
          %s352 = scalar_lea.hbm %s7, %s351
          %s354 = sshll.u32 %s352, 4
          %s355 = int_to_ptr.hbm [resolvable:$true] %s354
          %s356 = sshll.u32 %s348, 4
          %s357 = int_to_ptr.vmem [resolvable:$true] %s356
          %359 = dma.hbm_to_vmem [thread:$0]  %s355, 32, %s357, %s345
        $region48: #{tpu_custom_call.1} parent=35 // pred_fallthru
          _
      $region36: #{tpu_custom_call.1} parent=5 // pred_fallthru
        _
      %p360 = scmp.le.s32.totalorder 1, %s23
      %p361 = scmp.lt.s32.totalorder %s23, 3
      %p362 = pnand %p360, %p361
      %p363 = pneg %p362
      // Predicated region
      $region49: #{tpu_custom_call.1} parent=5 // pred_check
        _
      $region50: #{tpu_custom_call.1} parent=5 // pred_check_branch
        %365 = sbr.rel (%p362) target = $region52
      $region51: #{tpu_custom_call.1} parent=5 // pred_region
        %s366 = ssub.s32 %s23, 1
        // Predicated region
        $region53: #{tpu_custom_call.1} parent=51 // pred_check
          %p367 = pneg %p44
        $region54: #{tpu_custom_call.1} parent=51 // pred_check_branch
          %369 = sbr.rel (%p367) target = $region56
        $region55: #{tpu_custom_call.1} parent=51 // pred_region
          %371 = dma.done [#allocation3], 128
        $region56: #{tpu_custom_call.1} parent=51 // pred_fallthru
          _
        // Predicated region
        $region57: #{tpu_custom_call.1} parent=51 // pred_check
          %p372 = pneg %p65
        $region58: #{tpu_custom_call.1} parent=51 // pred_check_branch
          %374 = sbr.rel (%p372) target = $region60
        $region59: #{tpu_custom_call.1} parent=51 // pred_region
          %376 = dma.done [#allocation6], 64
        $region60: #{tpu_custom_call.1} parent=51 // pred_fallthru
          _
        // Predicated region
        $region61: #{tpu_custom_call.1} parent=51 // pred_check
          %p377 = pneg %p86
        $region62: #{tpu_custom_call.1} parent=51 // pred_check_branch
          %379 = sbr.rel (%p377) target = $region64
        $region63: #{tpu_custom_call.1} parent=51 // pred_region
          %381 = dma.done [#allocation6], 2048
        $region64: #{tpu_custom_call.1} parent=51 // pred_fallthru
          _
        // Predicated region
        $region65: #{tpu_custom_call.1} parent=51 // pred_check
          %p382 = pneg %p107
        $region66: #{tpu_custom_call.1} parent=51 // pred_check_branch
          %384 = sbr.rel (%p382) target = $region68
        $region67: #{tpu_custom_call.1} parent=51 // pred_region
          %386 = dma.done [#allocation9], 1024
        $region68: #{tpu_custom_call.1} parent=51 // pred_fallthru
          _
        // Predicated region
        $region69: #{tpu_custom_call.1} parent=51 // pred_check
          %p387 = pneg %p128
        $region70: #{tpu_custom_call.1} parent=51 // pred_check_branch
          %389 = sbr.rel (%p387) target = $region72
        $region71: #{tpu_custom_call.1} parent=51 // pred_region
          %391 = dma.done [#allocation9], 32
        $region72: #{tpu_custom_call.1} parent=51 // pred_fallthru
          _
        %s392 = sand.u32 %s28, 1
        %s393 = scalar_lea.sflag [#allocation12], %s392
        %s394 = sand.u32 %s167, 1
        %s395 = smul.addr %s394, 2
        %s396 = scalar_lea.vmem [#allocation11], %s395
        // Predicated region
        $region73: #{tpu_custom_call.1} parent=51 // pred_check
          %p397 = pneg %p180
        $region74: #{tpu_custom_call.1} parent=51 // pred_check_branch
          %399 = sbr.rel (%p397) target = $region76
        $region75: #{tpu_custom_call.1} parent=51 // pred_region
          %401 = dma.done %s393, 32
        $region76: #{tpu_custom_call.1} parent=51 // pred_fallthru
          _
        %s402 = sand.u32 %s28, 1
        %s403 = scalar_lea.sflag [#allocation12], %s402
        %s404 = sand.u32 %s193, 1
        %s405 = smul.addr %s404, 2
        %s406 = scalar_lea.vmem [#allocation13], %s405
        // Predicated region
        $region77: #{tpu_custom_call.1} parent=51 // pred_check
          %p407 = pneg %p206
        $region78: #{tpu_custom_call.1} parent=51 // pred_check_branch
          %409 = sbr.rel (%p407) target = $region80
        $region79: #{tpu_custom_call.1} parent=51 // pred_region
          %411 = dma.done %s403, 32
        $region80: #{tpu_custom_call.1} parent=51 // pred_fallthru
          _
        %p412 = pneg %p44
        %p413 = pneg %p41
        %p414 = pneg %p65
        %p415 = pneg %p62
        %p416 = pneg %p86
        %p417 = pneg %p83
        %p418 = pneg %p107
        %p419 = pneg %p104
        %p420 = pneg %p128
        %p421 = pneg %p125
        %p422 = scmp.lt.s32.totalorder %s28, 1
        %s423 = scalar_select %p422, %s28, 1
        %s424 = smul.addr %s423, 2
        %s425 = scalar_lea.vmem %s5, %s424
        %p426 = pneg %p154
        %p427 = pneg %p151
        %s428 = sand.u32 %s28, 1
        %s429 = scalar_lea.sflag [#allocation12], %s428
        %s430 = sand.u32 %s167, 1
        %s431 = smul.addr %s430, 2
        %s432 = scalar_lea.vmem [#allocation11], %s431
        %p433 = pneg %p180
        %p434 = pneg %p177
        %s435 = sand.u32 %s28, 1
        %s436 = scalar_lea.sflag [#allocation12], %s435
        %s437 = sand.u32 %s193, 1
        %s438 = smul.addr %s437, 2
        %s439 = scalar_lea.vmem [#allocation13], %s438
        %p440 = pneg %p206
        %p441 = pneg %p203
        %p442 = pneg %p232
        %p443 = pneg %p229
        %s444 = sand.u32 %s219, 1
        %s445 = scalar_lea.sflag [#allocation4], %s444
        %s446 = sand.u32 %s219, 1
        %s447 = smul.addr %s446, 8
        %s448 = scalar_lea.vmem [#allocation14], %s447
        %p449 = scmp.lt.s32.totalorder %s28, 1
        %s450 = scalar_select %p449, %s28, 1
        %s451 = smul.addr %s450, 2
        %s452 = scalar_lea.vmem %s5, %s451
        %v453 = vld [vmem:[#allocation8] sm:$0xff]
        %v454 = vld [vmem:[#allocation8 + $0x8] sm:$0xff]
        %v455 = vld [vmem:[#allocation8 + $0x10] sm:$0xff]
        %v456 = vld [vmem:[#allocation8 + $0x18] sm:$0xff]
        %v457 = vld [vmem:[#allocation8 + $0x20] sm:$0xf]
        %v458 = vld [vmem:[#allocation8 + $0x28] sm:$0xf]
        %v459 = vld [vmem:[#allocation8 + $0x30] sm:$0xf]
        %v460 = vld [vmem:[#allocation8 + $0x38] sm:$0xf]
        %v461 = vld [vmem:[#allocation10] sm:$0x3]
        %v462 = vld [vmem:[#allocation2] sm:$0xff]
        %464 = vset.pattern.permute.xlu0 0
        %465 = vperm.xlu0 %464, %v461
        %v466 = vpop.permute.xlu0 %465
        %v469 = vperm.slane %v462, 0
        %v470 = vperm.slane %v462, 2
        %v471 = vperm.slane %v462, 4
        %v472 = vperm.slane %v462, 6
        %v477 = vperm.slane %v469, 0
        %v478 = vperm.slane %v470, 0
        %v479 = vperm.slane %v471, 0
        %v480 = vperm.slane %v472, 0
        %v481 = vmul.f32 %v466, %v477
        %v482 = vmul.f32 %v466, %v478
        %v483 = vmul.f32 %v466, %v479
        %v484 = vmul.f32 %v466, %v480
        %485 = vset.pattern.permute.xlu0 1
        %486 = vperm.xlu0 %485, %v461
        %v487 = vpop.permute.xlu0 %486
        %v489 = vperm.slane %v462, 1
        %v490 = vperm.slane %v462, 3
        %v491 = vperm.slane %v462, 5
        %v492 = vperm.slane %v462, 7
        %v497 = vperm.slane %v489, 1
        %v498 = vperm.slane %v490, 1
        %v499 = vperm.slane %v491, 1
        %v500 = vperm.slane %v492, 1
        %v501 = vmul.f32 %v487, %v497
        %v502 = vmul.f32 %v487, %v498
        %v503 = vmul.f32 %v487, %v499
        %v504 = vmul.f32 %v487, %v500
        %v505 = vadd.f32 %v481, %v501
        %v506 = vadd.f32 %v482, %v502
        %v507 = vadd.f32 %v483, %v503
        %v508 = vadd.f32 %v484, %v504
        %v509 = vld [vmem:[#allocation5] sm:$0xf]
        %v510 = vld [vmem:[#allocation7] sm:$0xff]
        %v511 = vld [vmem:[#allocation7 + $0x8] sm:$0xff]
        %v512 = vld [vmem:[#allocation7 + $0x10] sm:$0xff]
        %v513 = vld [vmem:[#allocation7 + $0x18] sm:$0xff]
        %v514 = vld [vmem:[#allocation7 + $0x20] sm:$0xff]
        %v515 = vld [vmem:[#allocation7 + $0x28] sm:$0xff]
        %v516 = vld [vmem:[#allocation7 + $0x30] sm:$0xff]
        %v517 = vld [vmem:[#allocation7 + $0x38] sm:$0xff]
        %v518 = vld [vmem:[#allocation7 + $0x40] sm:$0xff]
        %v519 = vld [vmem:[#allocation7 + $0x48] sm:$0xff]
        %v520 = vld [vmem:[#allocation7 + $0x50] sm:$0xff]
        %v521 = vld [vmem:[#allocation7 + $0x58] sm:$0xff]
        %v522 = vld [vmem:[#allocation7 + $0x60] sm:$0xff]
        %v523 = vld [vmem:[#allocation7 + $0x68] sm:$0xff]
        %v524 = vld [vmem:[#allocation7 + $0x70] sm:$0xff]
        %v525 = vld [vmem:[#allocation7 + $0x78] sm:$0xff]
        %vm526 = vcmask 523264
        %v528 = vsel %vm526, %v509, 0
        %530 = vmatpush.msra.mxu0 0.0
        %531 = vmatpush.msra.mxu0 0.0
        %532 = vmatpush.msra.mxu0 0.0
        %533 = vmatpush.msra.mxu0 0.0
        %534 = vmatpush.msra.mxu0 0.0
        %535 = vmatpush.msra.mxu0 0.0
        %536 = vmatpush.msra.mxu0 0.0
        %537 = vmatpush.msra.mxu0 0.0
        %538 = vmatpush.msra.mxu0 %v524
        %539 = vmatpush.msra.mxu0 %v522
        %540 = vmatpush.msra.mxu0 %v520
        %541 = vmatpush.msra.mxu0 %v518
        %542 = vmatpush.msra.mxu0 %v516
        %543 = vmatpush.msra.mxu0 %v514
        %544 = vmatpush.msra.mxu0 %v512
        %545 = vmatpush.msra.mxu0 %v510
        %546 = vmatmul.f32.gmra.mxu0 %v528
        %v547 = vpop.f32.mrf.mxu0
        %v548 = vadd.f32 0.0, %v547
        %549 = vdwg.mxu0
        %550 = vmatpush.msra.mxu0 0.0
        %551 = vmatpush.msra.mxu0 0.0
        %552 = vmatpush.msra.mxu0 0.0
        %553 = vmatpush.msra.mxu0 0.0
        %554 = vmatpush.msra.mxu0 0.0
        %555 = vmatpush.msra.mxu0 0.0
        %556 = vmatpush.msra.mxu0 0.0
        %557 = vmatpush.msra.mxu0 0.0
        %558 = vmatpush.msra.mxu0 %v525
        %559 = vmatpush.msra.mxu0 %v523
        %560 = vmatpush.msra.mxu0 %v521
        %561 = vmatpush.msra.mxu0 %v519
        %562 = vmatpush.msra.mxu0 %v517
        %563 = vmatpush.msra.mxu0 %v515
        %564 = vmatpush.msra.mxu0 %v513
        %565 = vmatpush.msra.mxu0 %v511
        %566 = vmatmul.f32.gmra.mxu0 %v528
        %v567 = vpop.f32.mrf.mxu0
        %v568 = vadd.f32 0.0, %v567
        %569 = vdwg.mxu0
        %v572 = vrot.slane %v548, 2
        %v573 = vrot.slane %v568, 2
        %v576 = vld [vmem:[%s452] sm:$0x3]
        %578 = vset.pattern.permute.xlu0 0
        %579 = vperm.xlu0 %578, %v576
        %v580 = vpop.permute.xlu0 %579
        %v582 = vperm.slane %v505, 0
        %v583 = vperm.slane %v506, 0
        %v584 = vperm.slane %v507, 0
        %v585 = vperm.slane %v508, 0
        %v586 = vmul.f32 %v580, %v582
        %v587 = vmul.f32 %v580, %v583
        %v588 = vmul.f32 %v580, %v584
        %v589 = vmul.f32 %v580, %v585
        %590 = vset.pattern.permute.xlu0 1
        %591 = vperm.xlu0 %590, %v576
        %v592 = vpop.permute.xlu0 %591
        %v594 = vperm.slane %v505, 1
        %v595 = vperm.slane %v506, 1
        %v596 = vperm.slane %v507, 1
        %v597 = vperm.slane %v508, 1
        %v598 = vmul.f32 %v592, %v594
        %v599 = vmul.f32 %v592, %v595
        %v600 = vmul.f32 %v592, %v596
        %v601 = vmul.f32 %v592, %v597
        %v602 = vadd.f32 %v586, %v598
        %v603 = vadd.f32 %v587, %v599
        %v604 = vadd.f32 %v588, %v600
        %v605 = vadd.f32 %v589, %v601
        %606 = vset.pattern.permute.xlu0 2
        %607 = vperm.xlu0 %606, %v576
        %v608 = vpop.permute.xlu0 %607
        %v610 = vperm.slane %v548, 0
        %v611 = vperm.slane %v568, 0
        %v612 = vperm.slane %v572, 0
        %v613 = vperm.slane %v573, 0
        %v614 = vmul.f32 %v608, %v610
        %v615 = vmul.f32 %v608, %v611
        %v616 = vmul.f32 %v608, %v612
        %v617 = vmul.f32 %v608, %v613
        %618 = vset.pattern.permute.xlu0 3
        %619 = vperm.xlu0 %618, %v576
        %v620 = vpop.permute.xlu0 %619
        %v622 = vperm.slane %v548, 1
        %v623 = vperm.slane %v568, 1
        %v624 = vperm.slane %v572, 1
        %v625 = vperm.slane %v573, 1
        %v626 = vmul.f32 %v620, %v622
        %v627 = vmul.f32 %v620, %v623
        %v628 = vmul.f32 %v620, %v624
        %v629 = vmul.f32 %v620, %v625
        %v630 = vadd.f32 %v614, %v626
        %v631 = vadd.f32 %v615, %v627
        %v632 = vadd.f32 %v616, %v628
        %v633 = vadd.f32 %v617, %v629
        %v634 = vadd.f32 %v602, %v630
        %v635 = vadd.f32 %v603, %v631
        %v636 = vadd.f32 %v604, %v632
        %v637 = vadd.f32 %v605, %v633
        %v638 = vld [vmem:[%s406] sm:$0x3]
        %vm639 = vcmask 1041408
        %v640 = vsel %vm639, %v634, 0.0
        %v641 = vsel %vm639, %v635, 0.0
        %v642 = vadd.f32 %v640, %v641
        %v643 = vsel %vm639, %v636, 0.0
        %v644 = vadd.f32 %v642, %v643
        %v645 = vsel %vm639, %v637, 0.0
        %v646 = vadd.f32 %v644, %v645
        %647 = vadd.xlane.f32.xlu0 %v646
        %v648 = vpop.xlane.xlu0 %647
        %v649 = vmul.f32 %v648, 0.001953125
        %v650 = vmul.f32 %v634, %v634
        %v651 = vmul.f32 %v635, %v635
        %v652 = vmul.f32 %v636, %v636
        %v653 = vmul.f32 %v637, %v637
        %v654 = vsel %vm639, %v650, 0.0
        %v655 = vsel %vm639, %v651, 0.0
        %v656 = vadd.f32 %v654, %v655
        %v657 = vsel %vm639, %v652, 0.0
        %v658 = vadd.f32 %v656, %v657
        %v659 = vsel %vm639, %v653, 0.0
        %v660 = vadd.f32 %v658, %v659
        %661 = vadd.xlane.f32.xlu0 %v660
        %v662 = vpop.xlane.xlu0 %661
        %v663 = vmul.f32 %v662, 0.001953125
        %v664 = vmul.f32 %v649, %v649
        %v665 = vsub.f32 %v663, %v664
        %v666 = vadd.f32 %v665, 1e-05
        %v667 = vrsqrt.pop %v666
        %v668 = vmul.f32 %v667, %v666
        %v669 = vmul.f32 %v668, %v667
        %v670 = vmul.f32 0.5, %v669
        %v671 = vsub.f32 1.5, %v670
        %v672 = vmul.f32 %v667, %v671
        %vm673 = vweird.f32 %v666
        %vm674 = vweird.f32 %v667
        %vm675 = vmor %vm673, %vm674
        %v676 = vsel %vm675, %v667, %v672
        %v677 = vmul.f32 %v676, %v638
        %v678 = vsub.f32 %v634, %v649
        %v679 = vsub.f32 %v635, %v649
        %v680 = vsub.f32 %v636, %v649
        %v681 = vsub.f32 %v637, %v649
        %683 = vset.pattern.permute.xlu0 0
        %684 = vperm.xlu0 %683, %v677
        %v685 = vpop.permute.xlu0 %684
        %v687 = vmul.f32 %v678, %v685
        %v688 = vmul.f32 %v679, %v685
        %v689 = vmul.f32 %v680, %v685
        %v690 = vmul.f32 %v681, %v685
        %692 = vset.pattern.permute.xlu0 1
        %693 = vperm.xlu0 %692, %v638
        %v694 = vpop.permute.xlu0 %693
        %v696 = vadd.f32 %v687, %v694
        %v697 = vadd.f32 %v688, %v694
        %v698 = vadd.f32 %v689, %v694
        %v699 = vadd.f32 %v690, %v694
        %v700 = vmax.f32 %v696, 0.0
        %v701 = vmax.f32 %v697, 0.0
        %v702 = vmax.f32 %v698, 0.0
        %v703 = vmax.f32 %v699, 0.0
        %v704 = vld [vmem:[%s396] sm:$0x3]
        %705 = vrot.lane.b32.xlu0 %v700, 17
        %v706 = vpop.permute.xlu0 %705
        %707 = vrot.lane.b32.xlu0 %v701, 17
        %v708 = vpop.permute.xlu0 %707
        %709 = vrot.lane.b32.xlu0 %v702, 17
        %v710 = vpop.permute.xlu0 %709
        %711 = vrot.lane.b32.xlu0 %v703, 17
        %v712 = vpop.permute.xlu0 %711
        %v713 = vlaneseq
        %v714 = vand.u32 %v713, 127
        %vm715 = vcmp.lt.s32.totalorder %v714, 17
        %v716 = vsel %vm715, %v710, %v712
        %v717 = vsel %vm715, %v708, %v710
        %v718 = vsel %vm715, %v706, %v708
        %v719 = vsel %vm715, %v712, %v706
        %721 = vset.pattern.permute.xlu0 0
        %722 = vperm.xlu0 %721, %v704
        %v723 = vpop.permute.xlu0 %722
        %v725 = vperm.slane %v719, 0
        %v726 = vperm.slane %v718, 0
        %v727 = vperm.slane %v717, 0
        %v728 = vperm.slane %v716, 0
        %v729 = vmul.f32 %v723, %v725
        %v730 = vmul.f32 %v723, %v726
        %v731 = vmul.f32 %v723, %v727
        %v732 = vmul.f32 %v723, %v728
        %733 = vset.pattern.permute.xlu0 1
        %734 = vperm.xlu0 %733, %v704
        %v735 = vpop.permute.xlu0 %734
        %v737 = vperm.slane %v719, 1
        %v738 = vperm.slane %v718, 1
        %v739 = vperm.slane %v717, 1
        %v740 = vperm.slane %v716, 1
        %v741 = vmul.f32 %v735, %v737
        %v742 = vmul.f32 %v735, %v738
        %v743 = vmul.f32 %v735, %v739
        %v744 = vmul.f32 %v735, %v740
        %v745 = vadd.f32 %v729, %v741
        %v746 = vadd.f32 %v730, %v742
        %v747 = vadd.f32 %v731, %v743
        %v748 = vadd.f32 %v732, %v744
        %v749 = vperm.slane %v453, 3
        %v750 = vperm.slane %v454, 3
        %v751 = vperm.slane %v455, 3
        %v752 = vperm.slane %v456, 3
        %v753 = vmul.f32 %v745, %v749
        %v754 = vmul.f32 %v746, %v750
        %v755 = vmul.f32 %v747, %v751
        %v756 = vmul.f32 %v748, %v752
        %v757 = vadd.f32 %v753, 0.0
        %v758 = vadd.f32 %v754, 0.0
        %v759 = vadd.f32 %v755, 0.0
        %v760 = vadd.f32 %v756, 0.0
        %761 = vrot.lane.b32.xlu0 %v700, 16
        %v762 = vpop.permute.xlu0 %761
        %763 = vrot.lane.b32.xlu0 %v701, 16
        %v764 = vpop.permute.xlu0 %763
        %765 = vrot.lane.b32.xlu0 %v702, 16
        %v766 = vpop.permute.xlu0 %765
        %767 = vrot.lane.b32.xlu0 %v703, 16
        %v768 = vpop.permute.xlu0 %767
        %vm769 = vcmp.lt.s32.totalorder %v714, 16
        %v770 = vsel %vm769, %v766, %v768
        %v771 = vsel %vm769, %v764, %v766
        %v772 = vsel %vm769, %v762, %v764
        %v773 = vsel %vm769, %v768, %v762
        %774 = vset.pattern.permute.xlu0 2
        %775 = vperm.xlu0 %774, %v704
        %v776 = vpop.permute.xlu0 %775
        %v778 = vperm.slane %v773, 0
        %v779 = vperm.slane %v772, 0
        %v780 = vperm.slane %v771, 0
        %v781 = vperm.slane %v770, 0
        %v782 = vmul.f32 %v776, %v778
        %v783 = vmul.f32 %v776, %v779
        %v784 = vmul.f32 %v776, %v780
        %v785 = vmul.f32 %v776, %v781
        %786 = vset.pattern.permute.xlu0 3
        %787 = vperm.xlu0 %786, %v704
        %v788 = vpop.permute.xlu0 %787
        %v790 = vperm.slane %v773, 1
        %v791 = vperm.slane %v772, 1
        %v792 = vperm.slane %v771, 1
        %v793 = vperm.slane %v770, 1
        %v794 = vmul.f32 %v788, %v790
        %v795 = vmul.f32 %v788, %v791
        %v796 = vmul.f32 %v788, %v792
        %v797 = vmul.f32 %v788, %v793
        %v798 = vadd.f32 %v782, %v794
        %v799 = vadd.f32 %v783, %v795
        %v800 = vadd.f32 %v784, %v796
        %v801 = vadd.f32 %v785, %v797
        %v802 = vperm.slane %v453, 4
        %v803 = vperm.slane %v454, 4
        %v804 = vperm.slane %v455, 4
        %v805 = vperm.slane %v456, 4
        %v806 = vmul.f32 %v798, %v802
        %v807 = vmul.f32 %v799, %v803
        %v808 = vmul.f32 %v800, %v804
        %v809 = vmul.f32 %v801, %v805
        %v810 = vadd.f32 %v757, %v806
        %v811 = vadd.f32 %v758, %v807
        %v812 = vadd.f32 %v759, %v808
        %v813 = vadd.f32 %v760, %v809
        %814 = vrot.lane.b32.xlu0 %v700, 15
        %v815 = vpop.permute.xlu0 %814
        %816 = vrot.lane.b32.xlu0 %v701, 15
        %v817 = vpop.permute.xlu0 %816
        %818 = vrot.lane.b32.xlu0 %v702, 15
        %v819 = vpop.permute.xlu0 %818
        %820 = vrot.lane.b32.xlu0 %v703, 15
        %v821 = vpop.permute.xlu0 %820
        %vm822 = vcmp.lt.s32.totalorder %v714, 15
        %v823 = vsel %vm822, %v819, %v821
        %v824 = vsel %vm822, %v817, %v819
        %v825 = vsel %vm822, %v815, %v817
        %v826 = vsel %vm822, %v821, %v815
        %827 = vset.pattern.permute.xlu0 4
        %828 = vperm.xlu0 %827, %v704
        %v829 = vpop.permute.xlu0 %828
        %v831 = vperm.slane %v826, 0
        %v832 = vperm.slane %v825, 0
        %v833 = vperm.slane %v824, 0
        %v834 = vperm.slane %v823, 0
        %v835 = vmul.f32 %v829, %v831
        %v836 = vmul.f32 %v829, %v832
        %v837 = vmul.f32 %v829, %v833
        %v838 = vmul.f32 %v829, %v834
        %839 = vset.pattern.permute.xlu0 5
        %840 = vperm.xlu0 %839, %v704
        %v841 = vpop.permute.xlu0 %840
        %v843 = vperm.slane %v826, 1
        %v844 = vperm.slane %v825, 1
        %v845 = vperm.slane %v824, 1
        %v846 = vperm.slane %v823, 1
        %v847 = vmul.f32 %v841, %v843
        %v848 = vmul.f32 %v841, %v844
        %v849 = vmul.f32 %v841, %v845
        %v850 = vmul.f32 %v841, %v846
        %v851 = vadd.f32 %v835, %v847
        %v852 = vadd.f32 %v836, %v848
        %v853 = vadd.f32 %v837, %v849
        %v854 = vadd.f32 %v838, %v850
        %v855 = vperm.slane %v453, 5
        %v856 = vperm.slane %v454, 5
        %v857 = vperm.slane %v455, 5
        %v858 = vperm.slane %v456, 5
        %v859 = vmul.f32 %v851, %v855
        %v860 = vmul.f32 %v852, %v856
        %v861 = vmul.f32 %v853, %v857
        %v862 = vmul.f32 %v854, %v858
        %v863 = vadd.f32 %v810, %v859
        %v864 = vadd.f32 %v811, %v860
        %v865 = vadd.f32 %v812, %v861
        %v866 = vadd.f32 %v813, %v862
        %867 = vrot.lane.b32.xlu0 %v700, 1
        %v868 = vpop.permute.xlu0 %867
        %869 = vrot.lane.b32.xlu0 %v701, 1
        %v870 = vpop.permute.xlu0 %869
        %871 = vrot.lane.b32.xlu0 %v702, 1
        %v872 = vpop.permute.xlu0 %871
        %873 = vrot.lane.b32.xlu0 %v703, 1
        %v874 = vpop.permute.xlu0 %873
        %vm875 = vcmp.lt.s32.totalorder %v714, 1
        %v876 = vsel %vm875, %v872, %v874
        %v877 = vsel %vm875, %v870, %v872
        %v878 = vsel %vm875, %v868, %v870
        %v879 = vsel %vm875, %v874, %v868
        %880 = vset.pattern.permute.xlu0 6
        %881 = vperm.xlu0 %880, %v704
        %v882 = vpop.permute.xlu0 %881
        %v884 = vperm.slane %v879, 0
        %v885 = vperm.slane %v878, 0
        %v886 = vperm.slane %v877, 0
        %v887 = vperm.slane %v876, 0
        %v888 = vmul.f32 %v882, %v884
        %v889 = vmul.f32 %v882, %v885
        %v890 = vmul.f32 %v882, %v886
        %v891 = vmul.f32 %v882, %v887
        %892 = vset.pattern.permute.xlu0 7
        %893 = vperm.xlu0 %892, %v704
        %v894 = vpop.permute.xlu0 %893
        %v896 = vperm.slane %v879, 1
        %v897 = vperm.slane %v878, 1
        %v898 = vperm.slane %v877, 1
        %v899 = vperm.slane %v876, 1
        %v900 = vmul.f32 %v894, %v896
        %v901 = vmul.f32 %v894, %v897
        %v902 = vmul.f32 %v894, %v898
        %v903 = vmul.f32 %v894, %v899
        %v904 = vadd.f32 %v888, %v900
        %v905 = vadd.f32 %v889, %v901
        %v906 = vadd.f32 %v890, %v902
        %v907 = vadd.f32 %v891, %v903
        %v908 = vperm.slane %v453, 6
        %v909 = vperm.slane %v454, 6
        %v910 = vperm.slane %v455, 6
        %v911 = vperm.slane %v456, 6
        %v912 = vmul.f32 %v904, %v908
        %v913 = vmul.f32 %v905, %v909
        %v914 = vmul.f32 %v906, %v910
        %v915 = vmul.f32 %v907, %v911
        %v916 = vadd.f32 %v863, %v912
        %v917 = vadd.f32 %v864, %v913
        %v918 = vadd.f32 %v865, %v914
        %v919 = vadd.f32 %v866, %v915
        %920 = vset.pattern.permute.xlu0 8
        %921 = vperm.xlu0 %920, %v704
        %v922 = vpop.permute.xlu0 %921
        %v924 = vperm.slane %v700, 0
        %v925 = vperm.slane %v701, 0
        %v926 = vperm.slane %v702, 0
        %v927 = vperm.slane %v703, 0
        %v928 = vmul.f32 %v922, %v924
        %v929 = vmul.f32 %v922, %v925
        %v930 = vmul.f32 %v922, %v926
        %v931 = vmul.f32 %v922, %v927
        %932 = vset.pattern.permute.xlu0 9
        %933 = vperm.xlu0 %932, %v704
        %v934 = vpop.permute.xlu0 %933
        %v936 = vperm.slane %v700, 1
        %v937 = vperm.slane %v701, 1
        %v938 = vperm.slane %v702, 1
        %v939 = vperm.slane %v703, 1
        %v940 = vmul.f32 %v934, %v936
        %v941 = vmul.f32 %v934, %v937
        %v942 = vmul.f32 %v934, %v938
        %v943 = vmul.f32 %v934, %v939
        %v944 = vadd.f32 %v928, %v940
        %v945 = vadd.f32 %v929, %v941
        %v946 = vadd.f32 %v930, %v942
        %v947 = vadd.f32 %v931, %v943
        %v948 = vperm.slane %v453, 7
        %v949 = vperm.slane %v454, 7
        %v950 = vperm.slane %v455, 7
        %v951 = vperm.slane %v456, 7
        %v952 = vmul.f32 %v944, %v948
        %v953 = vmul.f32 %v945, %v949
        %v954 = vmul.f32 %v946, %v950
        %v955 = vmul.f32 %v947, %v951
        %v956 = vadd.f32 %v916, %v952
        %v957 = vadd.f32 %v917, %v953
        %v958 = vadd.f32 %v918, %v954
        %v959 = vadd.f32 %v919, %v955
        %960 = vrot.lane.b32.xlu0 %v700, 127
        %v961 = vpop.permute.xlu0 %960
        %962 = vrot.lane.b32.xlu0 %v701, 127
        %v963 = vpop.permute.xlu0 %962
        %964 = vrot.lane.b32.xlu0 %v702, 127
        %v965 = vpop.permute.xlu0 %964
        %966 = vrot.lane.b32.xlu0 %v703, 127
        %v967 = vpop.permute.xlu0 %966
        %vm968 = vcmp.lt.s32.totalorder %v714, 127
        %v969 = vsel %vm968, %v965, %v967
        %v970 = vsel %vm968, %v963, %v965
        %v971 = vsel %vm968, %v961, %v963
        %v972 = vsel %vm968, %v967, %v961
        %973 = vset.pattern.permute.xlu0 10
        %974 = vperm.xlu0 %973, %v704
        %v975 = vpop.permute.xlu0 %974
        %v977 = vperm.slane %v971, 0
        %v978 = vperm.slane %v970, 0
        %v979 = vperm.slane %v969, 0
        %v980 = vperm.slane %v972, 0
        %v981 = vmul.f32 %v975, %v977
        %v982 = vmul.f32 %v975, %v978
        %v983 = vmul.f32 %v975, %v979
        %v984 = vmul.f32 %v975, %v980
        %985 = vset.pattern.permute.xlu0 11
        %986 = vperm.xlu0 %985, %v704
        %v987 = vpop.permute.xlu0 %986
        %v989 = vperm.slane %v971, 1
        %v990 = vperm.slane %v970, 1
        %v991 = vperm.slane %v969, 1
        %v992 = vperm.slane %v972, 1
        %v993 = vmul.f32 %v987, %v989
        %v994 = vmul.f32 %v987, %v990
        %v995 = vmul.f32 %v987, %v991
        %v996 = vmul.f32 %v987, %v992
        %v997 = vadd.f32 %v981, %v993
        %v998 = vadd.f32 %v982, %v994
        %v999 = vadd.f32 %v983, %v995
        %v1000 = vadd.f32 %v984, %v996
        %v1001 = vperm.slane %v457, 0
        %v1002 = vperm.slane %v458, 0
        %v1003 = vperm.slane %v459, 0
        %v1004 = vperm.slane %v460, 0
        %v1005 = vmul.f32 %v997, %v1001
        %v1006 = vmul.f32 %v998, %v1002
        %v1007 = vmul.f32 %v999, %v1003
        %v1008 = vmul.f32 %v1000, %v1004
        %v1009 = vadd.f32 %v956, %v1005
        %v1010 = vadd.f32 %v957, %v1006
        %v1011 = vadd.f32 %v958, %v1007
        %v1012 = vadd.f32 %v959, %v1008
        %1013 = vrot.lane.b32.xlu0 %v700, 113
        %v1014 = vpop.permute.xlu0 %1013
        %1015 = vrot.lane.b32.xlu0 %v701, 113
        %v1016 = vpop.permute.xlu0 %1015
        %1017 = vrot.lane.b32.xlu0 %v702, 113
        %v1018 = vpop.permute.xlu0 %1017
        %1019 = vrot.lane.b32.xlu0 %v703, 113
        %v1020 = vpop.permute.xlu0 %1019
        %vm1021 = vcmp.lt.s32.totalorder %v714, 113
        %v1022 = vsel %vm1021, %v1018, %v1020
        %v1023 = vsel %vm1021, %v1016, %v1018
        %v1024 = vsel %vm1021, %v1014, %v1016
        %v1025 = vsel %vm1021, %v1020, %v1014
        %1026 = vset.pattern.permute.xlu0 12
        %1027 = vperm.xlu0 %1026, %v704
        %v1028 = vpop.permute.xlu0 %1027
        %v1030 = vperm.slane %v1024, 0
        %v1031 = vperm.slane %v1023, 0
        %v1032 = vperm.slane %v1022, 0
        %v1033 = vperm.slane %v1025, 0
        %v1034 = vmul.f32 %v1028, %v1030
        %v1035 = vmul.f32 %v1028, %v1031
        %v1036 = vmul.f32 %v1028, %v1032
        %v1037 = vmul.f32 %v1028, %v1033
        %1038 = vset.pattern.permute.xlu0 13
        %1039 = vperm.xlu0 %1038, %v704
        %v1040 = vpop.permute.xlu0 %1039
        %v1042 = vperm.slane %v1024, 1
        %v1043 = vperm.slane %v1023, 1
        %v1044 = vperm.slane %v1022, 1
        %v1045 = vperm.slane %v1025, 1
        %v1046 = vmul.f32 %v1040, %v1042
        %v1047 = vmul.f32 %v1040, %v1043
        %v1048 = vmul.f32 %v1040, %v1044
        %v1049 = vmul.f32 %v1040, %v1045
        %v1050 = vadd.f32 %v1034, %v1046
        %v1051 = vadd.f32 %v1035, %v1047
        %v1052 = vadd.f32 %v1036, %v1048
        %v1053 = vadd.f32 %v1037, %v1049
        %v1054 = vperm.slane %v457, 1
        %v1055 = vperm.slane %v458, 1
        %v1056 = vperm.slane %v459, 1
        %v1057 = vperm.slane %v460, 1
        %v1058 = vmul.f32 %v1050, %v1054
        %v1059 = vmul.f32 %v1051, %v1055
        %v1060 = vmul.f32 %v1052, %v1056
        %v1061 = vmul.f32 %v1053, %v1057
        %v1062 = vadd.f32 %v1009, %v1058
        %v1063 = vadd.f32 %v1010, %v1059
        %v1064 = vadd.f32 %v1011, %v1060
        %v1065 = vadd.f32 %v1012, %v1061
        %1066 = vrot.lane.b32.xlu0 %v700, 112
        %v1067 = vpop.permute.xlu0 %1066
        %1068 = vrot.lane.b32.xlu0 %v701, 112
        %v1069 = vpop.permute.xlu0 %1068
        %1070 = vrot.lane.b32.xlu0 %v702, 112
        %v1071 = vpop.permute.xlu0 %1070
        %1072 = vrot.lane.b32.xlu0 %v703, 112
        %v1073 = vpop.permute.xlu0 %1072
        %vm1074 = vcmp.lt.s32.totalorder %v714, 112
        %v1075 = vsel %vm1074, %v1071, %v1073
        %v1076 = vsel %vm1074, %v1069, %v1071
        %v1077 = vsel %vm1074, %v1067, %v1069
        %v1078 = vsel %vm1074, %v1073, %v1067
        %1079 = vset.pattern.permute.xlu0 14
        %1080 = vperm.xlu0 %1079, %v704
        %v1081 = vpop.permute.xlu0 %1080
        %v1083 = vperm.slane %v1077, 0
        %v1084 = vperm.slane %v1076, 0
        %v1085 = vperm.slane %v1075, 0
        %v1086 = vperm.slane %v1078, 0
        %v1087 = vmul.f32 %v1081, %v1083
        %v1088 = vmul.f32 %v1081, %v1084
        %v1089 = vmul.f32 %v1081, %v1085
        %v1090 = vmul.f32 %v1081, %v1086
        %1091 = vset.pattern.permute.xlu0 15
        %1092 = vperm.xlu0 %1091, %v704
        %v1093 = vpop.permute.xlu0 %1092
        %v1095 = vperm.slane %v1077, 1
        %v1096 = vperm.slane %v1076, 1
        %v1097 = vperm.slane %v1075, 1
        %v1098 = vperm.slane %v1078, 1
        %v1099 = vmul.f32 %v1093, %v1095
        %v1100 = vmul.f32 %v1093, %v1096
        %v1101 = vmul.f32 %v1093, %v1097
        %v1102 = vmul.f32 %v1093, %v1098
        %v1103 = vadd.f32 %v1087, %v1099
        %v1104 = vadd.f32 %v1088, %v1100
        %v1105 = vadd.f32 %v1089, %v1101
        %v1106 = vadd.f32 %v1090, %v1102
        %v1107 = vperm.slane %v457, 2
        %v1108 = vperm.slane %v458, 2
        %v1109 = vperm.slane %v459, 2
        %v1110 = vperm.slane %v460, 2
        %v1111 = vmul.f32 %v1103, %v1107
        %v1112 = vmul.f32 %v1104, %v1108
        %v1113 = vmul.f32 %v1105, %v1109
        %v1114 = vmul.f32 %v1106, %v1110
        %v1115 = vadd.f32 %v1062, %v1111
        %v1116 = vadd.f32 %v1063, %v1112
        %v1117 = vadd.f32 %v1064, %v1113
        %v1118 = vadd.f32 %v1065, %v1114
        %1119 = vrot.lane.b32.xlu0 %v700, 111
        %v1120 = vpop.permute.xlu0 %1119
        %1121 = vrot.lane.b32.xlu0 %v701, 111
        %v1122 = vpop.permute.xlu0 %1121
        %1123 = vrot.lane.b32.xlu0 %v702, 111
        %v1124 = vpop.permute.xlu0 %1123
        %1125 = vrot.lane.b32.xlu0 %v703, 111
        %v1126 = vpop.permute.xlu0 %1125
        %vm1127 = vcmp.lt.s32.totalorder %v714, 111
        %v1128 = vsel %vm1127, %v1124, %v1126
        %v1129 = vsel %vm1127, %v1122, %v1124
        %v1130 = vsel %vm1127, %v1120, %v1122
        %v1131 = vsel %vm1127, %v1126, %v1120
        %1132 = vset.pattern.permute.xlu0 16
        %1133 = vperm.xlu0 %1132, %v704
        %v1134 = vpop.permute.xlu0 %1133
        %v1136 = vperm.slane %v1130, 0
        %v1137 = vperm.slane %v1129, 0
        %v1138 = vperm.slane %v1128, 0
        %v1139 = vperm.slane %v1131, 0
        %v1140 = vmul.f32 %v1134, %v1136
        %v1141 = vmul.f32 %v1134, %v1137
        %v1142 = vmul.f32 %v1134, %v1138
        %v1143 = vmul.f32 %v1134, %v1139
        %1144 = vset.pattern.permute.xlu0 17
        %1145 = vperm.xlu0 %1144, %v704
        %v1146 = vpop.permute.xlu0 %1145
        %v1148 = vperm.slane %v1130, 1
        %v1149 = vperm.slane %v1129, 1
        %v1150 = vperm.slane %v1128, 1
        %v1151 = vperm.slane %v1131, 1
        %v1152 = vmul.f32 %v1146, %v1148
        %v1153 = vmul.f32 %v1146, %v1149
        %v1154 = vmul.f32 %v1146, %v1150
        %v1155 = vmul.f32 %v1146, %v1151
        %v1156 = vadd.f32 %v1140, %v1152
        %v1157 = vadd.f32 %v1141, %v1153
        %v1158 = vadd.f32 %v1142, %v1154
        %v1159 = vadd.f32 %v1143, %v1155
        %v1160 = vperm.slane %v457, 3
        %v1161 = vperm.slane %v458, 3
        %v1162 = vperm.slane %v459, 3
        %v1163 = vperm.slane %v460, 3
        %v1164 = vmul.f32 %v1156, %v1160
        %v1165 = vmul.f32 %v1157, %v1161
        %v1166 = vmul.f32 %v1158, %v1162
        %v1167 = vmul.f32 %v1159, %v1163
        %v1168 = vadd.f32 %v1115, %v1164
        %v1169 = vadd.f32 %v1116, %v1165
        %v1170 = vadd.f32 %v1117, %v1166
        %v1171 = vadd.f32 %v1118, %v1167
        %v1172 = vmul.f32 %v1168, 0.0625
        %v1173 = vmul.f32 %v1169, 0.0625
        %v1174 = vmul.f32 %v1170, 0.0625
        %v1175 = vmul.f32 %v1171, 0.0625
        %v1176 = vadd.f32 %v453, %v1172
        %v1177 = vadd.f32 %v454, %v1173
        %v1178 = vadd.f32 %v455, %v1174
        %v1179 = vadd.f32 %v456, %v1175
        %v1180 = vadd.f32 %v1176, 1.0
        %v1181 = vadd.f32 %v1177, 1.0
        %v1182 = vadd.f32 %v1178, 1.0
        %v1183 = vadd.f32 %v1179, 1.0
        %v1184 = vmul.f32 %v1180, 16.0
        %v1185 = vmul.f32 %v1181, 16.0
        %v1186 = vmul.f32 %v1182, 16.0
        %v1187 = vmul.f32 %v1183, 16.0
        %v1188 = vsub.f32 %v1184, 1.0
        %v1189 = vsub.f32 %v1185, 1.0
        %v1190 = vsub.f32 %v1186, 1.0
        %v1191 = vsub.f32 %v1187, 1.0
        %v1192 = vmul.f32 %v1188, 0.5
        %v1193 = vmul.f32 %v1189, 0.5
        %v1194 = vmul.f32 %v1190, 0.5
        %v1195 = vmul.f32 %v1191, 0.5
        %v1196 = vfloor.f32 %v1192
        %v1197 = vfloor.f32 %v1193
        %v1198 = vfloor.f32 %v1194
        %v1199 = vfloor.f32 %v1195
        %v1200 = vsub.f32 %v1192, %v1196
        %v1201 = vsub.f32 %v1193, %v1197
        %v1202 = vsub.f32 %v1194, %v1198
        %v1203 = vsub.f32 %v1195, %v1199
        %v1204 = vsub.f32 1.0, %v1200
        %v1205 = vsub.f32 1.0, %v1201
        %v1206 = vsub.f32 1.0, %v1202
        %v1207 = vsub.f32 1.0, %v1203
        %vm1208 = vcmp.ge.f32.partialorder %v1196, 0.0
        %vm1209 = vcmp.ge.f32.partialorder %v1197, 0.0
        %vm1210 = vcmp.ge.f32.partialorder %v1198, 0.0
        %vm1211 = vcmp.ge.f32.partialorder %v1199, 0.0
        %vm1212 = vcmp.le.f32.partialorder %v1196, 15.0
        %vm1213 = vcmp.le.f32.partialorder %v1197, 15.0
        %vm1214 = vcmp.le.f32.partialorder %v1198, 15.0
        %vm1215 = vcmp.le.f32.partialorder %v1199, 15.0
        %vm1216 = vmand %vm1208, %vm1212
        %vm1217 = vmand %vm1209, %vm1213
        %vm1218 = vmand %vm1210, %vm1214
        %vm1219 = vmand %vm1211, %vm1215
        %vm1220 = vcmp.ge.f32.partialorder %v1196, -1.0
        %vm1221 = vcmp.ge.f32.partialorder %v1197, -1.0
        %vm1222 = vcmp.ge.f32.partialorder %v1198, -1.0
        %vm1223 = vcmp.ge.f32.partialorder %v1199, -1.0
        %vm1224 = vcmp.le.f32.partialorder %v1196, 14.0
        %vm1225 = vcmp.le.f32.partialorder %v1197, 14.0
        %vm1226 = vcmp.le.f32.partialorder %v1198, 14.0
        %vm1227 = vcmp.le.f32.partialorder %v1199, 14.0
        %vm1228 = vmand %vm1220, %vm1224
        %vm1229 = vmand %vm1221, %vm1225
        %vm1230 = vmand %vm1222, %vm1226
        %vm1231 = vmand %vm1223, %vm1227
        %v1232 = vsel %vm1216, 1, 0
        %v1233 = vsel %vm1217, 1, 0
        %v1234 = vsel %vm1218, 1, 0
        %v1235 = vsel %vm1219, 1, 0
        %v1236 = vrot.slane %v1232, 7
        %v1237 = vrot.slane %v1233, 7
        %v1238 = vrot.slane %v1234, 7
        %v1239 = vrot.slane %v1235, 7
        %vm1240 = vcmp.ne.s32.totalorder %v1236, 0
        %vm1241 = vcmp.ne.s32.totalorder %v1237, 0
        %vm1242 = vcmp.ne.s32.totalorder %v1238, 0
        %vm1243 = vcmp.ne.s32.totalorder %v1239, 0
        %vm1244 = vmand %vm1216, %vm1240
        %vm1245 = vmand %vm1217, %vm1241
        %vm1246 = vmand %vm1218, %vm1242
        %vm1247 = vmand %vm1219, %vm1243
        %v1252 = vrot.slane %v1204, 7
        %v1253 = vrot.slane %v1205, 7
        %v1254 = vrot.slane %v1206, 7
        %v1255 = vrot.slane %v1207, 7
        %v1260 = vmul.f32 %v1204, %v1252
        %v1261 = vmul.f32 %v1205, %v1253
        %v1262 = vmul.f32 %v1206, %v1254
        %v1263 = vmul.f32 %v1207, %v1255
        %v1264 = vsel %vm1244, %v1260, 0.0
        %v1265 = vsel %vm1245, %v1261, 0.0
        %v1266 = vsel %vm1246, %v1262, 0.0
        %v1267 = vsel %vm1247, %v1263, 0.0
        %v1268 = vsel %vm1228, 1, 0
        %v1269 = vsel %vm1229, 1, 0
        %v1270 = vsel %vm1230, 1, 0
        %v1271 = vsel %vm1231, 1, 0
        %v1272 = vrot.slane %v1268, 7
        %v1273 = vrot.slane %v1269, 7
        %v1274 = vrot.slane %v1270, 7
        %v1275 = vrot.slane %v1271, 7
        %vm1276 = vcmp.ne.s32.totalorder %v1272, 0
        %vm1277 = vcmp.ne.s32.totalorder %v1273, 0
        %vm1278 = vcmp.ne.s32.totalorder %v1274, 0
        %vm1279 = vcmp.ne.s32.totalorder %v1275, 0
        %vm1280 = vmand %vm1216, %vm1276
        %vm1281 = vmand %vm1217, %vm1277
        %vm1282 = vmand %vm1218, %vm1278
        %vm1283 = vmand %vm1219, %vm1279
        %v1288 = vrot.slane %v1200, 7
        %v1289 = vrot.slane %v1201, 7
        %v1290 = vrot.slane %v1202, 7
        %v1291 = vrot.slane %v1203, 7
        %v1296 = vmul.f32 %v1204, %v1288
        %v1297 = vmul.f32 %v1205, %v1289
        %v1298 = vmul.f32 %v1206, %v1290
        %v1299 = vmul.f32 %v1207, %v1291
        %v1300 = vsel %vm1280, %v1296, 0.0
        %v1301 = vsel %vm1281, %v1297, 0.0
        %v1302 = vsel %vm1282, %v1298, 0.0
        %v1303 = vsel %vm1283, %v1299, 0.0
        %vm1304 = vmand %vm1228, %vm1240
        %vm1305 = vmand %vm1229, %vm1241
        %vm1306 = vmand %vm1230, %vm1242
        %vm1307 = vmand %vm1231, %vm1243
        %v1308 = vmul.f32 %v1200, %v1252
        %v1309 = vmul.f32 %v1201, %v1253
        %v1310 = vmul.f32 %v1202, %v1254
        %v1311 = vmul.f32 %v1203, %v1255
        %v1312 = vsel %vm1304, %v1308, 0.0
        %v1313 = vsel %vm1305, %v1309, 0.0
        %v1314 = vsel %vm1306, %v1310, 0.0
        %v1315 = vsel %vm1307, %v1311, 0.0
        %vm1316 = vmand %vm1228, %vm1276
        %vm1317 = vmand %vm1229, %vm1277
        %vm1318 = vmand %vm1230, %vm1278
        %vm1319 = vmand %vm1231, %vm1279
        %v1320 = vmul.f32 %v1200, %v1288
        %v1321 = vmul.f32 %v1201, %v1289
        %v1322 = vmul.f32 %v1202, %v1290
        %v1323 = vmul.f32 %v1203, %v1291
        %v1324 = vsel %vm1316, %v1320, 0.0
        %v1325 = vsel %vm1317, %v1321, 0.0
        %v1326 = vsel %vm1318, %v1322, 0.0
        %v1327 = vsel %vm1319, %v1323, 0.0
        %v1328 = vmul.f32 %v1196, 16.0
        %v1329 = vmul.f32 %v1197, 16.0
        %v1330 = vmul.f32 %v1198, 16.0
        %v1331 = vmul.f32 %v1199, 16.0
        %v1336 = vrot.slane %v1328, 7
        %v1337 = vrot.slane %v1329, 7
        %v1338 = vrot.slane %v1330, 7
        %v1339 = vrot.slane %v1331, 7
        %v1344 = vadd.f32 %v453, %v1336
        %v1345 = vadd.f32 %v454, %v1337
        %v1346 = vadd.f32 %v455, %v1338
        %v1347 = vadd.f32 %v456, %v1339
        %v1352 = vrot.slane %v1196, 6
        %v1353 = vrot.slane %v1197, 6
        %v1354 = vrot.slane %v1198, 6
        %v1355 = vrot.slane %v1199, 6
        %v1360 = vadd.f32 %v1344, %v1352
        %v1361 = vadd.f32 %v1345, %v1353
        %v1362 = vadd.f32 %v1346, %v1354
        %v1363 = vadd.f32 %v1347, %v1355
        %vm1364 = vcmp.lt.f32.partialorder %v1360, 0.0
        %vm1365 = vcmp.lt.f32.partialorder %v1361, 0.0
        %vm1366 = vcmp.lt.f32.partialorder %v1362, 0.0
        %vm1367 = vcmp.lt.f32.partialorder %v1363, 0.0
        %v1368 = vadd.f32 %v1360, 512.0
        %v1369 = vadd.f32 %v1361, 512.0
        %v1370 = vadd.f32 %v1362, 512.0
        %v1371 = vadd.f32 %v1363, 512.0
        %v1372 = vsel %vm1364, %v1368, %v1360
        %v1373 = vsel %vm1365, %v1369, %v1361
        %v1374 = vsel %vm1366, %v1370, %v1362
        %v1375 = vsel %vm1367, %v1371, %v1363
        %v1376 = vcvt.f32.s32.to.zero.pseudo %v1372
        %v1377 = vcvt.f32.s32.to.zero.pseudo %v1373
        %v1378 = vcvt.f32.s32.to.zero.pseudo %v1374
        %v1379 = vcvt.f32.s32.to.zero.pseudo %v1375
        %v1380 = vlaneseq
        %v1381 = vshrl.u32 %v1380, 7
        %v1382 = vadd.s32 %v1381, 8
        %v1383 = vadd.s32 %v1381, 16
        %v1384 = vadd.s32 %v1381, 24
        %v1385 = vadd.s32 %v1381, 32
        %v1386 = vadd.s32 %v1381, 40
        %v1387 = vadd.s32 %v1381, 48
        %v1388 = vadd.s32 %v1381, 56
        %v1389 = vadd.s32 %v1381, 64
        %v1390 = vadd.s32 %v1381, 72
        %v1391 = vadd.s32 %v1381, 80
        %v1392 = vadd.s32 %v1381, 88
        %v1393 = vadd.s32 %v1381, 96
        %v1394 = vadd.s32 %v1381, 104
        %v1395 = vadd.s32 %v1381, 112
        %v1396 = vadd.s32 %v1381, 120
        %v1397 = vadd.s32 %v1381, 128
        %v1398 = vadd.s32 %v1381, 136
        %v1399 = vadd.s32 %v1381, 144
        %v1400 = vadd.s32 %v1381, 152
        %v1401 = vadd.s32 %v1381, 160
        %v1402 = vadd.s32 %v1381, 168
        %v1403 = vadd.s32 %v1381, 176
        %v1404 = vadd.s32 %v1381, 184
        %v1405 = vadd.s32 %v1381, 192
        %v1406 = vadd.s32 %v1381, 200
        %v1407 = vadd.s32 %v1381, 208
        %v1408 = vadd.s32 %v1381, 216
        %v1409 = vadd.s32 %v1381, 224
        %v1410 = vadd.s32 %v1381, 232
        %v1411 = vadd.s32 %v1381, 240
        %v1412 = vadd.s32 %v1381, 248
        %v1413 = vadd.s32 %v1381, 256
        %v1414 = vadd.s32 %v1381, 264
        %v1415 = vadd.s32 %v1381, 272
        %v1416 = vadd.s32 %v1381, 280
        %v1417 = vadd.s32 %v1381, 288
        %v1418 = vadd.s32 %v1381, 296
        %v1419 = vadd.s32 %v1381, 304
        %v1420 = vadd.s32 %v1381, 312
        %v1421 = vadd.s32 %v1381, 320
        %v1422 = vadd.s32 %v1381, 328
        %v1423 = vadd.s32 %v1381, 336
        %v1424 = vadd.s32 %v1381, 344
        %v1425 = vadd.s32 %v1381, 352
        %v1426 = vadd.s32 %v1381, 360
        %v1427 = vadd.s32 %v1381, 368
        %v1428 = vadd.s32 %v1381, 376
        %v1429 = vadd.s32 %v1381, 384
        %v1430 = vadd.s32 %v1381, 392
        %v1431 = vadd.s32 %v1381, 400
        %v1432 = vadd.s32 %v1381, 408
        %v1433 = vadd.s32 %v1381, 416
        %v1434 = vadd.s32 %v1381, 424
        %v1435 = vadd.s32 %v1381, 432
        %v1436 = vadd.s32 %v1381, 440
        %v1437 = vadd.s32 %v1381, 448
        %v1438 = vadd.s32 %v1381, 456
        %v1439 = vadd.s32 %v1381, 464
        %v1440 = vadd.s32 %v1381, 472
        %v1441 = vadd.s32 %v1381, 480
        %v1442 = vadd.s32 %v1381, 488
        %v1443 = vadd.s32 %v1381, 496
        %v1444 = vadd.s32 %v1381, 504
        %v1445 = vperm.slane %v1376, 2
        %v1446 = vperm.slane %v1377, 2
        %v1447 = vperm.slane %v1378, 2
        %v1448 = vperm.slane %v1379, 2
        %vm1449 = vcmp.eq.s32.totalorder %v1381, %v1445
        %vm1450 = vcmp.eq.s32.totalorder %v1381, %v1446
        %vm1451 = vcmp.eq.s32.totalorder %v1381, %v1447
        %vm1452 = vcmp.eq.s32.totalorder %v1381, %v1448
        %vm1453 = vcmp.eq.s32.totalorder %v1382, %v1445
        %vm1454 = vcmp.eq.s32.totalorder %v1382, %v1446
        %vm1455 = vcmp.eq.s32.totalorder %v1382, %v1447
        %vm1456 = vcmp.eq.s32.totalorder %v1382, %v1448
        %vm1457 = vcmp.eq.s32.totalorder %v1383, %v1445
        %vm1458 = vcmp.eq.s32.totalorder %v1383, %v1446
        %vm1459 = vcmp.eq.s32.totalorder %v1383, %v1447
        %vm1460 = vcmp.eq.s32.totalorder %v1383, %v1448
        %vm1461 = vcmp.eq.s32.totalorder %v1384, %v1445
        %vm1462 = vcmp.eq.s32.totalorder %v1384, %v1446
        %vm1463 = vcmp.eq.s32.totalorder %v1384, %v1447
        %vm1464 = vcmp.eq.s32.totalorder %v1384, %v1448
        %vm1465 = vcmp.eq.s32.totalorder %v1385, %v1445
        %vm1466 = vcmp.eq.s32.totalorder %v1385, %v1446
        %vm1467 = vcmp.eq.s32.totalorder %v1385, %v1447
        %vm1468 = vcmp.eq.s32.totalorder %v1385, %v1448
        %vm1469 = vcmp.eq.s32.totalorder %v1386, %v1445
        %vm1470 = vcmp.eq.s32.totalorder %v1386, %v1446
        %vm1471 = vcmp.eq.s32.totalorder %v1386, %v1447
        %vm1472 = vcmp.eq.s32.totalorder %v1386, %v1448
        %vm1473 = vcmp.eq.s32.totalorder %v1387, %v1445
        %vm1474 = vcmp.eq.s32.totalorder %v1387, %v1446
        %vm1475 = vcmp.eq.s32.totalorder %v1387, %v1447
        %vm1476 = vcmp.eq.s32.totalorder %v1387, %v1448
        %vm1477 = vcmp.eq.s32.totalorder %v1388, %v1445
        %vm1478 = vcmp.eq.s32.totalorder %v1388, %v1446
        %vm1479 = vcmp.eq.s32.totalorder %v1388, %v1447
        %vm1480 = vcmp.eq.s32.totalorder %v1388, %v1448
        %vm1481 = vcmp.eq.s32.totalorder %v1389, %v1445
        %vm1482 = vcmp.eq.s32.totalorder %v1389, %v1446
        %vm1483 = vcmp.eq.s32.totalorder %v1389, %v1447
        %vm1484 = vcmp.eq.s32.totalorder %v1389, %v1448
        %vm1485 = vcmp.eq.s32.totalorder %v1390, %v1445
        %vm1486 = vcmp.eq.s32.totalorder %v1390, %v1446
        %vm1487 = vcmp.eq.s32.totalorder %v1390, %v1447
        %vm1488 = vcmp.eq.s32.totalorder %v1390, %v1448
        %vm1489 = vcmp.eq.s32.totalorder %v1391, %v1445
        %vm1490 = vcmp.eq.s32.totalorder %v1391, %v1446
        %vm1491 = vcmp.eq.s32.totalorder %v1391, %v1447
        %vm1492 = vcmp.eq.s32.totalorder %v1391, %v1448
        %vm1493 = vcmp.eq.s32.totalorder %v1392, %v1445
        %vm1494 = vcmp.eq.s32.totalorder %v1392, %v1446
        %vm1495 = vcmp.eq.s32.totalorder %v1392, %v1447
        %vm1496 = vcmp.eq.s32.totalorder %v1392, %v1448
        %vm1497 = vcmp.eq.s32.totalorder %v1393, %v1445
        %vm1498 = vcmp.eq.s32.totalorder %v1393, %v1446
        %vm1499 = vcmp.eq.s32.totalorder %v1393, %v1447
        %vm1500 = vcmp.eq.s32.totalorder %v1393, %v1448
        %vm1501 = vcmp.eq.s32.totalorder %v1394, %v1445
        %vm1502 = vcmp.eq.s32.totalorder %v1394, %v1446
        %vm1503 = vcmp.eq.s32.totalorder %v1394, %v1447
        %vm1504 = vcmp.eq.s32.totalorder %v1394, %v1448
        %vm1505 = vcmp.eq.s32.totalorder %v1395, %v1445
        %vm1506 = vcmp.eq.s32.totalorder %v1395, %v1446
        %vm1507 = vcmp.eq.s32.totalorder %v1395, %v1447
        %vm1508 = vcmp.eq.s32.totalorder %v1395, %v1448
        %vm1509 = vcmp.eq.s32.totalorder %v1396, %v1445
        %vm1510 = vcmp.eq.s32.totalorder %v1396, %v1446
        %vm1511 = vcmp.eq.s32.totalorder %v1396, %v1447
        %vm1512 = vcmp.eq.s32.totalorder %v1396, %v1448
        %vm1513 = vcmp.eq.s32.totalorder %v1397, %v1445
        %vm1514 = vcmp.eq.s32.totalorder %v1397, %v1446
        %vm1515 = vcmp.eq.s32.totalorder %v1397, %v1447
        %vm1516 = vcmp.eq.s32.totalorder %v1397, %v1448
        %vm1517 = vcmp.eq.s32.totalorder %v1398, %v1445
        %vm1518 = vcmp.eq.s32.totalorder %v1398, %v1446
        %vm1519 = vcmp.eq.s32.totalorder %v1398, %v1447
        %vm1520 = vcmp.eq.s32.totalorder %v1398, %v1448
        %vm1521 = vcmp.eq.s32.totalorder %v1399, %v1445
        %vm1522 = vcmp.eq.s32.totalorder %v1399, %v1446
        %vm1523 = vcmp.eq.s32.totalorder %v1399, %v1447
        %vm1524 = vcmp.eq.s32.totalorder %v1399, %v1448
        %vm1525 = vcmp.eq.s32.totalorder %v1400, %v1445
        %vm1526 = vcmp.eq.s32.totalorder %v1400, %v1446
        %vm1527 = vcmp.eq.s32.totalorder %v1400, %v1447
        %vm1528 = vcmp.eq.s32.totalorder %v1400, %v1448
        %vm1529 = vcmp.eq.s32.totalorder %v1401, %v1445
        %vm1530 = vcmp.eq.s32.totalorder %v1401, %v1446
        %vm1531 = vcmp.eq.s32.totalorder %v1401, %v1447
        %vm1532 = vcmp.eq.s32.totalorder %v1401, %v1448
        %vm1533 = vcmp.eq.s32.totalorder %v1402, %v1445
        %vm1534 = vcmp.eq.s32.totalorder %v1402, %v1446
        %vm1535 = vcmp.eq.s32.totalorder %v1402, %v1447
        %vm1536 = vcmp.eq.s32.totalorder %v1402, %v1448
        %vm1537 = vcmp.eq.s32.totalorder %v1403, %v1445
        %vm1538 = vcmp.eq.s32.totalorder %v1403, %v1446
        %vm1539 = vcmp.eq.s32.totalorder %v1403, %v1447
        %vm1540 = vcmp.eq.s32.totalorder %v1403, %v1448
        %vm1541 = vcmp.eq.s32.totalorder %v1404, %v1445
        %vm1542 = vcmp.eq.s32.totalorder %v1404, %v1446
        %vm1543 = vcmp.eq.s32.totalorder %v1404, %v1447
        %vm1544 = vcmp.eq.s32.totalorder %v1404, %v1448
        %vm1545 = vcmp.eq.s32.totalorder %v1405, %v1445
        %vm1546 = vcmp.eq.s32.totalorder %v1405, %v1446
        %vm1547 = vcmp.eq.s32.totalorder %v1405, %v1447
        %vm1548 = vcmp.eq.s32.totalorder %v1405, %v1448
        %vm1549 = vcmp.eq.s32.totalorder %v1406, %v1445
        %vm1550 = vcmp.eq.s32.totalorder %v1406, %v1446
        %vm1551 = vcmp.eq.s32.totalorder %v1406, %v1447
        %vm1552 = vcmp.eq.s32.totalorder %v1406, %v1448
        %vm1553 = vcmp.eq.s32.totalorder %v1407, %v1445
        %vm1554 = vcmp.eq.s32.totalorder %v1407, %v1446
        %vm1555 = vcmp.eq.s32.totalorder %v1407, %v1447
        %vm1556 = vcmp.eq.s32.totalorder %v1407, %v1448
        %vm1557 = vcmp.eq.s32.totalorder %v1408, %v1445
        %vm1558 = vcmp.eq.s32.totalorder %v1408, %v1446
        %vm1559 = vcmp.eq.s32.totalorder %v1408, %v1447
        %vm1560 = vcmp.eq.s32.totalorder %v1408, %v1448
        %vm1561 = vcmp.eq.s32.totalorder %v1409, %v1445
        %vm1562 = vcmp.eq.s32.totalorder %v1409, %v1446
        %vm1563 = vcmp.eq.s32.totalorder %v1409, %v1447
        %vm1564 = vcmp.eq.s32.totalorder %v1409, %v1448
        %vm1565 = vcmp.eq.s32.totalorder %v1410, %v1445
        %vm1566 = vcmp.eq.s32.totalorder %v1410, %v1446
        %vm1567 = vcmp.eq.s32.totalorder %v1410, %v1447
        %vm1568 = vcmp.eq.s32.totalorder %v1410, %v1448
        %vm1569 = vcmp.eq.s32.totalorder %v1411, %v1445
        %vm1570 = vcmp.eq.s32.totalorder %v1411, %v1446
        %vm1571 = vcmp.eq.s32.totalorder %v1411, %v1447
        %vm1572 = vcmp.eq.s32.totalorder %v1411, %v1448
        %vm1573 = vcmp.eq.s32.totalorder %v1412, %v1445
        %vm1574 = vcmp.eq.s32.totalorder %v1412, %v1446
        %vm1575 = vcmp.eq.s32.totalorder %v1412, %v1447
        %vm1576 = vcmp.eq.s32.totalorder %v1412, %v1448
        %vm1577 = vcmp.eq.s32.totalorder %v1413, %v1445
        %vm1578 = vcmp.eq.s32.totalorder %v1413, %v1446
        %vm1579 = vcmp.eq.s32.totalorder %v1413, %v1447
        %vm1580 = vcmp.eq.s32.totalorder %v1413, %v1448
        %vm1581 = vcmp.eq.s32.totalorder %v1414, %v1445
        %vm1582 = vcmp.eq.s32.totalorder %v1414, %v1446
        %vm1583 = vcmp.eq.s32.totalorder %v1414, %v1447
        %vm1584 = vcmp.eq.s32.totalorder %v1414, %v1448
        %vm1585 = vcmp.eq.s32.totalorder %v1415, %v1445
        %vm1586 = vcmp.eq.s32.totalorder %v1415, %v1446
        %vm1587 = vcmp.eq.s32.totalorder %v1415, %v1447
        %vm1588 = vcmp.eq.s32.totalorder %v1415, %v1448
        %vm1589 = vcmp.eq.s32.totalorder %v1416, %v1445
        %vm1590 = vcmp.eq.s32.totalorder %v1416, %v1446
        %vm1591 = vcmp.eq.s32.totalorder %v1416, %v1447
        %vm1592 = vcmp.eq.s32.totalorder %v1416, %v1448
        %vm1593 = vcmp.eq.s32.totalorder %v1417, %v1445
        %vm1594 = vcmp.eq.s32.totalorder %v1417, %v1446
        %vm1595 = vcmp.eq.s32.totalorder %v1417, %v1447
        %vm1596 = vcmp.eq.s32.totalorder %v1417, %v1448
        %vm1597 = vcmp.eq.s32.totalorder %v1418, %v1445
        %vm1598 = vcmp.eq.s32.totalorder %v1418, %v1446
        %vm1599 = vcmp.eq.s32.totalorder %v1418, %v1447
        %vm1600 = vcmp.eq.s32.totalorder %v1418, %v1448
        %vm1601 = vcmp.eq.s32.totalorder %v1419, %v1445
        %vm1602 = vcmp.eq.s32.totalorder %v1419, %v1446
        %vm1603 = vcmp.eq.s32.totalorder %v1419, %v1447
        %vm1604 = vcmp.eq.s32.totalorder %v1419, %v1448
        %vm1605 = vcmp.eq.s32.totalorder %v1420, %v1445
        %vm1606 = vcmp.eq.s32.totalorder %v1420, %v1446
        %vm1607 = vcmp.eq.s32.totalorder %v1420, %v1447
        %vm1608 = vcmp.eq.s32.totalorder %v1420, %v1448
        %vm1609 = vcmp.eq.s32.totalorder %v1421, %v1445
        %vm1610 = vcmp.eq.s32.totalorder %v1421, %v1446
        %vm1611 = vcmp.eq.s32.totalorder %v1421, %v1447
        %vm1612 = vcmp.eq.s32.totalorder %v1421, %v1448
        %vm1613 = vcmp.eq.s32.totalorder %v1422, %v1445
        %vm1614 = vcmp.eq.s32.totalorder %v1422, %v1446
        %vm1615 = vcmp.eq.s32.totalorder %v1422, %v1447
        %vm1616 = vcmp.eq.s32.totalorder %v1422, %v1448
        %vm1617 = vcmp.eq.s32.totalorder %v1423, %v1445
        %vm1618 = vcmp.eq.s32.totalorder %v1423, %v1446
        %vm1619 = vcmp.eq.s32.totalorder %v1423, %v1447
        %vm1620 = vcmp.eq.s32.totalorder %v1423, %v1448
        %vm1621 = vcmp.eq.s32.totalorder %v1424, %v1445
        %vm1622 = vcmp.eq.s32.totalorder %v1424, %v1446
        %vm1623 = vcmp.eq.s32.totalorder %v1424, %v1447
        %vm1624 = vcmp.eq.s32.totalorder %v1424, %v1448
        %vm1625 = vcmp.eq.s32.totalorder %v1425, %v1445
        %vm1626 = vcmp.eq.s32.totalorder %v1425, %v1446
        %vm1627 = vcmp.eq.s32.totalorder %v1425, %v1447
        %vm1628 = vcmp.eq.s32.totalorder %v1425, %v1448
        %vm1629 = vcmp.eq.s32.totalorder %v1426, %v1445
        %vm1630 = vcmp.eq.s32.totalorder %v1426, %v1446
        %vm1631 = vcmp.eq.s32.totalorder %v1426, %v1447
        %vm1632 = vcmp.eq.s32.totalorder %v1426, %v1448
        %vm1633 = vcmp.eq.s32.totalorder %v1427, %v1445
        %vm1634 = vcmp.eq.s32.totalorder %v1427, %v1446
        %vm1635 = vcmp.eq.s32.totalorder %v1427, %v1447
        %vm1636 = vcmp.eq.s32.totalorder %v1427, %v1448
        %vm1637 = vcmp.eq.s32.totalorder %v1428, %v1445
        %vm1638 = vcmp.eq.s32.totalorder %v1428, %v1446
        %vm1639 = vcmp.eq.s32.totalorder %v1428, %v1447
        %vm1640 = vcmp.eq.s32.totalorder %v1428, %v1448
        %vm1641 = vcmp.eq.s32.totalorder %v1429, %v1445
        %vm1642 = vcmp.eq.s32.totalorder %v1429, %v1446
        %vm1643 = vcmp.eq.s32.totalorder %v1429, %v1447
        %vm1644 = vcmp.eq.s32.totalorder %v1429, %v1448
        %vm1645 = vcmp.eq.s32.totalorder %v1430, %v1445
        %vm1646 = vcmp.eq.s32.totalorder %v1430, %v1446
        %vm1647 = vcmp.eq.s32.totalorder %v1430, %v1447
        %vm1648 = vcmp.eq.s32.totalorder %v1430, %v1448
        %vm1649 = vcmp.eq.s32.totalorder %v1431, %v1445
        %vm1650 = vcmp.eq.s32.totalorder %v1431, %v1446
        %vm1651 = vcmp.eq.s32.totalorder %v1431, %v1447
        %vm1652 = vcmp.eq.s32.totalorder %v1431, %v1448
        %vm1653 = vcmp.eq.s32.totalorder %v1432, %v1445
        %vm1654 = vcmp.eq.s32.totalorder %v1432, %v1446
        %vm1655 = vcmp.eq.s32.totalorder %v1432, %v1447
        %vm1656 = vcmp.eq.s32.totalorder %v1432, %v1448
        %vm1657 = vcmp.eq.s32.totalorder %v1433, %v1445
        %vm1658 = vcmp.eq.s32.totalorder %v1433, %v1446
        %vm1659 = vcmp.eq.s32.totalorder %v1433, %v1447
        %vm1660 = vcmp.eq.s32.totalorder %v1433, %v1448
        %vm1661 = vcmp.eq.s32.totalorder %v1434, %v1445
        %vm1662 = vcmp.eq.s32.totalorder %v1434, %v1446
        %vm1663 = vcmp.eq.s32.totalorder %v1434, %v1447
        %vm1664 = vcmp.eq.s32.totalorder %v1434, %v1448
        %vm1665 = vcmp.eq.s32.totalorder %v1435, %v1445
        %vm1666 = vcmp.eq.s32.totalorder %v1435, %v1446
        %vm1667 = vcmp.eq.s32.totalorder %v1435, %v1447
        %vm1668 = vcmp.eq.s32.totalorder %v1435, %v1448
        %vm1669 = vcmp.eq.s32.totalorder %v1436, %v1445
        %vm1670 = vcmp.eq.s32.totalorder %v1436, %v1446
        %vm1671 = vcmp.eq.s32.totalorder %v1436, %v1447
        %vm1672 = vcmp.eq.s32.totalorder %v1436, %v1448
        %vm1673 = vcmp.eq.s32.totalorder %v1437, %v1445
        %vm1674 = vcmp.eq.s32.totalorder %v1437, %v1446
        %vm1675 = vcmp.eq.s32.totalorder %v1437, %v1447
        %vm1676 = vcmp.eq.s32.totalorder %v1437, %v1448
        %vm1677 = vcmp.eq.s32.totalorder %v1438, %v1445
        %vm1678 = vcmp.eq.s32.totalorder %v1438, %v1446
        %vm1679 = vcmp.eq.s32.totalorder %v1438, %v1447
        %vm1680 = vcmp.eq.s32.totalorder %v1438, %v1448
        %vm1681 = vcmp.eq.s32.totalorder %v1439, %v1445
        %vm1682 = vcmp.eq.s32.totalorder %v1439, %v1446
        %vm1683 = vcmp.eq.s32.totalorder %v1439, %v1447
        %vm1684 = vcmp.eq.s32.totalorder %v1439, %v1448
        %vm1685 = vcmp.eq.s32.totalorder %v1440, %v1445
        %vm1686 = vcmp.eq.s32.totalorder %v1440, %v1446
        %vm1687 = vcmp.eq.s32.totalorder %v1440, %v1447
        %vm1688 = vcmp.eq.s32.totalorder %v1440, %v1448
        %vm1689 = vcmp.eq.s32.totalorder %v1441, %v1445
        %vm1690 = vcmp.eq.s32.totalorder %v1441, %v1446
        %vm1691 = vcmp.eq.s32.totalorder %v1441, %v1447
        %vm1692 = vcmp.eq.s32.totalorder %v1441, %v1448
        %vm1693 = vcmp.eq.s32.totalorder %v1442, %v1445
        %vm1694 = vcmp.eq.s32.totalorder %v1442, %v1446
        %vm1695 = vcmp.eq.s32.totalorder %v1442, %v1447
        %vm1696 = vcmp.eq.s32.totalorder %v1442, %v1448
        %vm1697 = vcmp.eq.s32.totalorder %v1443, %v1445
        %vm1698 = vcmp.eq.s32.totalorder %v1443, %v1446
        %vm1699 = vcmp.eq.s32.totalorder %v1443, %v1447
        %vm1700 = vcmp.eq.s32.totalorder %v1443, %v1448
        %vm1701 = vcmp.eq.s32.totalorder %v1444, %v1445
        %vm1702 = vcmp.eq.s32.totalorder %v1444, %v1446
        %vm1703 = vcmp.eq.s32.totalorder %v1444, %v1447
        %vm1704 = vcmp.eq.s32.totalorder %v1444, %v1448
        %v1705 = vsel %vm1449, 1, 0
        %v1706 = vsel %vm1450, 1, 0
        %v1707 = vsel %vm1451, 1, 0
        %v1708 = vsel %vm1452, 1, 0
        %v1709 = vsel %vm1453, 1, 0
        %v1710 = vsel %vm1454, 1, 0
        %v1711 = vsel %vm1455, 1, 0
        %v1712 = vsel %vm1456, 1, 0
        %v1713 = vsel %vm1457, 1, 0
        %v1714 = vsel %vm1458, 1, 0
        %v1715 = vsel %vm1459, 1, 0
        %v1716 = vsel %vm1460, 1, 0
        %v1717 = vsel %vm1461, 1, 0
        %v1718 = vsel %vm1462, 1, 0
        %v1719 = vsel %vm1463, 1, 0
        %v1720 = vsel %vm1464, 1, 0
        %v1721 = vsel %vm1465, 1, 0
        %v1722 = vsel %vm1466, 1, 0
        %v1723 = vsel %vm1467, 1, 0
        %v1724 = vsel %vm1468, 1, 0
        %v1725 = vsel %vm1469, 1, 0
        %v1726 = vsel %vm1470, 1, 0
        %v1727 = vsel %vm1471, 1, 0
        %v1728 = vsel %vm1472, 1, 0
        %v1729 = vsel %vm1473, 1, 0
        %v1730 = vsel %vm1474, 1, 0
        %v1731 = vsel %vm1475, 1, 0
        %v1732 = vsel %vm1476, 1, 0
        %v1733 = vsel %vm1477, 1, 0
        %v1734 = vsel %vm1478, 1, 0
        %v1735 = vsel %vm1479, 1, 0
        %v1736 = vsel %vm1480, 1, 0
        %v1737 = vsel %vm1481, 1, 0
        %v1738 = vsel %vm1482, 1, 0
        %v1739 = vsel %vm1483, 1, 0
        %v1740 = vsel %vm1484, 1, 0
        %v1741 = vsel %vm1485, 1, 0
        %v1742 = vsel %vm1486, 1, 0
        %v1743 = vsel %vm1487, 1, 0
        %v1744 = vsel %vm1488, 1, 0
        %v1745 = vsel %vm1489, 1, 0
        %v1746 = vsel %vm1490, 1, 0
        %v1747 = vsel %vm1491, 1, 0
        %v1748 = vsel %vm1492, 1, 0
        %v1749 = vsel %vm1493, 1, 0
        %v1750 = vsel %vm1494, 1, 0
        %v1751 = vsel %vm1495, 1, 0
        %v1752 = vsel %vm1496, 1, 0
        %v1753 = vsel %vm1497, 1, 0
        %v1754 = vsel %vm1498, 1, 0
        %v1755 = vsel %vm1499, 1, 0
        %v1756 = vsel %vm1500, 1, 0
        %v1757 = vsel %vm1501, 1, 0
        %v1758 = vsel %vm1502, 1, 0
        %v1759 = vsel %vm1503, 1, 0
        %v1760 = vsel %vm1504, 1, 0
        %v1761 = vsel %vm1505, 1, 0
        %v1762 = vsel %vm1506, 1, 0
        %v1763 = vsel %vm1507, 1, 0
        %v1764 = vsel %vm1508, 1, 0
        %v1765 = vsel %vm1509, 1, 0
        %v1766 = vsel %vm1510, 1, 0
        %v1767 = vsel %vm1511, 1, 0
        %v1768 = vsel %vm1512, 1, 0
        %v1769 = vsel %vm1513, 1, 0
        %v1770 = vsel %vm1514, 1, 0
        %v1771 = vsel %vm1515, 1, 0
        %v1772 = vsel %vm1516, 1, 0
        %v1773 = vsel %vm1517, 1, 0
        %v1774 = vsel %vm1518, 1, 0
        %v1775 = vsel %vm1519, 1, 0
        %v1776 = vsel %vm1520, 1, 0
        %v1777 = vsel %vm1521, 1, 0
        %v1778 = vsel %vm1522, 1, 0
        %v1779 = vsel %vm1523, 1, 0
        %v1780 = vsel %vm1524, 1, 0
        %v1781 = vsel %vm1525, 1, 0
        %v1782 = vsel %vm1526, 1, 0
        %v1783 = vsel %vm1527, 1, 0
        %v1784 = vsel %vm1528, 1, 0
        %v1785 = vsel %vm1529, 1, 0
        %v1786 = vsel %vm1530, 1, 0
        %v1787 = vsel %vm1531, 1, 0
        %v1788 = vsel %vm1532, 1, 0
        %v1789 = vsel %vm1533, 1, 0
        %v1790 = vsel %vm1534, 1, 0
        %v1791 = vsel %vm1535, 1, 0
        %v1792 = vsel %vm1536, 1, 0
        %v1793 = vsel %vm1537, 1, 0
        %v1794 = vsel %vm1538, 1, 0
        %v1795 = vsel %vm1539, 1, 0
        %v1796 = vsel %vm1540, 1, 0
        %v1797 = vsel %vm1541, 1, 0
        %v1798 = vsel %vm1542, 1, 0
        %v1799 = vsel %vm1543, 1, 0
        %v1800 = vsel %vm1544, 1, 0
        %v1801 = vsel %vm1545, 1, 0
        %v1802 = vsel %vm1546, 1, 0
        %v1803 = vsel %vm1547, 1, 0
        %v1804 = vsel %vm1548, 1, 0
        %v1805 = vsel %vm1549, 1, 0
        %v1806 = vsel %vm1550, 1, 0
        %v1807 = vsel %vm1551, 1, 0
        %v1808 = vsel %vm1552, 1, 0
        %v1809 = vsel %vm1553, 1, 0
        %v1810 = vsel %vm1554, 1, 0
        %v1811 = vsel %vm1555, 1, 0
        %v1812 = vsel %vm1556, 1, 0
        %v1813 = vsel %vm1557, 1, 0
        %v1814 = vsel %vm1558, 1, 0
        %v1815 = vsel %vm1559, 1, 0
        %v1816 = vsel %vm1560, 1, 0
        %v1817 = vsel %vm1561, 1, 0
        %v1818 = vsel %vm1562, 1, 0
        %v1819 = vsel %vm1563, 1, 0
        %v1820 = vsel %vm1564, 1, 0
        %v1821 = vsel %vm1565, 1, 0
        %v1822 = vsel %vm1566, 1, 0
        %v1823 = vsel %vm1567, 1, 0
        %v1824 = vsel %vm1568, 1, 0
        %v1825 = vsel %vm1569, 1, 0
        %v1826 = vsel %vm1570, 1, 0
        %v1827 = vsel %vm1571, 1, 0
        %v1828 = vsel %vm1572, 1, 0
        %v1829 = vsel %vm1573, 1, 0
        %v1830 = vsel %vm1574, 1, 0
        %v1831 = vsel %vm1575, 1, 0
        %v1832 = vsel %vm1576, 1, 0
        %v1833 = vsel %vm1577, 1, 0
        %v1834 = vsel %vm1578, 1, 0
        %v1835 = vsel %vm1579, 1, 0
        %v1836 = vsel %vm1580, 1, 0
        %v1837 = vsel %vm1581, 1, 0
        %v1838 = vsel %vm1582, 1, 0
        %v1839 = vsel %vm1583, 1, 0
        %v1840 = vsel %vm1584, 1, 0
        %v1841 = vsel %vm1585, 1, 0
        %v1842 = vsel %vm1586, 1, 0
        %v1843 = vsel %vm1587, 1, 0
        %v1844 = vsel %vm1588, 1, 0
        %v1845 = vsel %vm1589, 1, 0
        %v1846 = vsel %vm1590, 1, 0
        %v1847 = vsel %vm1591, 1, 0
        %v1848 = vsel %vm1592, 1, 0
        %v1849 = vsel %vm1593, 1, 0
        %v1850 = vsel %vm1594, 1, 0
        %v1851 = vsel %vm1595, 1, 0
        %v1852 = vsel %vm1596, 1, 0
        %v1853 = vsel %vm1597, 1, 0
        %v1854 = vsel %vm1598, 1, 0
        %v1855 = vsel %vm1599, 1, 0
        %v1856 = vsel %vm1600, 1, 0
        %v1857 = vsel %vm1601, 1, 0
        %v1858 = vsel %vm1602, 1, 0
        %v1859 = vsel %vm1603, 1, 0
        %v1860 = vsel %vm1604, 1, 0
        %v1861 = vsel %vm1605, 1, 0
        %v1862 = vsel %vm1606, 1, 0
        %v1863 = vsel %vm1607, 1, 0
        %v1864 = vsel %vm1608, 1, 0
        %v1865 = vsel %vm1609, 1, 0
        %v1866 = vsel %vm1610, 1, 0
        %v1867 = vsel %vm1611, 1, 0
        %v1868 = vsel %vm1612, 1, 0
        %v1869 = vsel %vm1613, 1, 0
        %v1870 = vsel %vm1614, 1, 0
        %v1871 = vsel %vm1615, 1, 0
        %v1872 = vsel %vm1616, 1, 0
        %v1873 = vsel %vm1617, 1, 0
        %v1874 = vsel %vm1618, 1, 0
        %v1875 = vsel %vm1619, 1, 0
        %v1876 = vsel %vm1620, 1, 0
        %v1877 = vsel %vm1621, 1, 0
        %v1878 = vsel %vm1622, 1, 0
        %v1879 = vsel %vm1623, 1, 0
        %v1880 = vsel %vm1624, 1, 0
        %v1881 = vsel %vm1625, 1, 0
        %v1882 = vsel %vm1626, 1, 0
        %v1883 = vsel %vm1627, 1, 0
        %v1884 = vsel %vm1628, 1, 0
        %v1885 = vsel %vm1629, 1, 0
        %v1886 = vsel %vm1630, 1, 0
        %v1887 = vsel %vm1631, 1, 0
        %v1888 = vsel %vm1632, 1, 0
        %v1889 = vsel %vm1633, 1, 0
        %v1890 = vsel %vm1634, 1, 0
        %v1891 = vsel %vm1635, 1, 0
        %v1892 = vsel %vm1636, 1, 0
        %v1893 = vsel %vm1637, 1, 0
        %v1894 = vsel %vm1638, 1, 0
        %v1895 = vsel %vm1639, 1, 0
        %v1896 = vsel %vm1640, 1, 0
        %v1897 = vsel %vm1641, 1, 0
        %v1898 = vsel %vm1642, 1, 0
        %v1899 = vsel %vm1643, 1, 0
        %v1900 = vsel %vm1644, 1, 0
        %v1901 = vsel %vm1645, 1, 0
        %v1902 = vsel %vm1646, 1, 0
        %v1903 = vsel %vm1647, 1, 0
        %v1904 = vsel %vm1648, 1, 0
        %v1905 = vsel %vm1649, 1, 0
        %v1906 = vsel %vm1650, 1, 0
        %v1907 = vsel %vm1651, 1, 0
        %v1908 = vsel %vm1652, 1, 0
        %v1909 = vsel %vm1653, 1, 0
        %v1910 = vsel %vm1654, 1, 0
        %v1911 = vsel %vm1655, 1, 0
        %v1912 = vsel %vm1656, 1, 0
        %v1913 = vsel %vm1657, 1, 0
        %v1914 = vsel %vm1658, 1, 0
        %v1915 = vsel %vm1659, 1, 0
        %v1916 = vsel %vm1660, 1, 0
        %v1917 = vsel %vm1661, 1, 0
        %v1918 = vsel %vm1662, 1, 0
        %v1919 = vsel %vm1663, 1, 0
        %v1920 = vsel %vm1664, 1, 0
        %v1921 = vsel %vm1665, 1, 0
        %v1922 = vsel %vm1666, 1, 0
        %v1923 = vsel %vm1667, 1, 0
        %v1924 = vsel %vm1668, 1, 0
        %v1925 = vsel %vm1669, 1, 0
        %v1926 = vsel %vm1670, 1, 0
        %v1927 = vsel %vm1671, 1, 0
        %v1928 = vsel %vm1672, 1, 0
        %v1929 = vsel %vm1673, 1, 0
        %v1930 = vsel %vm1674, 1, 0
        %v1931 = vsel %vm1675, 1, 0
        %v1932 = vsel %vm1676, 1, 0
        %v1933 = vsel %vm1677, 1, 0
        %v1934 = vsel %vm1678, 1, 0
        %v1935 = vsel %vm1679, 1, 0
        %v1936 = vsel %vm1680, 1, 0
        %v1937 = vsel %vm1681, 1, 0
        %v1938 = vsel %vm1682, 1, 0
        %v1939 = vsel %vm1683, 1, 0
        %v1940 = vsel %vm1684, 1, 0
        %v1941 = vsel %vm1685, 1, 0
        %v1942 = vsel %vm1686, 1, 0
        %v1943 = vsel %vm1687, 1, 0
        %v1944 = vsel %vm1688, 1, 0
        %v1945 = vsel %vm1689, 1, 0
        %v1946 = vsel %vm1690, 1, 0
        %v1947 = vsel %vm1691, 1, 0
        %v1948 = vsel %vm1692, 1, 0
        %v1949 = vsel %vm1693, 1, 0
        %v1950 = vsel %vm1694, 1, 0
        %v1951 = vsel %vm1695, 1, 0
        %v1952 = vsel %vm1696, 1, 0
        %v1953 = vsel %vm1697, 1, 0
        %v1954 = vsel %vm1698, 1, 0
        %v1955 = vsel %vm1699, 1, 0
        %v1956 = vsel %vm1700, 1, 0
        %v1957 = vsel %vm1701, 1, 0
        %v1958 = vsel %vm1702, 1, 0
        %v1959 = vsel %vm1703, 1, 0
        %v1960 = vsel %vm1704, 1, 0
        %v1961 = vcvt.s32.f32 %v1705
        %v1962 = vcvt.s32.f32 %v1706
        %v1963 = vcvt.s32.f32 %v1707
        %v1964 = vcvt.s32.f32 %v1708
        %v1965 = vcvt.s32.f32 %v1709
        %v1966 = vcvt.s32.f32 %v1710
        %v1967 = vcvt.s32.f32 %v1711
        %v1968 = vcvt.s32.f32 %v1712
        %v1969 = vcvt.s32.f32 %v1713
        %v1970 = vcvt.s32.f32 %v1714
        %v1971 = vcvt.s32.f32 %v1715
        %v1972 = vcvt.s32.f32 %v1716
        %v1973 = vcvt.s32.f32 %v1717
        %v1974 = vcvt.s32.f32 %v1718
        %v1975 = vcvt.s32.f32 %v1719
        %v1976 = vcvt.s32.f32 %v1720
        %v1977 = vcvt.s32.f32 %v1721
        %v1978 = vcvt.s32.f32 %v1722
        %v1979 = vcvt.s32.f32 %v1723
        %v1980 = vcvt.s32.f32 %v1724
        %v1981 = vcvt.s32.f32 %v1725
        %v1982 = vcvt.s32.f32 %v1726
        %v1983 = vcvt.s32.f32 %v1727
        %v1984 = vcvt.s32.f32 %v1728
        %v1985 = vcvt.s32.f32 %v1729
        %v1986 = vcvt.s32.f32 %v1730
        %v1987 = vcvt.s32.f32 %v1731
        %v1988 = vcvt.s32.f32 %v1732
        %v1989 = vcvt.s32.f32 %v1733
        %v1990 = vcvt.s32.f32 %v1734
        %v1991 = vcvt.s32.f32 %v1735
        %v1992 = vcvt.s32.f32 %v1736
        %v1993 = vcvt.s32.f32 %v1737
        %v1994 = vcvt.s32.f32 %v1738
        %v1995 = vcvt.s32.f32 %v1739
        %v1996 = vcvt.s32.f32 %v1740
        %v1997 = vcvt.s32.f32 %v1741
        %v1998 = vcvt.s32.f32 %v1742
        %v1999 = vcvt.s32.f32 %v1743
        %v2000 = vcvt.s32.f32 %v1744
        %v2001 = vcvt.s32.f32 %v1745
        %v2002 = vcvt.s32.f32 %v1746
        %v2003 = vcvt.s32.f32 %v1747
        %v2004 = vcvt.s32.f32 %v1748
        %v2005 = vcvt.s32.f32 %v1749
        %v2006 = vcvt.s32.f32 %v1750
        %v2007 = vcvt.s32.f32 %v1751
        %v2008 = vcvt.s32.f32 %v1752
        %v2009 = vcvt.s32.f32 %v1753
        %v2010 = vcvt.s32.f32 %v1754
        %v2011 = vcvt.s32.f32 %v1755
        %v2012 = vcvt.s32.f32 %v1756
        %v2013 = vcvt.s32.f32 %v1757
        %v2014 = vcvt.s32.f32 %v1758
        %v2015 = vcvt.s32.f32 %v1759
        %v2016 = vcvt.s32.f32 %v1760
        %v2017 = vcvt.s32.f32 %v1761
        %v2018 = vcvt.s32.f32 %v1762
        %v2019 = vcvt.s32.f32 %v1763
        %v2020 = vcvt.s32.f32 %v1764
        %v2021 = vcvt.s32.f32 %v1765
        %v2022 = vcvt.s32.f32 %v1766
        %v2023 = vcvt.s32.f32 %v1767
        %v2024 = vcvt.s32.f32 %v1768
        %v2025 = vcvt.s32.f32 %v1769
        %v2026 = vcvt.s32.f32 %v1770
        %v2027 = vcvt.s32.f32 %v1771
        %v2028 = vcvt.s32.f32 %v1772
        %v2029 = vcvt.s32.f32 %v1773
        %v2030 = vcvt.s32.f32 %v1774
        %v2031 = vcvt.s32.f32 %v1775
        %v2032 = vcvt.s32.f32 %v1776
        %v2033 = vcvt.s32.f32 %v1777
        %v2034 = vcvt.s32.f32 %v1778
        %v2035 = vcvt.s32.f32 %v1779
        %v2036 = vcvt.s32.f32 %v1780
        %v2037 = vcvt.s32.f32 %v1781
        %v2038 = vcvt.s32.f32 %v1782
        %v2039 = vcvt.s32.f32 %v1783
        %v2040 = vcvt.s32.f32 %v1784
        %v2041 = vcvt.s32.f32 %v1785
        %v2042 = vcvt.s32.f32 %v1786
        %v2043 = vcvt.s32.f32 %v1787
        %v2044 = vcvt.s32.f32 %v1788
        %v2045 = vcvt.s32.f32 %v1789
        %v2046 = vcvt.s32.f32 %v1790
        %v2047 = vcvt.s32.f32 %v1791
        %v2048 = vcvt.s32.f32 %v1792
        %v2049 = vcvt.s32.f32 %v1793
        %v2050 = vcvt.s32.f32 %v1794
        %v2051 = vcvt.s32.f32 %v1795
        %v2052 = vcvt.s32.f32 %v1796
        %v2053 = vcvt.s32.f32 %v1797
        %v2054 = vcvt.s32.f32 %v1798
        %v2055 = vcvt.s32.f32 %v1799
        %v2056 = vcvt.s32.f32 %v1800
        %v2057 = vcvt.s32.f32 %v1801
        %v2058 = vcvt.s32.f32 %v1802
        %v2059 = vcvt.s32.f32 %v1803
        %v2060 = vcvt.s32.f32 %v1804
        %v2061 = vcvt.s32.f32 %v1805
        %v2062 = vcvt.s32.f32 %v1806
        %v2063 = vcvt.s32.f32 %v1807
        %v2064 = vcvt.s32.f32 %v1808
        %v2065 = vcvt.s32.f32 %v1809
        %v2066 = vcvt.s32.f32 %v1810
        %v2067 = vcvt.s32.f32 %v1811
        %v2068 = vcvt.s32.f32 %v1812
        %v2069 = vcvt.s32.f32 %v1813
        %v2070 = vcvt.s32.f32 %v1814
        %v2071 = vcvt.s32.f32 %v1815
        %v2072 = vcvt.s32.f32 %v1816
        %v2073 = vcvt.s32.f32 %v1817
        %v2074 = vcvt.s32.f32 %v1818
        %v2075 = vcvt.s32.f32 %v1819
        %v2076 = vcvt.s32.f32 %v1820
        %v2077 = vcvt.s32.f32 %v1821
        %v2078 = vcvt.s32.f32 %v1822
        %v2079 = vcvt.s32.f32 %v1823
        %v2080 = vcvt.s32.f32 %v1824
        %v2081 = vcvt.s32.f32 %v1825
        %v2082 = vcvt.s32.f32 %v1826
        %v2083 = vcvt.s32.f32 %v1827
        %v2084 = vcvt.s32.f32 %v1828
        %v2085 = vcvt.s32.f32 %v1829
        %v2086 = vcvt.s32.f32 %v1830
        %v2087 = vcvt.s32.f32 %v1831
        %v2088 = vcvt.s32.f32 %v1832
        %v2089 = vcvt.s32.f32 %v1833
        %v2090 = vcvt.s32.f32 %v1834
        %v2091 = vcvt.s32.f32 %v1835
        %v2092 = vcvt.s32.f32 %v1836
        %v2093 = vcvt.s32.f32 %v1837
        %v2094 = vcvt.s32.f32 %v1838
        %v2095 = vcvt.s32.f32 %v1839
        %v2096 = vcvt.s32.f32 %v1840
        %v2097 = vcvt.s32.f32 %v1841
        %v2098 = vcvt.s32.f32 %v1842
        %v2099 = vcvt.s32.f32 %v1843
        %v2100 = vcvt.s32.f32 %v1844
        %v2101 = vcvt.s32.f32 %v1845
        %v2102 = vcvt.s32.f32 %v1846
        %v2103 = vcvt.s32.f32 %v1847
        %v2104 = vcvt.s32.f32 %v1848
        %v2105 = vcvt.s32.f32 %v1849
        %v2106 = vcvt.s32.f32 %v1850
        %v2107 = vcvt.s32.f32 %v1851
        %v2108 = vcvt.s32.f32 %v1852
        %v2109 = vcvt.s32.f32 %v1853
        %v2110 = vcvt.s32.f32 %v1854
        %v2111 = vcvt.s32.f32 %v1855
        %v2112 = vcvt.s32.f32 %v1856
        %v2113 = vcvt.s32.f32 %v1857
        %v2114 = vcvt.s32.f32 %v1858
        %v2115 = vcvt.s32.f32 %v1859
        %v2116 = vcvt.s32.f32 %v1860
        %v2117 = vcvt.s32.f32 %v1861
        %v2118 = vcvt.s32.f32 %v1862
        %v2119 = vcvt.s32.f32 %v1863
        %v2120 = vcvt.s32.f32 %v1864
        %v2121 = vcvt.s32.f32 %v1865
        %v2122 = vcvt.s32.f32 %v1866
        %v2123 = vcvt.s32.f32 %v1867
        %v2124 = vcvt.s32.f32 %v1868
        %v2125 = vcvt.s32.f32 %v1869
        %v2126 = vcvt.s32.f32 %v1870
        %v2127 = vcvt.s32.f32 %v1871
        %v2128 = vcvt.s32.f32 %v1872
        %v2129 = vcvt.s32.f32 %v1873
        %v2130 = vcvt.s32.f32 %v1874
        %v2131 = vcvt.s32.f32 %v1875
        %v2132 = vcvt.s32.f32 %v1876
        %v2133 = vcvt.s32.f32 %v1877
        %v2134 = vcvt.s32.f32 %v1878
        %v2135 = vcvt.s32.f32 %v1879
        %v2136 = vcvt.s32.f32 %v1880
        %v2137 = vcvt.s32.f32 %v1881
        %v2138 = vcvt.s32.f32 %v1882
        %v2139 = vcvt.s32.f32 %v1883
        %v2140 = vcvt.s32.f32 %v1884
        %v2141 = vcvt.s32.f32 %v1885
        %v2142 = vcvt.s32.f32 %v1886
        %v2143 = vcvt.s32.f32 %v1887
        %v2144 = vcvt.s32.f32 %v1888
        %v2145 = vcvt.s32.f32 %v1889
        %v2146 = vcvt.s32.f32 %v1890
        %v2147 = vcvt.s32.f32 %v1891
        %v2148 = vcvt.s32.f32 %v1892
        %v2149 = vcvt.s32.f32 %v1893
        %v2150 = vcvt.s32.f32 %v1894
        %v2151 = vcvt.s32.f32 %v1895
        %v2152 = vcvt.s32.f32 %v1896
        %v2153 = vcvt.s32.f32 %v1897
        %v2154 = vcvt.s32.f32 %v1898
        %v2155 = vcvt.s32.f32 %v1899
        %v2156 = vcvt.s32.f32 %v1900
        %v2157 = vcvt.s32.f32 %v1901
        %v2158 = vcvt.s32.f32 %v1902
        %v2159 = vcvt.s32.f32 %v1903
        %v2160 = vcvt.s32.f32 %v1904
        %v2161 = vcvt.s32.f32 %v1905
        %v2162 = vcvt.s32.f32 %v1906
        %v2163 = vcvt.s32.f32 %v1907
        %v2164 = vcvt.s32.f32 %v1908
        %v2165 = vcvt.s32.f32 %v1909
        %v2166 = vcvt.s32.f32 %v1910
        %v2167 = vcvt.s32.f32 %v1911
        %v2168 = vcvt.s32.f32 %v1912
        %v2169 = vcvt.s32.f32 %v1913
        %v2170 = vcvt.s32.f32 %v1914
        %v2171 = vcvt.s32.f32 %v1915
        %v2172 = vcvt.s32.f32 %v1916
        %v2173 = vcvt.s32.f32 %v1917
        %v2174 = vcvt.s32.f32 %v1918
        %v2175 = vcvt.s32.f32 %v1919
        %v2176 = vcvt.s32.f32 %v1920
        %v2177 = vcvt.s32.f32 %v1921
        %v2178 = vcvt.s32.f32 %v1922
        %v2179 = vcvt.s32.f32 %v1923
        %v2180 = vcvt.s32.f32 %v1924
        %v2181 = vcvt.s32.f32 %v1925
        %v2182 = vcvt.s32.f32 %v1926
        %v2183 = vcvt.s32.f32 %v1927
        %v2184 = vcvt.s32.f32 %v1928
        %v2185 = vcvt.s32.f32 %v1929
        %v2186 = vcvt.s32.f32 %v1930
        %v2187 = vcvt.s32.f32 %v1931
        %v2188 = vcvt.s32.f32 %v1932
        %v2189 = vcvt.s32.f32 %v1933
        %v2190 = vcvt.s32.f32 %v1934
        %v2191 = vcvt.s32.f32 %v1935
        %v2192 = vcvt.s32.f32 %v1936
        %v2193 = vcvt.s32.f32 %v1937
        %v2194 = vcvt.s32.f32 %v1938
        %v2195 = vcvt.s32.f32 %v1939
        %v2196 = vcvt.s32.f32 %v1940
        %v2197 = vcvt.s32.f32 %v1941
        %v2198 = vcvt.s32.f32 %v1942
        %v2199 = vcvt.s32.f32 %v1943
        %v2200 = vcvt.s32.f32 %v1944
        %v2201 = vcvt.s32.f32 %v1945
        %v2202 = vcvt.s32.f32 %v1946
        %v2203 = vcvt.s32.f32 %v1947
        %v2204 = vcvt.s32.f32 %v1948
        %v2205 = vcvt.s32.f32 %v1949
        %v2206 = vcvt.s32.f32 %v1950
        %v2207 = vcvt.s32.f32 %v1951
        %v2208 = vcvt.s32.f32 %v1952
        %v2209 = vcvt.s32.f32 %v1953
        %v2210 = vcvt.s32.f32 %v1954
        %v2211 = vcvt.s32.f32 %v1955
        %v2212 = vcvt.s32.f32 %v1956
        %v2213 = vcvt.s32.f32 %v1957
        %v2214 = vcvt.s32.f32 %v1958
        %v2215 = vcvt.s32.f32 %v1959
        %v2216 = vcvt.s32.f32 %v1960
        %2217 = vrot.lane.b32.xlu0 %v638, 126
        %v2218 = vpop.permute.xlu0 %2217
        %s2219 = vtos %v2218
        %v2220 = vstv %s2219
        %v2222 = vmul.f32 %v548, %v2220
        %v2223 = vmul.f32 %v568, %v2220
        %v2224 = vmul.f32 %v572, %v2220
        %v2225 = vmul.f32 %v573, %v2220
        %v2226 = vsub.f32 1.0, %v638
        %2228 = vrot.lane.b32.xlu0 %v2226, 126
        %v2229 = vpop.permute.xlu0 %2228
        %s2230 = vtos %v2229
        %v2231 = vstv %s2230
        %v2233 = vmul.f32 %v505, %v2231
        %v2234 = vmul.f32 %v506, %v2231
        %v2235 = vmul.f32 %v507, %v2231
        %v2236 = vmul.f32 %v508, %v2231
        %v2237 = vadd.f32 %v2222, %v2233
        %v2238 = vadd.f32 %v2223, %v2234
        %v2239 = vadd.f32 %v2224, %v2235
        %v2240 = vadd.f32 %v2225, %v2236
        %2241 = vrot.lane.b32.xlu0 %v2237, 127
        %v2242 = vpop.permute.xlu0 %2241
        %2243 = vrot.lane.b32.xlu0 %v2238, 127
        %v2244 = vpop.permute.xlu0 %2243
        %2245 = vrot.lane.b32.xlu0 %v2239, 127
        %v2246 = vpop.permute.xlu0 %2245
        %2247 = vrot.lane.b32.xlu0 %v2240, 127
        %v2248 = vpop.permute.xlu0 %2247
        %v2249 = vsel %vm968, %v2246, %v2248
        %v2250 = vsel %vm968, %v2244, %v2246
        %v2251 = vsel %vm968, %v2242, %v2244
        %v2252 = vsel %vm968, %v2248, %v2242
        %2253 = vrot.lane.b32.xlu0 %v2237, 112
        %v2254 = vpop.permute.xlu0 %2253
        %2255 = vrot.lane.b32.xlu0 %v2238, 112
        %v2256 = vpop.permute.xlu0 %2255
        %2257 = vrot.lane.b32.xlu0 %v2239, 112
        %v2258 = vpop.permute.xlu0 %2257
        %2259 = vrot.lane.b32.xlu0 %v2240, 112
        %v2260 = vpop.permute.xlu0 %2259
        %v2261 = vsel %vm1074, %v2258, %v2260
        %v2262 = vsel %vm1074, %v2256, %v2258
        %v2263 = vsel %vm1074, %v2254, %v2256
        %v2264 = vsel %vm1074, %v2260, %v2254
        %2265 = vrot.lane.b32.xlu0 %v2237, 111
        %v2266 = vpop.permute.xlu0 %2265
        %2267 = vrot.lane.b32.xlu0 %v2238, 111
        %v2268 = vpop.permute.xlu0 %2267
        %2269 = vrot.lane.b32.xlu0 %v2239, 111
        %v2270 = vpop.permute.xlu0 %2269
        %2271 = vrot.lane.b32.xlu0 %v2240, 111
        %v2272 = vpop.permute.xlu0 %2271
        %v2273 = vsel %vm1127, %v2270, %v2272
        %v2274 = vsel %vm1127, %v2268, %v2270
        %v2275 = vsel %vm1127, %v2266, %v2268
        %v2276 = vsel %vm1127, %v2272, %v2266
        %v2281 = vrot.slane %v2251, 6
        %v2282 = vrot.slane %v2250, 6
        %v2283 = vrot.slane %v2249, 6
        %v2284 = vrot.slane %v2252, 6
        %v2293 = vrot.slane %v2263, 4
        %v2294 = vrot.slane %v2262, 4
        %v2295 = vrot.slane %v2261, 4
        %v2296 = vrot.slane %v2264, 4
        %v2305 = vrot.slane %v2275, 2
        %v2306 = vrot.slane %v2274, 2
        %v2307 = vrot.slane %v2273, 2
        %v2308 = vrot.slane %v2276, 2
        %v2313 = vsel %vm639, %v2237, %v2281
        %v2314 = vsel %vm639, %v2238, %v2282
        %v2315 = vsel %vm639, %v2239, %v2283
        %v2316 = vsel %vm639, %v2240, %v2284
        %vm2317 = vcmask 1043456
        %v2318 = vsel %vm2317, %v2313, %v2293
        %v2319 = vsel %vm2317, %v2314, %v2294
        %v2320 = vsel %vm2317, %v2315, %v2295
        %v2321 = vsel %vm2317, %v2316, %v2296
        %vm2322 = vcmask 1045504
        %v2323 = vsel %vm2322, %v2318, %v2305
        %v2324 = vsel %vm2322, %v2319, %v2306
        %v2325 = vsel %vm2322, %v2320, %v2307
        %v2326 = vsel %vm2322, %v2321, %v2308
        %2327 = vmatpush.msra.mxu0 %v2021
        %2328 = vmatpush.msra.mxu0 %v2017
        %2329 = vmatpush.msra.mxu0 %v2013
        %2330 = vmatpush.msra.mxu0 %v2009
        %2331 = vmatpush.msra.mxu0 %v2005
        %2332 = vmatpush.msra.mxu0 %v2001
        %2333 = vmatpush.msra.mxu0 %v1997
        %2334 = vmatpush.msra.mxu0 %v1993
        %2335 = vmatpush.msra.mxu0 %v1989
        %2336 = vmatpush.msra.mxu0 %v1985
        %2337 = vmatpush.msra.mxu0 %v1981
        %2338 = vmatpush.msra.mxu0 %v1977
        %2339 = vmatpush.msra.mxu0 %v1973
        %2340 = vmatpush.msra.mxu0 %v1969
        %2341 = vmatpush.msra.mxu0 %v1965
        %2342 = vmatpush.msra.mxu0 %v1961
        %2343 = vmatmul.f32.gmra.mxu0 %v2323
        %v2344 = vpop.f32.mrf.mxu0
        %v2345 = vadd.f32 0.0, %v2344
        %2346 = vdwg.mxu0
        %2347 = vmatpush.msra.mxu0 %v2085
        %2348 = vmatpush.msra.mxu0 %v2081
        %2349 = vmatpush.msra.mxu0 %v2077
        %2350 = vmatpush.msra.mxu0 %v2073
        %2351 = vmatpush.msra.mxu0 %v2069
        %2352 = vmatpush.msra.mxu0 %v2065
        %2353 = vmatpush.msra.mxu0 %v2061
        %2354 = vmatpush.msra.mxu0 %v2057
        %2355 = vmatpush.msra.mxu0 %v2053
        %2356 = vmatpush.msra.mxu0 %v2049
        %2357 = vmatpush.msra.mxu0 %v2045
        %2358 = vmatpush.msra.mxu0 %v2041
        %2359 = vmatpush.msra.mxu0 %v2037
        %2360 = vmatpush.msra.mxu0 %v2033
        %2361 = vmatpush.msra.mxu0 %v2029
        %2362 = vmatpush.msra.mxu0 %v2025
        %2363 = vmatmul.f32.gmra.mxu0 %v2324
        %v2364 = vpop.f32.mrf.mxu0
        %v2365 = vadd.f32 %v2345, %v2364
        %2366 = vdwg.mxu0
        %2367 = vmatpush.msra.mxu0 %v2149
        %2368 = vmatpush.msra.mxu0 %v2145
        %2369 = vmatpush.msra.mxu0 %v2141
        %2370 = vmatpush.msra.mxu0 %v2137
        %2371 = vmatpush.msra.mxu0 %v2133
        %2372 = vmatpush.msra.mxu0 %v2129
        %2373 = vmatpush.msra.mxu0 %v2125
        %2374 = vmatpush.msra.mxu0 %v2121
        %2375 = vmatpush.msra.mxu0 %v2117
        %2376 = vmatpush.msra.mxu0 %v2113
        %2377 = vmatpush.msra.mxu0 %v2109
        %2378 = vmatpush.msra.mxu0 %v2105
        %2379 = vmatpush.msra.mxu0 %v2101
        %2380 = vmatpush.msra.mxu0 %v2097
        %2381 = vmatpush.msra.mxu0 %v2093
        %2382 = vmatpush.msra.mxu0 %v2089
        %2383 = vmatmul.f32.gmra.mxu0 %v2325
        %v2384 = vpop.f32.mrf.mxu0
        %v2385 = vadd.f32 %v2365, %v2384
        %2386 = vdwg.mxu0
        %2387 = vmatpush.msra.mxu0 %v2213
        %2388 = vmatpush.msra.mxu0 %v2209
        %2389 = vmatpush.msra.mxu0 %v2205
        %2390 = vmatpush.msra.mxu0 %v2201
        %2391 = vmatpush.msra.mxu0 %v2197
        %2392 = vmatpush.msra.mxu0 %v2193
        %2393 = vmatpush.msra.mxu0 %v2189
        %2394 = vmatpush.msra.mxu0 %v2185
        %2395 = vmatpush.msra.mxu0 %v2181
        %2396 = vmatpush.msra.mxu0 %v2177
        %2397 = vmatpush.msra.mxu0 %v2173
        %2398 = vmatpush.msra.mxu0 %v2169
        %2399 = vmatpush.msra.mxu0 %v2165
        %2400 = vmatpush.msra.mxu0 %v2161
        %2401 = vmatpush.msra.mxu0 %v2157
        %2402 = vmatpush.msra.mxu0 %v2153
        %2403 = vmatmul.f32.gmra.mxu0 %v2326
        %v2404 = vpop.f32.mrf.mxu0
        %v2405 = vadd.f32 %v2385, %v2404
        %2406 = vdwg.mxu0
        %2407 = vmatpush.msra.mxu0 %v2022
        %2408 = vmatpush.msra.mxu0 %v2018
        %2409 = vmatpush.msra.mxu0 %v2014
        %2410 = vmatpush.msra.mxu0 %v2010
        %2411 = vmatpush.msra.mxu0 %v2006
        %2412 = vmatpush.msra.mxu0 %v2002
        %2413 = vmatpush.msra.mxu0 %v1998
        %2414 = vmatpush.msra.mxu0 %v1994
        %2415 = vmatpush.msra.mxu0 %v1990
        %2416 = vmatpush.msra.mxu0 %v1986
        %2417 = vmatpush.msra.mxu0 %v1982
        %2418 = vmatpush.msra.mxu0 %v1978
        %2419 = vmatpush.msra.mxu0 %v1974
        %2420 = vmatpush.msra.mxu0 %v1970
        %2421 = vmatpush.msra.mxu0 %v1966
        %2422 = vmatpush.msra.mxu0 %v1962
        %2423 = vmatmul.f32.gmra.mxu0 %v2323
        %v2424 = vpop.f32.mrf.mxu0
        %v2425 = vadd.f32 0.0, %v2424
        %2426 = vdwg.mxu0
        %2427 = vmatpush.msra.mxu0 %v2086
        %2428 = vmatpush.msra.mxu0 %v2082
        %2429 = vmatpush.msra.mxu0 %v2078
        %2430 = vmatpush.msra.mxu0 %v2074
        %2431 = vmatpush.msra.mxu0 %v2070
        %2432 = vmatpush.msra.mxu0 %v2066
        %2433 = vmatpush.msra.mxu0 %v2062
        %2434 = vmatpush.msra.mxu0 %v2058
        %2435 = vmatpush.msra.mxu0 %v2054
        %2436 = vmatpush.msra.mxu0 %v2050
        %2437 = vmatpush.msra.mxu0 %v2046
        %2438 = vmatpush.msra.mxu0 %v2042
        %2439 = vmatpush.msra.mxu0 %v2038
        %2440 = vmatpush.msra.mxu0 %v2034
        %2441 = vmatpush.msra.mxu0 %v2030
        %2442 = vmatpush.msra.mxu0 %v2026
        %2443 = vmatmul.f32.gmra.mxu0 %v2324
        %v2444 = vpop.f32.mrf.mxu0
        %v2445 = vadd.f32 %v2425, %v2444
        %2446 = vdwg.mxu0
        %2447 = vmatpush.msra.mxu0 %v2150
        %2448 = vmatpush.msra.mxu0 %v2146
        %2449 = vmatpush.msra.mxu0 %v2142
        %2450 = vmatpush.msra.mxu0 %v2138
        %2451 = vmatpush.msra.mxu0 %v2134
        %2452 = vmatpush.msra.mxu0 %v2130
        %2453 = vmatpush.msra.mxu0 %v2126
        %2454 = vmatpush.msra.mxu0 %v2122
        %2455 = vmatpush.msra.mxu0 %v2118
        %2456 = vmatpush.msra.mxu0 %v2114
        %2457 = vmatpush.msra.mxu0 %v2110
        %2458 = vmatpush.msra.mxu0 %v2106
        %2459 = vmatpush.msra.mxu0 %v2102
        %2460 = vmatpush.msra.mxu0 %v2098
        %2461 = vmatpush.msra.mxu0 %v2094
        %2462 = vmatpush.msra.mxu0 %v2090
        %2463 = vmatmul.f32.gmra.mxu0 %v2325
        %v2464 = vpop.f32.mrf.mxu0
        %v2465 = vadd.f32 %v2445, %v2464
        %2466 = vdwg.mxu0
        %2467 = vmatpush.msra.mxu0 %v2214
        %2468 = vmatpush.msra.mxu0 %v2210
        %2469 = vmatpush.msra.mxu0 %v2206
        %2470 = vmatpush.msra.mxu0 %v2202
        %2471 = vmatpush.msra.mxu0 %v2198
        %2472 = vmatpush.msra.mxu0 %v2194
        %2473 = vmatpush.msra.mxu0 %v2190
        %2474 = vmatpush.msra.mxu0 %v2186
        %2475 = vmatpush.msra.mxu0 %v2182
        %2476 = vmatpush.msra.mxu0 %v2178
        %2477 = vmatpush.msra.mxu0 %v2174
        %2478 = vmatpush.msra.mxu0 %v2170
        %2479 = vmatpush.msra.mxu0 %v2166
        %2480 = vmatpush.msra.mxu0 %v2162
        %2481 = vmatpush.msra.mxu0 %v2158
        %2482 = vmatpush.msra.mxu0 %v2154
        %2483 = vmatmul.f32.gmra.mxu0 %v2326
        %v2484 = vpop.f32.mrf.mxu0
        %v2485 = vadd.f32 %v2465, %v2484
        %2486 = vdwg.mxu0
        %2487 = vmatpush.msra.mxu0 %v2023
        %2488 = vmatpush.msra.mxu0 %v2019
        %2489 = vmatpush.msra.mxu0 %v2015
        %2490 = vmatpush.msra.mxu0 %v2011
        %2491 = vmatpush.msra.mxu0 %v2007
        %2492 = vmatpush.msra.mxu0 %v2003
        %2493 = vmatpush.msra.mxu0 %v1999
        %2494 = vmatpush.msra.mxu0 %v1995
        %2495 = vmatpush.msra.mxu0 %v1991
        %2496 = vmatpush.msra.mxu0 %v1987
        %2497 = vmatpush.msra.mxu0 %v1983
        %2498 = vmatpush.msra.mxu0 %v1979
        %2499 = vmatpush.msra.mxu0 %v1975
        %2500 = vmatpush.msra.mxu0 %v1971
        %2501 = vmatpush.msra.mxu0 %v1967
        %2502 = vmatpush.msra.mxu0 %v1963
        %2503 = vmatmul.f32.gmra.mxu0 %v2323
        %v2504 = vpop.f32.mrf.mxu0
        %v2505 = vadd.f32 0.0, %v2504
        %2506 = vdwg.mxu0
        %2507 = vmatpush.msra.mxu0 %v2087
        %2508 = vmatpush.msra.mxu0 %v2083
        %2509 = vmatpush.msra.mxu0 %v2079
        %2510 = vmatpush.msra.mxu0 %v2075
        %2511 = vmatpush.msra.mxu0 %v2071
        %2512 = vmatpush.msra.mxu0 %v2067
        %2513 = vmatpush.msra.mxu0 %v2063
        %2514 = vmatpush.msra.mxu0 %v2059
        %2515 = vmatpush.msra.mxu0 %v2055
        %2516 = vmatpush.msra.mxu0 %v2051
        %2517 = vmatpush.msra.mxu0 %v2047
        %2518 = vmatpush.msra.mxu0 %v2043
        %2519 = vmatpush.msra.mxu0 %v2039
        %2520 = vmatpush.msra.mxu0 %v2035
        %2521 = vmatpush.msra.mxu0 %v2031
        %2522 = vmatpush.msra.mxu0 %v2027
        %2523 = vmatmul.f32.gmra.mxu0 %v2324
        %v2524 = vpop.f32.mrf.mxu0
        %v2525 = vadd.f32 %v2505, %v2524
        %2526 = vdwg.mxu0
        %2527 = vmatpush.msra.mxu0 %v2151
        %2528 = vmatpush.msra.mxu0 %v2147
        %2529 = vmatpush.msra.mxu0 %v2143
        %2530 = vmatpush.msra.mxu0 %v2139
        %2531 = vmatpush.msra.mxu0 %v2135
        %2532 = vmatpush.msra.mxu0 %v2131
        %2533 = vmatpush.msra.mxu0 %v2127
        %2534 = vmatpush.msra.mxu0 %v2123
        %2535 = vmatpush.msra.mxu0 %v2119
        %2536 = vmatpush.msra.mxu0 %v2115
        %2537 = vmatpush.msra.mxu0 %v2111
        %2538 = vmatpush.msra.mxu0 %v2107
        %2539 = vmatpush.msra.mxu0 %v2103
        %2540 = vmatpush.msra.mxu0 %v2099
        %2541 = vmatpush.msra.mxu0 %v2095
        %2542 = vmatpush.msra.mxu0 %v2091
        %2543 = vmatmul.f32.gmra.mxu0 %v2325
        %v2544 = vpop.f32.mrf.mxu0
        %v2545 = vadd.f32 %v2525, %v2544
        %2546 = vdwg.mxu0
        %2547 = vmatpush.msra.mxu0 %v2215
        %2548 = vmatpush.msra.mxu0 %v2211
        %2549 = vmatpush.msra.mxu0 %v2207
        %2550 = vmatpush.msra.mxu0 %v2203
        %2551 = vmatpush.msra.mxu0 %v2199
        %2552 = vmatpush.msra.mxu0 %v2195
        %2553 = vmatpush.msra.mxu0 %v2191
        %2554 = vmatpush.msra.mxu0 %v2187
        %2555 = vmatpush.msra.mxu0 %v2183
        %2556 = vmatpush.msra.mxu0 %v2179
        %2557 = vmatpush.msra.mxu0 %v2175
        %2558 = vmatpush.msra.mxu0 %v2171
        %2559 = vmatpush.msra.mxu0 %v2167
        %2560 = vmatpush.msra.mxu0 %v2163
        %2561 = vmatpush.msra.mxu0 %v2159
        %2562 = vmatpush.msra.mxu0 %v2155
        %2563 = vmatmul.f32.gmra.mxu0 %v2326
        %v2564 = vpop.f32.mrf.mxu0
        %v2565 = vadd.f32 %v2545, %v2564
        %2566 = vdwg.mxu0
        %2567 = vmatpush.msra.mxu0 %v2024
        %2568 = vmatpush.msra.mxu0 %v2020
        %2569 = vmatpush.msra.mxu0 %v2016
        %2570 = vmatpush.msra.mxu0 %v2012
        %2571 = vmatpush.msra.mxu0 %v2008
        %2572 = vmatpush.msra.mxu0 %v2004
        %2573 = vmatpush.msra.mxu0 %v2000
        %2574 = vmatpush.msra.mxu0 %v1996
        %2575 = vmatpush.msra.mxu0 %v1992
        %2576 = vmatpush.msra.mxu0 %v1988
        %2577 = vmatpush.msra.mxu0 %v1984
        %2578 = vmatpush.msra.mxu0 %v1980
        %2579 = vmatpush.msra.mxu0 %v1976
        %2580 = vmatpush.msra.mxu0 %v1972
        %2581 = vmatpush.msra.mxu0 %v1968
        %2582 = vmatpush.msra.mxu0 %v1964
        %2583 = vmatmul.f32.gmra.mxu0 %v2323
        %v2584 = vpop.f32.mrf.mxu0
        %v2585 = vadd.f32 0.0, %v2584
        %2586 = vdwg.mxu0
        %2587 = vmatpush.msra.mxu0 %v2088
        %2588 = vmatpush.msra.mxu0 %v2084
        %2589 = vmatpush.msra.mxu0 %v2080
        %2590 = vmatpush.msra.mxu0 %v2076
        %2591 = vmatpush.msra.mxu0 %v2072
        %2592 = vmatpush.msra.mxu0 %v2068
        %2593 = vmatpush.msra.mxu0 %v2064
        %2594 = vmatpush.msra.mxu0 %v2060
        %2595 = vmatpush.msra.mxu0 %v2056
        %2596 = vmatpush.msra.mxu0 %v2052
        %2597 = vmatpush.msra.mxu0 %v2048
        %2598 = vmatpush.msra.mxu0 %v2044
        %2599 = vmatpush.msra.mxu0 %v2040
        %2600 = vmatpush.msra.mxu0 %v2036
        %2601 = vmatpush.msra.mxu0 %v2032
        %2602 = vmatpush.msra.mxu0 %v2028
        %2603 = vmatmul.f32.gmra.mxu0 %v2324
        %v2604 = vpop.f32.mrf.mxu0
        %v2605 = vadd.f32 %v2585, %v2604
        %2606 = vdwg.mxu0
        %2607 = vmatpush.msra.mxu0 %v2152
        %2608 = vmatpush.msra.mxu0 %v2148
        %2609 = vmatpush.msra.mxu0 %v2144
        %2610 = vmatpush.msra.mxu0 %v2140
        %2611 = vmatpush.msra.mxu0 %v2136
        %2612 = vmatpush.msra.mxu0 %v2132
        %2613 = vmatpush.msra.mxu0 %v2128
        %2614 = vmatpush.msra.mxu0 %v2124
        %2615 = vmatpush.msra.mxu0 %v2120
        %2616 = vmatpush.msra.mxu0 %v2116
        %2617 = vmatpush.msra.mxu0 %v2112
        %2618 = vmatpush.msra.mxu0 %v2108
        %2619 = vmatpush.msra.mxu0 %v2104
        %2620 = vmatpush.msra.mxu0 %v2100
        %2621 = vmatpush.msra.mxu0 %v2096
        %2622 = vmatpush.msra.mxu0 %v2092
        %2623 = vmatmul.f32.gmra.mxu0 %v2325
        %v2624 = vpop.f32.mrf.mxu0
        %v2625 = vadd.f32 %v2605, %v2624
        %2626 = vdwg.mxu0
        %2627 = vmatpush.msra.mxu0 %v2216
        %2628 = vmatpush.msra.mxu0 %v2212
        %2629 = vmatpush.msra.mxu0 %v2208
        %2630 = vmatpush.msra.mxu0 %v2204
        %2631 = vmatpush.msra.mxu0 %v2200
        %2632 = vmatpush.msra.mxu0 %v2196
        %2633 = vmatpush.msra.mxu0 %v2192
        %2634 = vmatpush.msra.mxu0 %v2188
        %2635 = vmatpush.msra.mxu0 %v2184
        %2636 = vmatpush.msra.mxu0 %v2180
        %2637 = vmatpush.msra.mxu0 %v2176
        %2638 = vmatpush.msra.mxu0 %v2172
        %2639 = vmatpush.msra.mxu0 %v2168
        %2640 = vmatpush.msra.mxu0 %v2164
        %2641 = vmatpush.msra.mxu0 %v2160
        %2642 = vmatpush.msra.mxu0 %v2156
        %2643 = vmatmul.f32.gmra.mxu0 %v2326
        %v2644 = vpop.f32.mrf.mxu0
        %v2645 = vadd.f32 %v2625, %v2644
        %2646 = vdwg.mxu0
        %v2647 = vperm.slane %v1264, 1
        %v2648 = vperm.slane %v1265, 1
        %v2649 = vperm.slane %v1266, 1
        %v2650 = vperm.slane %v1267, 1
        %v2651 = vmul.f32 %v2405, %v2647
        %v2652 = vmul.f32 %v2485, %v2648
        %v2653 = vmul.f32 %v2565, %v2649
        %v2654 = vmul.f32 %v2645, %v2650
        %v2655 = vperm.slane %v1300, 1
        %v2656 = vperm.slane %v1301, 1
        %v2657 = vperm.slane %v1302, 1
        %v2658 = vperm.slane %v1303, 1
        %v2659 = vmul.f32 %v2405, %v2655
        %v2660 = vmul.f32 %v2485, %v2656
        %v2661 = vmul.f32 %v2565, %v2657
        %v2662 = vmul.f32 %v2645, %v2658
        %v2667 = vrot.slane %v2659, 2
        %v2668 = vrot.slane %v2660, 2
        %v2669 = vrot.slane %v2661, 2
        %v2670 = vrot.slane %v2662, 2
        %v2675 = vadd.f32 %v2651, %v2667
        %v2676 = vadd.f32 %v2652, %v2668
        %v2677 = vadd.f32 %v2653, %v2669
        %v2678 = vadd.f32 %v2654, %v2670
        %v2679 = vperm.slane %v1312, 1
        %v2680 = vperm.slane %v1313, 1
        %v2681 = vperm.slane %v1314, 1
        %v2682 = vperm.slane %v1315, 1
        %v2683 = vmul.f32 %v2405, %v2679
        %v2684 = vmul.f32 %v2485, %v2680
        %v2685 = vmul.f32 %v2565, %v2681
        %v2686 = vmul.f32 %v2645, %v2682
        %v2691 = vrot.slane %v2683, 4
        %v2692 = vrot.slane %v2684, 4
        %v2693 = vrot.slane %v2685, 4
        %v2694 = vrot.slane %v2686, 4
        %v2699 = vadd.f32 %v2675, %v2691
        %v2700 = vadd.f32 %v2676, %v2692
        %v2701 = vadd.f32 %v2677, %v2693
        %v2702 = vadd.f32 %v2678, %v2694
        %v2703 = vperm.slane %v1324, 1
        %v2704 = vperm.slane %v1325, 1
        %v2705 = vperm.slane %v1326, 1
        %v2706 = vperm.slane %v1327, 1
        %v2707 = vmul.f32 %v2405, %v2703
        %v2708 = vmul.f32 %v2485, %v2704
        %v2709 = vmul.f32 %v2565, %v2705
        %v2710 = vmul.f32 %v2645, %v2706
        %v2715 = vrot.slane %v2707, 6
        %v2716 = vrot.slane %v2708, 6
        %v2717 = vrot.slane %v2709, 6
        %v2718 = vrot.slane %v2710, 6
        %v2723 = vadd.f32 %v2699, %v2715
        %v2724 = vadd.f32 %v2700, %v2716
        %v2725 = vadd.f32 %v2701, %v2717
        %v2726 = vadd.f32 %v2702, %v2718
        %v2731 = vrot.slane %v2724, 6
        %v2732 = vrot.slane %v2725, 4
        %v2733 = vrot.slane %v2726, 2
        %v2734 = vsel %vm639, %v2723, %v2731
        %vm2735 = vcmask 1045508
        %v2736 = vsel %vm2735, %v2732, %v2733
        %v2737 = vsel %vm2317, %v2734, %v2736
        %2739 = vst [vmem:[%s448] sm:$0xff] %v2737
        %s2740 = sand.u32 %s219, 1
        %s2741 = scalar_lea.sflag [#allocation4], %s2740
        %s2742 = sand.u32 %s219, 1
        %s2743 = smul.addr %s2742, 8
        %s2744 = scalar_lea.vmem [#allocation14], %s2743
        // Predicated region
        $region81: #{tpu_custom_call.1} parent=51 // pred_check
          %p2745 = pneg %p229
        $region82: #{tpu_custom_call.1} parent=51 // pred_check_branch
          %2747 = sbr.rel (%p2745) target = $region84
        $region83: #{tpu_custom_call.1} parent=51 // pred_region
          %2749 = vsyncadd %s2741, 0
          %s2750 = smul.addr %s28, 4
          %s2751 = smul.addr %s2750, 2
          %s2752 = scalar_lea.hbm %s8, %s2751
          %s2754 = sshll.u32 %s2744, 4
          %s2755 = int_to_ptr.vmem [resolvable:$true] %s2754
          %s2756 = sshll.u32 %s2752, 4
          %s2757 = int_to_ptr.hbm [resolvable:$true] %s2756
          %2759 = dma.vmem_to_hbm [thread:$0]  %s2755, 128, %s2757, %s2741
        $region84: #{tpu_custom_call.1} parent=51 // pred_fallthru
          _
      $region52: #{tpu_custom_call.1} parent=5 // pred_fallthru
        _
      %p2760 = scmp.le.s32.totalorder 2, %s23
      // Predicated region
      $region85: #{tpu_custom_call.1} parent=5 // pred_check
        %p2761 = pneg %p2760
      $region86: #{tpu_custom_call.1} parent=5 // pred_check_branch
        %2763 = sbr.rel (%p2761) target = $region88
      $region87: #{tpu_custom_call.1} parent=5 // pred_region
        %s2764 = ssub.s32 %s23, 2
        // Predicated region
        $region89: #{tpu_custom_call.1} parent=87 // pred_check
          %p2765 = pneg %p235
        $region90: #{tpu_custom_call.1} parent=87 // pred_check_branch
          %2767 = sbr.rel (%p2765) target = $region92
        $region91: #{tpu_custom_call.1} parent=87 // pred_region
          %s2768 = sand.u32 %s220, 1
          %s2769 = scalar_lea.sflag [#allocation4], %s2768
          %s2770 = sand.u32 %s220, 1
          %s2771 = smul.addr %s2770, 8
          %s2772 = scalar_lea.vmem [#allocation14], %s2771
          %2774 = dma.done %s2769, 128
        $region92: #{tpu_custom_call.1} parent=87 // pred_fallthru
          _
      $region88: #{tpu_custom_call.1} parent=5 // pred_fallthru
        _
    $region6: #{tpu_custom_call.1} parent=1 // loop_footer
      %s27 = sadd.s32 1, %s23
    $region7: #{tpu_custom_call.1} parent=1 // loop_footer_branch
      %22 = sbr.rel target = $region3
    $region8: #{tpu_custom_call.1} parent=1 // loop_exit
      _
    %2775 = vsyncpa [#allocation3], 1
    %s2776 = scalar_lea.sflag [#allocation3], 1
    %2777 = vsyncpa %s2776, 1
    %2778 = vsyncpa [#allocation6], 1
    %2779 = vsyncpa [#allocation9], 1
    %2780 = vsyncpa [#allocation12], 1
    %s2781 = scalar_lea.sflag [#allocation12], 1
    %2782 = vsyncpa %s2781, 1
    %2783 = vsyncpa [#allocation4], 1
    %s2784 = scalar_lea.sflag [#allocation4], 1
    %2785 = vsyncpa %s2784, 1

</llo_original>
